<compile_context>
chip_gen: v7x
topology: tpu7x:2x2x1
jax: 0.10.0
libtpu: 0.0.40
codegen_flags: <defaults>
</compile_context>

<pallas_src>
import functools
import math

import numpy as np
import jax
import jax.numpy as jnp
from jax.experimental import pallas as pl
from jax.experimental.pallas import tpu as pltpu

VMEM = pltpu.MemorySpace.VMEM
SMEM = pltpu.MemorySpace.SMEM


def vspec():
    return pl.BlockSpec(memory_space=VMEM)


def sspec():
    return pl.BlockSpec(memory_space=SMEM)


# ----------------------------------------------------------------------------
# Fused kernel: unroll + topo build + GraphEnc + VAE head + final step
# ----------------------------------------------------------------------------
def l2g_kernel(z_ref, wgt_ref, eps_ref,
               wblk_ref, d_ref,
               se1t_ref, se2_ref, pool_ref,
               c1w_ref, c1b_ref, c2w_ref, c2b_ref,
               fc1w_ref, fc1b_ref, fc2w_ref, fc2b_ref,
               fmw_ref, fmb_ref, fvw_ref, fvb_ref,
               d1wx_ref, d1wz_ref, d1b_ref, d2w_ref, d2b_ref,
               gn_ref, beta_ref, alpha_ref,
               wlist_ref, latent_ref, kl_ref, loss_ref,
               *, num_unroll, l, L, m, n_latent, threshold, kl_hyper):
    f32 = jnp.float32
    zext = z_ref[...]                    # (B, L + m), zeros outside [:, :l]
    wgt = wgt_ref[...]                   # (B, L),     zeros outside [:, :l]
    B = zext.shape[0]
    Lm = L + m

    wblk = wblk_ref[...]                 # (L+m, L+m): [[0, D^T], [D, 0]]

    # column masks over the concatenated state X = [w | v]
    col = jax.lax.broadcasted_iota(jnp.int32, (1, Lm), 1)
    mw = (col < L).astype(f32)           # 1 on w-columns (edge space)
    mv = 1.0 - mw                        # 1 on v-columns (node space)
    sgn = mv - mw                        # -1 on w-cols, +1 on v-cols

    def leaky_relu(x):
        return jnp.where(x > 0, x, 0.01 * x)

    def prox_log_barrier(x, gn, alpha):
        up = jnp.maximum(x * x + 4.0 * gn * alpha, 1e-8)   # torch.clamp(min=1e-8)
        return (x - jnp.sqrt(up)) * 0.5

    def half_step(x, gn, beta):
        # one fused MXU push gives both v@D (w-cols) and w@D^T (v-cols)
        xw = jnp.dot(x, wblk, preferred_element_type=f32)
        return x + gn * (sgn * xw - (2.0 * beta) * (mw * x) - 2.0 * zext)

    x = jnp.zeros((B, Lm), f32)          # w = 0, v = 0 initialisation

    # ---- all unrolled primal-dual iterations except the last ----------------
    # (static unroll; switch to lax.fori_loop with (x,) carry for large layers)
    for i in range(num_unroll - 1):
        gn = gn_ref[i]
        beta = beta_ref[i]
        alpha = alpha_ref[i]
        y = half_step(x, gn, beta)
        p = mw * leaky_relu(y) + mv * prox_log_barrier(y, gn, alpha)
        q = half_step(p, gn, beta)
        x = x - y + q
        wlist_ref[:, i, :] = x[:, :L]    # lane-dense (B, 128) store

    last = num_unroll - 1
    gn = gn_ref[last]
    beta = beta_ref[last]
    alpha = alpha_ref[last]
    y = half_step(x, gn, beta)
    y1 = y[:, :L]                        # (B, L)
    y2 = y[:, L:]                        # (B, m)

    # ---- TopoDiffVAE: in-kernel topology build (replaces the XLA scatter) ---
    x_half = (y1 > threshold).astype(f32)          # (B, L)
    y_half = (wgt > threshold).astype(f32)         # (B, L)
    rows = [x_half[b:b + 1, :] for b in range(B)] + \
           [y_half[b:b + 1, :] for b in range(B)]
    t_row = jnp.concatenate(rows, axis=1)          # (1, 2B*L) stacked edge values

    # block-diagonal symmetric adjacency for all 2B graphs in one MXU push
    a_half = jnp.dot(se1t_ref[...] * t_row, se2_ref[...],
                     preferred_element_type=f32)   # (2B*m, 2B*m), upper halves
    a_blk = a_half + a_half.T                      # symmetric, zero diagonal

    # ---- GraphEnc (one matmul per conv layer thanks to the block-diag adj) --
    deg = jnp.sum(a_blk, axis=1, keepdims=True)    # (2B*m, 1) degree features
    h1 = jnp.dot(a_blk, deg * c1w_ref[...],
                 preferred_element_type=f32) + c1b_ref[...]
    h1 = jnp.maximum(h1, 0.0)
    h2 = jnp.dot(a_blk, jnp.dot(h1, c2w_ref[...], preferred_element_type=f32),
                 preferred_element_type=f32) + c2b_ref[...]
    h2 = jnp.maximum(h2, 0.0)
    hg = jnp.dot(pool_ref[...], h2, preferred_element_type=f32)     # (2B, 2*n_hid)
    hg = jnp.maximum(jnp.dot(hg, fc1w_ref[...], preferred_element_type=f32)
                     + fc1b_ref[...], 0.0)
    emb = jnp.dot(hg, fc2w_ref[...], preferred_element_type=f32) + fc2b_ref[...]
    x_emb = emb[:B, :]
    y_emb = emb[B:, :]

    # ---- latent diff + reparameterisation -----------------------------------
    diff = y_emb - x_emb
    z_mean = jnp.dot(diff, fmw_ref[...], preferred_element_type=f32) + fmb_ref[...]
    z_log_var = -jnp.abs(jnp.dot(diff, fvw_ref[...],
                                 preferred_element_type=f32) + fvb_ref[...])
    kl = -0.5 * jnp.mean(1.0 + z_log_var - z_mean * z_mean - jnp.exp(z_log_var))
    z_vec = z_mean + jnp.exp(0.5 * z_log_var) * eps_ref[...]

    # decoder on concat([y1, z_vec]) done with split weights (no concat needed)
    pre = (jnp.dot(y1, d1wx_ref[...], preferred_element_type=f32)
           + jnp.dot(z_vec, d1wz_ref[...], preferred_element_type=f32)
           + d1b_ref[...])
    y_pred = (jnp.dot(jnp.tanh(pre), d2w_ref[...], preferred_element_type=f32)
              + d2b_ref[...])                       # (B, L), zero in padded lanes

    # torch: recons = sum((y_pred - y_batch)**2, dim=-1).mean()
    recons = jnp.mean(jnp.sum((y_pred - wgt) ** 2, axis=-1, keepdims=True))
    kl_ref[0] = kl
    loss_ref[0] = recons + kl_hyper * kl

    # latent output (lane-dense padded buffer: [ y1[:, :l] | z_vec | 0 ... ])
    pieces = [y1[:, :l], z_vec]
    pad_rest = L - l - n_latent
    if pad_rest > 0:
        pieces.append(jnp.zeros((B, pad_rest), f32))
    latent_ref[...] = jnp.concatenate(pieces, axis=-1)

    # ---- final unrolled step using p1 = y_pred -------------------------------
    p1 = y_pred
    p2 = prox_log_barrier(y2, gn, alpha)
    z_w = zext[:, :L]
    q1 = p1 - gn * (2.0 * beta * p1 + 2.0 * z_w
                    + jnp.dot(p2, d_ref[...], preferred_element_type=f32))
    # written exactly once (no zeros-then-overwrite of the last slot)
    wlist_ref[:, last, :] = x[:, :L] - y1 + q1


# ----------------------------------------------------------------------------
# Wrapper factory: builds constant operators once, returns a jitted forward
# ----------------------------------------------------------------------------
def make_l2g_forward(num_unroll, graph_size, n_hid, n_latent, n_nodeFeat,
                     n_graphFeat, batch, threshold=1e-4, kl_hyper=1.0):
    assert n_nodeFeat == 1, "GraphEnc input feature is the node degree (1 feature)"
    m = graph_size
    l = m * (m - 1) // 2
    L = max(128, ((l + 127) // 128) * 128)       # lane-dense padded edge dim
    B = batch
    N = 2 * B
    d1 = int(m * (m - 1) * 2 / 3)                # matches torch int() truncation

    # --- constant operators (host numpy, closure constants) ------------------
    iu = np.triu_indices(m, k=1)                 # edge e = (iu[0][e] < iu[1][e])
    cols = np.arange(l)
    D_pad = np.zeros((m, L), np.float32)         # degree operator, padded cols
    D_pad[iu[0], cols] = 1.0
    D_pad[iu[1], cols] = 1.0
    Dt_pad = D_pad.T

    Wblk = np.zeros((L + m, L + m), np.float32)  # [[0, D^T], [D, 0]]
    Wblk[:L, L:] = Dt_pad
    Wblk[L:, :L] = D_pad

    E1 = np.zeros((L, m), np.float32)            # edge -> first endpoint
    E2 = np.zeros((L, m), np.float32)            # edge -> second endpoint
    E1[cols, iu[0]] = 1.0
    E2[cols, iu[1]] = 1.0
    SE1T = np.zeros((N * m, N * L), np.float32)  # stacked (block-diag) selectors
    SE2 = np.zeros((N * L, N * m), np.float32)
    PoolL = np.zeros((N, N * m), np.float32)     # per-graph node-sum pooling
    for n in range(N):
        SE1T[n * m:(n + 1) * m, n * L:(n + 1) * L] = E1.T
        SE2[n * L:(n + 1) * L, n * m:(n + 1) * m] = E2
        PoolL[n, n * m:(n + 1) * m] = 1.0

    kernel = functools.partial(
        l2g_kernel, num_unroll=num_unroll, l=l, L=L, m=m, n_latent=n_latent,
        threshold=float(threshold), kl_hyper=float(kl_hyper))

    out_shape = (
        jax.ShapeDtypeStruct((B, num_unroll, L), jnp.float32),  # w_list (padded)
        jax.ShapeDtypeStruct((B, L), jnp.float32),              # latent (padded)
        jax.ShapeDtypeStruct((1,), jnp.float32),                # kl
        jax.ShapeDtypeStruct((1,), jnp.float32),                # loss
    )
    fused_call = pl.pallas_call(
        kernel,
        out_shape=out_shape,
        in_specs=[vspec()] * 25 + [sspec()] * 3,
        out_specs=(vspec(), vspec(), sspec(), sspec()),
    )

    @jax.jit
    def forward(params, z, w_gt, eps):
        # one-time tiny padding of data / decoder weights to lane-dense layouts
        z_ext = jnp.zeros((B, L + m), jnp.float32).at[:, :l].set(z)
        wgt_pad = jnp.zeros((B, L), jnp.float32).at[:, :l].set(w_gt)
        d1wx = jnp.zeros((L, d1), jnp.float32).at[:l, :].set(params['dec1_w'][:l])
        d1wz = params['dec1_w'][l:]
        d2w = jnp.zeros((d1, L), jnp.float32).at[:, :l].set(params['dec2_w'])
        d2b = jnp.zeros((1, L), jnp.float32).at[:, :l].set(params['dec2_b'])

        wlist_pad, latent_pad, kl, loss = fused_call(
            z_ext, wgt_pad, eps,
            Wblk, D_pad, SE1T, SE2, PoolL,
            params['conv1_w'], params['conv1_b'],
            params['conv2_w'], params['conv2_b'],
            params['fc1_w'], params['fc1_b'],
            params['fc2_w'], params['fc2_b'],
            params['fmean_w'], params['fmean_b'],
            params['fvar_w'], params['fvar_b'],
            d1wx, d1wz, params['dec1_b'], d2w, d2b,
            params['gn'], params['beta'], params['alpha'])

        # cheap slices back to the module's exact output shapes
        w_list = wlist_pad[:, :, :l]
        latent = latent_pad[:, :l + n_latent]
        return w_list, loss[0], kl[0], latent

    return forward


# ----------------------------------------------------------------------------
# Parameter init (deterministic, synthetic; weights stored (in, out))
# ----------------------------------------------------------------------------
def init_params(key, num_unroll, graph_size, n_hid, n_latent, n_nodeFeat, n_graphFeat):
    l = graph_size * (graph_size - 1) // 2
    d1 = int(graph_size * (graph_size - 1) * 2 / 3)
    ks = jax.random.split(key, 8)

    def xavier(k, fan_in, fan_out, gain=1.0):
        bound = gain * math.sqrt(6.0 / (fan_in + fan_out))
        return jax.random.uniform(k, (fan_in, fan_out), jnp.float32, -bound, bound)

    relu_gain = math.sqrt(2.0)
    tanh_gain = 5.0 / 3.0
    return dict(
        gn=jnp.ones((num_unroll,), jnp.float32) / 100.0,
        beta=jnp.ones((num_unroll,), jnp.float32),
        alpha=jnp.ones((num_unroll,), jnp.float32),
        conv1_w=xavier(ks[0], n_nodeFeat, n_hid, relu_gain),
        conv1_b=jnp.ones((1, n_hid), jnp.float32),
        conv2_w=xavier(ks[1], n_hid, 2 * n_hid, relu_gain),
        conv2_b=jnp.ones((1, 2 * n_hid), jnp.float32),
        fc1_w=xavier(ks[2], 2 * n_hid, n_hid),
        fc1_b=jnp.zeros((1, n_hid), jnp.float32),
        fc2_w=xavier(ks[3], n_hid, n_graphFeat),
        fc2_b=jnp.zeros((1, n_graphFeat), jnp.float32),
        fmean_w=xavier(ks[4], n_graphFeat, n_latent, tanh_gain),
        fmean_b=jnp.zeros((1, n_latent), jnp.float32),
        fvar_w=xavier(ks[5], n_graphFeat, n_latent, tanh_gain),
        fvar_b=jnp.zeros((1, n_latent), jnp.float32),
        dec1_w=xavier(ks[6], l + n_latent, d1, tanh_gain),
        dec1_b=jnp.zeros((1, d1), jnp.float32),
        dec2_w=xavier(ks[7], d1, l, tanh_gain),
        dec2_b=jnp.zeros((1, l), jnp.float32),
    )


# ----------------------------------------------------------------------------
if __name__ == "__main__":
    num_unroll = 3
    graph_size = 8
    n_hid = 16
    n_latent = 8
    n_nodeFeat = 1
    n_graphFeat = 16
    batch = 2
    l = graph_size * (graph_size - 1) // 2    # 28

    key = jax.random.PRNGKey(0)
    kp, kz, kw, kn = jax.random.split(key, 4)
    params = init_params(kp, num_unroll, graph_size, n_hid, n_latent,
                         n_nodeFeat, n_graphFeat)
    z = jax.random.normal(kz, (batch, l), jnp.float32)
    w_gt = jnp.abs(jax.random.normal(kw, (batch, l), jnp.float32))
    eps = jax.random.normal(kn, (batch, n_latent), jnp.float32)

    forward = make_l2g_forward(num_unroll, graph_size, n_hid, n_latent,
                               n_nodeFeat, n_graphFeat, batch,
                               threshold=1e-4, kl_hyper=1.0)

    w_list, loss, kl, latent = forward(params, z, w_gt, eps)
    jax.block_until_ready(w_list)
    jax.block_until_ready(loss)
    jax.block_until_ready(kl)
    jax.block_until_ready(latent)

    assert w_list.shape == (batch, num_unroll, l)
    assert latent.shape == (batch, l + n_latent)
    assert loss.shape == () and kl.shape == ()
    assert bool(jnp.all(jnp.isfinite(w_list)))
    assert bool(jnp.all(jnp.isfinite(latent)))
    assert bool(jnp.isfinite(loss)) and bool(jnp.isfinite(kl))
    print("KERNEL_OK")
</pallas_src>

<mosaic_0001>
module attributes {stable_mosaic.version = 11 : i64} {
  func.func @l2g_kernel(%arg0: memref<2x136xf32, #tpu.memory_space<vmem>>, %arg1: memref<2x128xf32, #tpu.memory_space<vmem>>, %arg2: memref<2x8xf32, #tpu.memory_space<vmem>>, %arg3: memref<136x136xf32, #tpu.memory_space<vmem>>, %arg4: memref<8x128xf32, #tpu.memory_space<vmem>>, %arg5: memref<32x512xf32, #tpu.memory_space<vmem>>, %arg6: memref<512x32xf32, #tpu.memory_space<vmem>>, %arg7: memref<4x32xf32, #tpu.memory_space<vmem>>, %arg8: memref<1x16xf32, #tpu.memory_space<vmem>>, %arg9: memref<1x16xf32, #tpu.memory_space<vmem>>, %arg10: memref<16x32xf32, #tpu.memory_space<vmem>>, %arg11: memref<1x32xf32, #tpu.memory_space<vmem>>, %arg12: memref<32x16xf32, #tpu.memory_space<vmem>>, %arg13: memref<1x16xf32, #tpu.memory_space<vmem>>, %arg14: memref<16x16xf32, #tpu.memory_space<vmem>>, %arg15: memref<1x16xf32, #tpu.memory_space<vmem>>, %arg16: memref<16x8xf32, #tpu.memory_space<vmem>>, %arg17: memref<1x8xf32, #tpu.memory_space<vmem>>, %arg18: memref<16x8xf32, #tpu.memory_space<vmem>>, %arg19: memref<1x8xf32, #tpu.memory_space<vmem>>, %arg20: memref<128x37xf32, #tpu.memory_space<vmem>>, %arg21: memref<8x37xf32, #tpu.memory_space<vmem>>, %arg22: memref<1x37xf32, #tpu.memory_space<vmem>>, %arg23: memref<37x128xf32, #tpu.memory_space<vmem>>, %arg24: memref<1x128xf32, #tpu.memory_space<vmem>>, %arg25: memref<3xf32, #tpu.memory_space<smem>>, %arg26: memref<3xf32, #tpu.memory_space<smem>>, %arg27: memref<3xf32, #tpu.memory_space<smem>>, %arg28: memref<2x3x128xf32, #tpu.memory_space<vmem>>, %arg29: memref<2x128xf32, #tpu.memory_space<vmem>>, %arg30: memref<1xf32, #tpu.memory_space<smem>>, %arg31: memref<1xf32, #tpu.memory_space<smem>>) attributes {dimension_semantics = [], scalar_prefetch = 0 : i64, scratch_operands = 0 : i64, tpu.core_type = #tpu.core_type<tc>} {
    %c0 = arith.constant 0 : index
    %c0_0 = arith.constant 0 : index
    %0 = vector.load %arg0[%c0, %c0_0] : memref<2x136xf32, #tpu.memory_space<vmem>>, vector<2x136xf32>
    %c0_1 = arith.constant 0 : index
    %c0_2 = arith.constant 0 : index
    %1 = vector.load %arg1[%c0_1, %c0_2] : memref<2x128xf32, #tpu.memory_space<vmem>>, vector<2x128xf32>
    %c0_3 = arith.constant 0 : index
    %c0_4 = arith.constant 0 : index
    %2 = vector.load %arg3[%c0_3, %c0_4] : memref<136x136xf32, #tpu.memory_space<vmem>>, vector<136x136xf32>
    %3 = tpu.iota {dimensions = array<i32: 1>} : vector<1x136xi32>
    %c128_i32 = arith.constant 128 : i32
    %4 = vector.broadcast %c128_i32 : i32 to vector<1x136xi32>
    %5 = arith.cmpi slt, %3, %4 : vector<1x136xi32>
    %6 = arith.extui %5 : vector<1x136xi1> to vector<1x136xi32>
    %7 = arith.sitofp %6 : vector<1x136xi32> to vector<1x136xf32>
    %cst = arith.constant 1.000000e+00 : f32
    %8 = vector.broadcast %cst : f32 to vector<1x136xf32>
    %9 = arith.subf %8, %7 : vector<1x136xf32>
    %10 = arith.subf %9, %7 : vector<1x136xf32>
    %cst_5 = arith.constant 0.000000e+00 : f32
    %11 = vector.broadcast %cst_5 : f32 to vector<2x136xf32>
    %c0_6 = arith.constant 0 : index
    %12 = memref.load %arg25[%c0_6] : memref<3xf32, #tpu.memory_space<smem>>
    %c0_7 = arith.constant 0 : index
    %13 = memref.load %arg26[%c0_7] : memref<3xf32, #tpu.memory_space<smem>>
    %c0_8 = arith.constant 0 : index
    %14 = memref.load %arg27[%c0_8] : memref<3xf32, #tpu.memory_space<smem>>
    %cst_9 = arith.constant dense<0.000000e+00> : vector<2x136xf32>
    %15 = tpu.matmul %11, %2, %cst_9 {dimension_numbers = #tpu.dot_dimension_numbers<[1], [0], [0], [1], [0, 0, 1, 1], [], []>} : vector<2x136xf32>, vector<136x136xf32>, vector<2x136xf32> -> vector<2x136xf32>
    %16 = vector.broadcast %10 : vector<1x136xf32> to vector<2x136xf32>
    %17 = arith.mulf %16, %15 : vector<2x136xf32>
    %cst_10 = arith.constant 2.000000e+00 : f32
    %18 = arith.mulf %cst_10, %13 : f32
    %19 = vector.broadcast %7 : vector<1x136xf32> to vector<2x136xf32>
    %20 = arith.mulf %19, %11 : vector<2x136xf32>
    %21 = vector.broadcast %18 : f32 to vector<2x136xf32>
    %22 = arith.mulf %21, %20 : vector<2x136xf32>
    %23 = arith.subf %17, %22 : vector<2x136xf32>
    %cst_11 = arith.constant 2.000000e+00 : f32
    %24 = vector.broadcast %cst_11 : f32 to vector<2x136xf32>
    %25 = arith.mulf %24, %0 : vector<2x136xf32>
    %26 = arith.subf %23, %25 : vector<2x136xf32>
    %27 = vector.broadcast %12 : f32 to vector<2x136xf32>
    %28 = arith.mulf %27, %26 : vector<2x136xf32>
    %29 = arith.addf %11, %28 : vector<2x136xf32>
    %cst_12 = arith.constant 0.000000e+00 : f32
    %30 = vector.broadcast %cst_12 : f32 to vector<2x136xf32>
    %31 = arith.cmpf ogt, %29, %30 : vector<2x136xf32>
    %cst_13 = arith.constant 0.00999999977 : f32
    %32 = vector.broadcast %cst_13 : f32 to vector<2x136xf32>
    %33 = arith.mulf %32, %29 : vector<2x136xf32>
    %34 = arith.select %31, %29, %33 : vector<2x136xi1>, vector<2x136xf32>
    %35 = vector.broadcast %7 : vector<1x136xf32> to vector<2x136xf32>
    %36 = arith.mulf %35, %34 : vector<2x136xf32>
    %37 = arith.mulf %29, %29 : vector<2x136xf32>
    %cst_14 = arith.constant 4.000000e+00 : f32
    %38 = arith.mulf %cst_14, %12 : f32
    %39 = arith.mulf %38, %14 : f32
    %40 = vector.broadcast %39 : f32 to vector<2x136xf32>
    %41 = arith.addf %37, %40 : vector<2x136xf32>
    %cst_15 = arith.constant 9.99999993E-9 : f32
    %42 = vector.broadcast %cst_15 : f32 to vector<2x136xf32>
    %43 = arith.maximumf %41, %42 : vector<2x136xf32>
    %44 = math.sqrt %43 : vector<2x136xf32>
    %45 = arith.subf %29, %44 : vector<2x136xf32>
    %cst_16 = arith.constant 5.000000e-01 : f32
    %46 = vector.broadcast %cst_16 : f32 to vector<2x136xf32>
    %47 = arith.mulf %45, %46 : vector<2x136xf32>
    %48 = vector.broadcast %9 : vector<1x136xf32> to vector<2x136xf32>
    %49 = arith.mulf %48, %47 : vector<2x136xf32>
    %50 = arith.addf %36, %49 : vector<2x136xf32>
    %cst_17 = arith.constant dense<0.000000e+00> : vector<2x136xf32>
    %51 = tpu.matmul %50, %2, %cst_17 {dimension_numbers = #tpu.dot_dimension_numbers<[1], [0], [0], [1], [0, 0, 1, 1], [], []>} : vector<2x136xf32>, vector<136x136xf32>, vector<2x136xf32> -> vector<2x136xf32>
    %52 = vector.broadcast %10 : vector<1x136xf32> to vector<2x136xf32>
    %53 = arith.mulf %52, %51 : vector<2x136xf32>
    %cst_18 = arith.constant 2.000000e+00 : f32
    %54 = arith.mulf %cst_18, %13 : f32
    %55 = vector.broadcast %7 : vector<1x136xf32> to vector<2x136xf32>
    %56 = arith.mulf %55, %50 : vector<2x136xf32>
    %57 = vector.broadcast %54 : f32 to vector<2x136xf32>
    %58 = arith.mulf %57, %56 : vector<2x136xf32>
    %59 = arith.subf %53, %58 : vector<2x136xf32>
    %cst_19 = arith.constant 2.000000e+00 : f32
    %60 = vector.broadcast %cst_19 : f32 to vector<2x136xf32>
    %61 = arith.mulf %60, %0 : vector<2x136xf32>
    %62 = arith.subf %59, %61 : vector<2x136xf32>
    %63 = vector.broadcast %12 : f32 to vector<2x136xf32>
    %64 = arith.mulf %63, %62 : vector<2x136xf32>
    %65 = arith.addf %50, %64 : vector<2x136xf32>
    %66 = arith.subf %11, %29 : vector<2x136xf32>
    %67 = arith.addf %66, %65 : vector<2x136xf32>
    %68 = vector.extract_strided_slice %67 {offsets = [0, 0], sizes = [2, 128], strides = [1, 1]} : vector<2x136xf32> to vector<2x128xf32>
    %c0_20 = arith.constant 0 : index
    %c0_21 = arith.constant 0 : index
    %c0_22 = arith.constant 0 : index
    %69 = vector.load %arg28[%c0_20, %c0_21, %c0_22] : memref<2x3x128xf32, #tpu.memory_space<vmem>>, vector<2x1x128xf32>
    %70 = vector.shape_cast %69 : vector<2x1x128xf32> to vector<2x128xf32>
    %71 = vector.shape_cast %68 : vector<2x128xf32> to vector<2x1x128xf32>
    tpu.vector_store %arg28[%c0_20, %c0_21, %c0_22], %71 {strides = array<i32>} : memref<2x3x128xf32, #tpu.memory_space<vmem>>, vector<2x1x128xf32>,
    %c1 = arith.constant 1 : index
    %72 = memref.load %arg25[%c1] : memref<3xf32, #tpu.memory_space<smem>>
    %c1_23 = arith.constant 1 : index
    %73 = memref.load %arg26[%c1_23] : memref<3xf32, #tpu.memory_space<smem>>
    %c1_24 = arith.constant 1 : index
    %74 = memref.load %arg27[%c1_24] : memref<3xf32, #tpu.memory_space<smem>>
    %cst_25 = arith.constant dense<0.000000e+00> : vector<2x136xf32>
    %75 = tpu.matmul %67, %2, %cst_25 {dimension_numbers = #tpu.dot_dimension_numbers<[1], [0], [0], [1], [0, 0, 1, 1], [], []>} : vector<2x136xf32>, vector<136x136xf32>, vector<2x136xf32> -> vector<2x136xf32>
    %76 = vector.broadcast %10 : vector<1x136xf32> to vector<2x136xf32>
    %77 = arith.mulf %76, %75 : vector<2x136xf32>
    %cst_26 = arith.constant 2.000000e+00 : f32
    %78 = arith.mulf %cst_26, %73 : f32
    %79 = vector.broadcast %7 : vector<1x136xf32> to vector<2x136xf32>
    %80 = arith.mulf %79, %67 : vector<2x136xf32>
    %81 = vector.broadcast %78 : f32 to vector<2x136xf32>
    %82 = arith.mulf %81, %80 : vector<2x136xf32>
    %83 = arith.subf %77, %82 : vector<2x136xf32>
    %cst_27 = arith.constant 2.000000e+00 : f32
    %84 = vector.broadcast %cst_27 : f32 to vector<2x136xf32>
    %85 = arith.mulf %84, %0 : vector<2x136xf32>
    %86 = arith.subf %83, %85 : vector<2x136xf32>
    %87 = vector.broadcast %72 : f32 to vector<2x136xf32>
    %88 = arith.mulf %87, %86 : vector<2x136xf32>
    %89 = arith.addf %67, %88 : vector<2x136xf32>
    %cst_28 = arith.constant 0.000000e+00 : f32
    %90 = vector.broadcast %cst_28 : f32 to vector<2x136xf32>
    %91 = arith.cmpf ogt, %89, %90 : vector<2x136xf32>
    %cst_29 = arith.constant 0.00999999977 : f32
    %92 = vector.broadcast %cst_29 : f32 to vector<2x136xf32>
    %93 = arith.mulf %92, %89 : vector<2x136xf32>
    %94 = arith.select %91, %89, %93 : vector<2x136xi1>, vector<2x136xf32>
    %95 = vector.broadcast %7 : vector<1x136xf32> to vector<2x136xf32>
    %96 = arith.mulf %95, %94 : vector<2x136xf32>
    %97 = arith.mulf %89, %89 : vector<2x136xf32>
    %cst_30 = arith.constant 4.000000e+00 : f32
    %98 = arith.mulf %cst_30, %72 : f32
    %99 = arith.mulf %98, %74 : f32
    %100 = vector.broadcast %99 : f32 to vector<2x136xf32>
    %101 = arith.addf %97, %100 : vector<2x136xf32>
    %cst_31 = arith.constant 9.99999993E-9 : f32
    %102 = vector.broadcast %cst_31 : f32 to vector<2x136xf32>
    %103 = arith.maximumf %101, %102 : vector<2x136xf32>
    %104 = math.sqrt %103 : vector<2x136xf32>
    %105 = arith.subf %89, %104 : vector<2x136xf32>
    %cst_32 = arith.constant 5.000000e-01 : f32
    %106 = vector.broadcast %cst_32 : f32 to vector<2x136xf32>
    %107 = arith.mulf %105, %106 : vector<2x136xf32>
    %108 = vector.broadcast %9 : vector<1x136xf32> to vector<2x136xf32>
    %109 = arith.mulf %108, %107 : vector<2x136xf32>
    %110 = arith.addf %96, %109 : vector<2x136xf32>
    %cst_33 = arith.constant dense<0.000000e+00> : vector<2x136xf32>
    %111 = tpu.matmul %110, %2, %cst_33 {dimension_numbers = #tpu.dot_dimension_numbers<[1], [0], [0], [1], [0, 0, 1, 1], [], []>} : vector<2x136xf32>, vector<136x136xf32>, vector<2x136xf32> -> vector<2x136xf32>
    %112 = vector.broadcast %10 : vector<1x136xf32> to vector<2x136xf32>
    %113 = arith.mulf %112, %111 : vector<2x136xf32>
    %cst_34 = arith.constant 2.000000e+00 : f32
    %114 = arith.mulf %cst_34, %73 : f32
    %115 = vector.broadcast %7 : vector<1x136xf32> to vector<2x136xf32>
    %116 = arith.mulf %115, %110 : vector<2x136xf32>
    %117 = vector.broadcast %114 : f32 to vector<2x136xf32>
    %118 = arith.mulf %117, %116 : vector<2x136xf32>
    %119 = arith.subf %113, %118 : vector<2x136xf32>
    %cst_35 = arith.constant 2.000000e+00 : f32
    %120 = vector.broadcast %cst_35 : f32 to vector<2x136xf32>
    %121 = arith.mulf %120, %0 : vector<2x136xf32>
    %122 = arith.subf %119, %121 : vector<2x136xf32>
    %123 = vector.broadcast %72 : f32 to vector<2x136xf32>
    %124 = arith.mulf %123, %122 : vector<2x136xf32>
    %125 = arith.addf %110, %124 : vector<2x136xf32>
    %126 = arith.subf %67, %89 : vector<2x136xf32>
    %127 = arith.addf %126, %125 : vector<2x136xf32>
    %128 = vector.extract_strided_slice %127 {offsets = [0, 0], sizes = [2, 128], strides = [1, 1]} : vector<2x136xf32> to vector<2x128xf32>
    %c0_36 = arith.constant 0 : index
    %c1_37 = arith.constant 1 : index
    %c0_38 = arith.constant 0 : index
    %129 = vector.load %arg28[%c0_36, %c1_37, %c0_38] : memref<2x3x128xf32, #tpu.memory_space<vmem>>, vector<2x1x128xf32>
    %130 = vector.shape_cast %129 : vector<2x1x128xf32> to vector<2x128xf32>
    %131 = vector.shape_cast %128 : vector<2x128xf32> to vector<2x1x128xf32>
    tpu.vector_store %arg28[%c0_36, %c1_37, %c0_38], %131 {strides = array<i32>} : memref<2x3x128xf32, #tpu.memory_space<vmem>>, vector<2x1x128xf32>,
    %c2 = arith.constant 2 : index
    %132 = memref.load %arg25[%c2] : memref<3xf32, #tpu.memory_space<smem>>
    %c2_39 = arith.constant 2 : index
    %133 = memref.load %arg26[%c2_39] : memref<3xf32, #tpu.memory_space<smem>>
    %c2_40 = arith.constant 2 : index
    %134 = memref.load %arg27[%c2_40] : memref<3xf32, #tpu.memory_space<smem>>
    %cst_41 = arith.constant dense<0.000000e+00> : vector<2x136xf32>
    %135 = tpu.matmul %127, %2, %cst_41 {dimension_numbers = #tpu.dot_dimension_numbers<[1], [0], [0], [1], [0, 0, 1, 1], [], []>} : vector<2x136xf32>, vector<136x136xf32>, vector<2x136xf32> -> vector<2x136xf32>
    %136 = vector.broadcast %10 : vector<1x136xf32> to vector<2x136xf32>
    %137 = arith.mulf %136, %135 : vector<2x136xf32>
    %cst_42 = arith.constant 2.000000e+00 : f32
    %138 = arith.mulf %cst_42, %133 : f32
    %139 = vector.broadcast %7 : vector<1x136xf32> to vector<2x136xf32>
    %140 = arith.mulf %139, %127 : vector<2x136xf32>
    %141 = vector.broadcast %138 : f32 to vector<2x136xf32>
    %142 = arith.mulf %141, %140 : vector<2x136xf32>
    %143 = arith.subf %137, %142 : vector<2x136xf32>
    %cst_43 = arith.constant 2.000000e+00 : f32
    %144 = vector.broadcast %cst_43 : f32 to vector<2x136xf32>
    %145 = arith.mulf %144, %0 : vector<2x136xf32>
    %146 = arith.subf %143, %145 : vector<2x136xf32>
    %147 = vector.broadcast %132 : f32 to vector<2x136xf32>
    %148 = arith.mulf %147, %146 : vector<2x136xf32>
    %149 = arith.addf %127, %148 : vector<2x136xf32>
    %150 = vector.extract_strided_slice %149 {offsets = [0, 0], sizes = [2, 128], strides = [1, 1]} : vector<2x136xf32> to vector<2x128xf32>
    %151 = vector.extract_strided_slice %149 {offsets = [0, 128], sizes = [2, 8], strides = [1, 1]} : vector<2x136xf32> to vector<2x8xf32>
    %cst_44 = arith.constant 9.99999974E-5 : f32
    %152 = vector.broadcast %cst_44 : f32 to vector<2x128xf32>
    %153 = arith.cmpf ogt, %150, %152 : vector<2x128xf32>
    %154 = arith.extui %153 : vector<2x128xi1> to vector<2x128xi32>
    %155 = arith.sitofp %154 : vector<2x128xi32> to vector<2x128xf32>
    %cst_45 = arith.constant 9.99999974E-5 : f32
    %156 = vector.broadcast %cst_45 : f32 to vector<2x128xf32>
    %157 = arith.cmpf ogt, %1, %156 : vector<2x128xf32>
    %158 = arith.extui %157 : vector<2x128xi1> to vector<2x128xi32>
    %159 = arith.sitofp %158 : vector<2x128xi32> to vector<2x128xf32>
    %160 = vector.extract_strided_slice %155 {offsets = [0, 0], sizes = [1, 128], strides = [1, 1]} : vector<2x128xf32> to vector<1x128xf32>
    %161 = vector.extract_strided_slice %155 {offsets = [1, 0], sizes = [1, 128], strides = [1, 1]} : vector<2x128xf32> to vector<1x128xf32>
    %162 = vector.extract_strided_slice %159 {offsets = [0, 0], sizes = [1, 128], strides = [1, 1]} : vector<2x128xf32> to vector<1x128xf32>
    %163 = vector.extract_strided_slice %159 {offsets = [1, 0], sizes = [1, 128], strides = [1, 1]} : vector<2x128xf32> to vector<1x128xf32>
    %164 = tpu.concatenate %160, %161, %162, %163 in 1 : vector<1x128xf32>, vector<1x128xf32>, vector<1x128xf32>, vector<1x128xf32> -> vector<1x512xf32>
    %c0_46 = arith.constant 0 : index
    %c0_47 = arith.constant 0 : index
    %165 = vector.load %arg5[%c0_46, %c0_47] : memref<32x512xf32, #tpu.memory_space<vmem>>, vector<32x512xf32>
    %166 = vector.broadcast %164 : vector<1x512xf32> to vector<32x512xf32>
    %167 = arith.mulf %165, %166 : vector<32x512xf32>
    %c0_48 = arith.constant 0 : index
    %c0_49 = arith.constant 0 : index
    %168 = vector.load %arg6[%c0_48, %c0_49] : memref<512x32xf32, #tpu.memory_space<vmem>>, vector<512x32xf32>
    %cst_50 = arith.constant dense<0.000000e+00> : vector<32x32xf32>
    %169 = tpu.matmul %167, %168, %cst_50 {dimension_numbers = #tpu.dot_dimension_numbers<[1], [0], [0], [1], [0, 0, 1, 1], [], []>} : vector<32x512xf32>, vector<512x32xf32>, vector<32x32xf32> -> vector<32x32xf32>
    %170 = tpu.transpose %169, [1, 0] : vector<32x32xf32> -> vector<32x32xf32>
    %171 = arith.addf %169, %170 : vector<32x32xf32>
    %cst_51 = arith.constant dense<0.000000e+00> : vector<32xf32>
    %172 = vector.multi_reduction <add>, %171, %cst_51 [1] : vector<32x32xf32> to vector<32xf32>
    %173 = vector.shape_cast %172 : vector<32xf32> to vector<32x1xf32>
    %c0_52 = arith.constant 0 : index
    %c0_53 = arith.constant 0 : index
    %174 = vector.load %arg8[%c0_52, %c0_53] : memref<1x16xf32, #tpu.memory_space<vmem>>, vector<1x16xf32>
    %175 = vector.broadcast %173 : vector<32x1xf32> to vector<32x16xf32>
    %176 = vector.broadcast %174 : vector<1x16xf32> to vector<32x16xf32>
    %177 = arith.mulf %175, %176 : vector<32x16xf32>
    %cst_54 = arith.constant dense<0.000000e+00> : vector<32x16xf32>
    %178 = tpu.matmul %171, %177, %cst_54 {dimension_numbers = #tpu.dot_dimension_numbers<[1], [0], [0], [1], [0, 0, 1, 1], [], []>} : vector<32x32xf32>, vector<32x16xf32>, vector<32x16xf32> -> vector<32x16xf32>
    %c0_55 = arith.constant 0 : index
    %c0_56 = arith.constant 0 : index
    %179 = vector.load %arg9[%c0_55, %c0_56] : memref<1x16xf32, #tpu.memory_space<vmem>>, vector<1x16xf32>
    %180 = vector.broadcast %179 : vector<1x16xf32> to vector<32x16xf32>
    %181 = arith.addf %178, %180 : vector<32x16xf32>
    %cst_57 = arith.constant 0.000000e+00 : f32
    %182 = vector.broadcast %cst_57 : f32 to vector<32x16xf32>
    %183 = arith.maximumf %181, %182 : vector<32x16xf32>
    %c0_58 = arith.constant 0 : index
    %c0_59 = arith.constant 0 : index
    %184 = vector.load %arg10[%c0_58, %c0_59] : memref<16x32xf32, #tpu.memory_space<vmem>>, vector<16x32xf32>
    %cst_60 = arith.constant dense<0.000000e+00> : vector<32x32xf32>
    %185 = tpu.matmul %183, %184, %cst_60 {dimension_numbers = #tpu.dot_dimension_numbers<[1], [0], [0], [1], [0, 0, 1, 1], [], []>} : vector<32x16xf32>, vector<16x32xf32>, vector<32x32xf32> -> vector<32x32xf32>
    %cst_61 = arith.constant dense<0.000000e+00> : vector<32x32xf32>
    %186 = tpu.matmul %171, %185, %cst_61 {dimension_numbers = #tpu.dot_dimension_numbers<[1], [0], [0], [1], [0, 0, 1, 1], [], []>} : vector<32x32xf32>, vector<32x32xf32>, vector<32x32xf32> -> vector<32x32xf32>
    %c0_62 = arith.constant 0 : index
    %c0_63 = arith.constant 0 : index
    %187 = vector.load %arg11[%c0_62, %c0_63] : memref<1x32xf32, #tpu.memory_space<vmem>>, vector<1x32xf32>
    %188 = vector.broadcast %187 : vector<1x32xf32> to vector<32x32xf32>
    %189 = arith.addf %186, %188 : vector<32x32xf32>
    %cst_64 = arith.constant 0.000000e+00 : f32
    %190 = vector.broadcast %cst_64 : f32 to vector<32x32xf32>
    %191 = arith.maximumf %189, %190 : vector<32x32xf32>
    %c0_65 = arith.constant 0 : index
    %c0_66 = arith.constant 0 : index
    %192 = vector.load %arg7[%c0_65, %c0_66] : memref<4x32xf32, #tpu.memory_space<vmem>>, vector<4x32xf32>
    %cst_67 = arith.constant dense<0.000000e+00> : vector<4x32xf32>
    %193 = tpu.matmul %192, %191, %cst_67 {dimension_numbers = #tpu.dot_dimension_numbers<[1], [0], [0], [1], [0, 0, 1, 1], [], []>} : vector<4x32xf32>, vector<32x32xf32>, vector<4x32xf32> -> vector<4x32xf32>
    %c0_68 = arith.constant 0 : index
    %c0_69 = arith.constant 0 : index
    %194 = vector.load %arg12[%c0_68, %c0_69] : memref<32x16xf32, #tpu.memory_space<vmem>>, vector<32x16xf32>
    %cst_70 = arith.constant dense<0.000000e+00> : vector<4x16xf32>
    %195 = tpu.matmul %193, %194, %cst_70 {dimension_numbers = #tpu.dot_dimension_numbers<[1], [0], [0], [1], [0, 0, 1, 1], [], []>} : vector<4x32xf32>, vector<32x16xf32>, vector<4x16xf32> -> vector<4x16xf32>
    %c0_71 = arith.constant 0 : index
    %c0_72 = arith.constant 0 : index
    %196 = vector.load %arg13[%c0_71, %c0_72] : memref<1x16xf32, #tpu.memory_space<vmem>>, vector<1x16xf32>
    %197 = vector.broadcast %196 : vector<1x16xf32> to vector<4x16xf32>
    %198 = arith.addf %195, %197 : vector<4x16xf32>
    %cst_73 = arith.constant 0.000000e+00 : f32
    %199 = vector.broadcast %cst_73 : f32 to vector<4x16xf32>
    %200 = arith.maximumf %198, %199 : vector<4x16xf32>
    %c0_74 = arith.constant 0 : index
    %c0_75 = arith.constant 0 : index
    %201 = vector.load %arg14[%c0_74, %c0_75] : memref<16x16xf32, #tpu.memory_space<vmem>>, vector<16x16xf32>
    %cst_76 = arith.constant dense<0.000000e+00> : vector<4x16xf32>
    %202 = tpu.matmul %200, %201, %cst_76 {dimension_numbers = #tpu.dot_dimension_numbers<[1], [0], [0], [1], [0, 0, 1, 1], [], []>} : vector<4x16xf32>, vector<16x16xf32>, vector<4x16xf32> -> vector<4x16xf32>
    %c0_77 = arith.constant 0 : index
    %c0_78 = arith.constant 0 : index
    %203 = vector.load %arg15[%c0_77, %c0_78] : memref<1x16xf32, #tpu.memory_space<vmem>>, vector<1x16xf32>
    %204 = vector.broadcast %203 : vector<1x16xf32> to vector<4x16xf32>
    %205 = arith.addf %202, %204 : vector<4x16xf32>
    %206 = vector.extract_strided_slice %205 {offsets = [0, 0], sizes = [2, 16], strides = [1, 1]} : vector<4x16xf32> to vector<2x16xf32>
    %207 = vector.extract_strided_slice %205 {offsets = [2, 0], sizes = [2, 16], strides = [1, 1]} : vector<4x16xf32> to vector<2x16xf32>
    %208 = arith.subf %207, %206 : vector<2x16xf32>
    %c0_79 = arith.constant 0 : index
    %c0_80 = arith.constant 0 : index
    %209 = vector.load %arg16[%c0_79, %c0_80] : memref<16x8xf32, #tpu.memory_space<vmem>>, vector<16x8xf32>
    %cst_81 = arith.constant dense<0.000000e+00> : vector<2x8xf32>
    %210 = tpu.matmul %208, %209, %cst_81 {dimension_numbers = #tpu.dot_dimension_numbers<[1], [0], [0], [1], [0, 0, 1, 1], [], []>} : vector<2x16xf32>, vector<16x8xf32>, vector<2x8xf32> -> vector<2x8xf32>
    %c0_82 = arith.constant 0 : index
    %c0_83 = arith.constant 0 : index
    %211 = vector.load %arg17[%c0_82, %c0_83] : memref<1x8xf32, #tpu.memory_space<vmem>>, vector<1x8xf32>
    %212 = vector.broadcast %211 : vector<1x8xf32> to vector<2x8xf32>
    %213 = arith.addf %210, %212 : vector<2x8xf32>
    %c0_84 = arith.constant 0 : index
    %c0_85 = arith.constant 0 : index
    %214 = vector.load %arg18[%c0_84, %c0_85] : memref<16x8xf32, #tpu.memory_space<vmem>>, vector<16x8xf32>
    %cst_86 = arith.constant dense<0.000000e+00> : vector<2x8xf32>
    %215 = tpu.matmul %208, %214, %cst_86 {dimension_numbers = #tpu.dot_dimension_numbers<[1], [0], [0], [1], [0, 0, 1, 1], [], []>} : vector<2x16xf32>, vector<16x8xf32>, vector<2x8xf32> -> vector<2x8xf32>
    %c0_87 = arith.constant 0 : index
    %c0_88 = arith.constant 0 : index
    %216 = vector.load %arg19[%c0_87, %c0_88] : memref<1x8xf32, #tpu.memory_space<vmem>>, vector<1x8xf32>
    %217 = vector.broadcast %216 : vector<1x8xf32> to vector<2x8xf32>
    %218 = arith.addf %215, %217 : vector<2x8xf32>
    %219 = math.absf %218 : vector<2x8xf32>
    %cst_89 = arith.constant 0.000000e+00 : f32
    %220 = vector.broadcast %cst_89 : f32 to vector<2x8xf32>
    %221 = arith.subf %220, %219 : vector<2x8xf32>
    %cst_90 = arith.constant 1.000000e+00 : f32
    %222 = vector.broadcast %cst_90 : f32 to vector<2x8xf32>
    %223 = arith.addf %222, %221 : vector<2x8xf32>
    %224 = arith.mulf %213, %213 : vector<2x8xf32>
    %225 = arith.subf %223, %224 : vector<2x8xf32>
    %226 = math.exp %221 : vector<2x8xf32>
    %227 = arith.subf %225, %226 : vector<2x8xf32>
    %228 = vector.shape_cast %227 : vector<2x8xf32> to vector<1x2x8xf32>
    %cst_91 = arith.constant dense<0.000000e+00> : vector<1xf32>
    %229 = vector.multi_reduction <add>, %228, %cst_91 [1, 2] : vector<1x2x8xf32> to vector<1xf32>
    %230 = vector.shape_cast %229 : vector<1xf32> to vector<1x1x1xf32>
    %231 = vector.extract %230[0, 0, 0] : f32 from vector<1x1x1xf32>
    %cst_92 = arith.constant 1.600000e+01 : f32
    %232 = arith.divf %231, %cst_92 : f32
    %cst_93 = arith.constant -5.000000e-01 : f32
    %233 = arith.mulf %cst_93, %232 : f32
    %cst_94 = arith.constant 5.000000e-01 : f32
    %234 = vector.broadcast %cst_94 : f32 to vector<2x8xf32>
    %235 = arith.mulf %234, %221 : vector<2x8xf32>
    %236 = math.exp %235 : vector<2x8xf32>
    %c0_95 = arith.constant 0 : index
    %c0_96 = arith.constant 0 : index
    %237 = vector.load %arg2[%c0_95, %c0_96] : memref<2x8xf32, #tpu.memory_space<vmem>>, vector<2x8xf32>
    %238 = arith.mulf %236, %237 : vector<2x8xf32>
    %239 = arith.addf %213, %238 : vector<2x8xf32>
    %c0_97 = arith.constant 0 : index
    %c0_98 = arith.constant 0 : index
    %240 = vector.load %arg20[%c0_97, %c0_98] : memref<128x37xf32, #tpu.memory_space<vmem>>, vector<128x37xf32>
    %cst_99 = arith.constant dense<0.000000e+00> : vector<2x37xf32>
    %241 = tpu.matmul %150, %240, %cst_99 {dimension_numbers = #tpu.dot_dimension_numbers<[1], [0], [0], [1], [0, 0, 1, 1], [], []>} : vector<2x128xf32>, vector<128x37xf32>, vector<2x37xf32> -> vector<2x37xf32>
    %c0_100 = arith.constant 0 : index
    %c0_101 = arith.constant 0 : index
    %242 = vector.load %arg21[%c0_100, %c0_101] : memref<8x37xf32, #tpu.memory_space<vmem>>, vector<8x37xf32>
    %cst_102 = arith.constant dense<0.000000e+00> : vector<2x37xf32>
    %243 = tpu.matmul %239, %242, %cst_102 {dimension_numbers = #tpu.dot_dimension_numbers<[1], [0], [0], [1], [0, 0, 1, 1], [], []>} : vector<2x8xf32>, vector<8x37xf32>, vector<2x37xf32> -> vector<2x37xf32>
    %244 = arith.addf %241, %243 : vector<2x37xf32>
    %c0_103 = arith.constant 0 : index
    %c0_104 = arith.constant 0 : index
    %245 = vector.load %arg22[%c0_103, %c0_104] : memref<1x37xf32, #tpu.memory_space<vmem>>, vector<1x37xf32>
    %246 = vector.broadcast %245 : vector<1x37xf32> to vector<2x37xf32>
    %247 = arith.addf %244, %246 : vector<2x37xf32>
    %248 = math.tanh %247 : vector<2x37xf32>
    %c0_105 = arith.constant 0 : index
    %c0_106 = arith.constant 0 : index
    %249 = vector.load %arg23[%c0_105, %c0_106] : memref<37x128xf32, #tpu.memory_space<vmem>>, vector<37x128xf32>
    %cst_107 = arith.constant dense<0.000000e+00> : vector<2x128xf32>
    %250 = tpu.matmul %248, %249, %cst_107 {dimension_numbers = #tpu.dot_dimension_numbers<[1], [0], [0], [1], [0, 0, 1, 1], [], []>} : vector<2x37xf32>, vector<37x128xf32>, vector<2x128xf32> -> vector<2x128xf32>
    %c0_108 = arith.constant 0 : index
    %c0_109 = arith.constant 0 : index
    %251 = vector.load %arg24[%c0_108, %c0_109] : memref<1x128xf32, #tpu.memory_space<vmem>>, vector<1x128xf32>
    %252 = vector.broadcast %251 : vector<1x128xf32> to vector<2x128xf32>
    %253 = arith.addf %250, %252 : vector<2x128xf32>
    %254 = arith.subf %253, %1 : vector<2x128xf32>
    %255 = arith.mulf %254, %254 : vector<2x128xf32>
    %cst_110 = arith.constant dense<0.000000e+00> : vector<2xf32>
    %256 = vector.multi_reduction <add>, %255, %cst_110 [1] : vector<2x128xf32> to vector<2xf32>
    %257 = vector.shape_cast %256 : vector<2xf32> to vector<2x1xf32>
    %258 = vector.shape_cast %257 : vector<2x1xf32> to vector<1x2x1xf32>
    %cst_111 = arith.constant dense<0.000000e+00> : vector<1xf32>
    %259 = vector.multi_reduction <add>, %258, %cst_111 [1, 2] : vector<1x2x1xf32> to vector<1xf32>
    %260 = vector.shape_cast %259 : vector<1xf32> to vector<1x1x1xf32>
    %261 = vector.extract %260[0, 0, 0] : f32 from vector<1x1x1xf32>
    %cst_112 = arith.constant 2.000000e+00 : f32
    %262 = arith.divf %261, %cst_112 : f32
    %c0_113 = arith.constant 0 : index
    %263 = memref.load %arg30[%c0_113] : memref<1xf32, #tpu.memory_space<smem>>
    memref.store %233, %arg30[%c0_113] : memref<1xf32, #tpu.memory_space<smem>>
    %cst_114 = arith.constant 1.000000e+00 : f32
    %264 = arith.mulf %cst_114, %233 : f32
    %265 = arith.addf %262, %264 : f32
    %c0_115 = arith.constant 0 : index
    %266 = memref.load %arg31[%c0_115] : memref<1xf32, #tpu.memory_space<smem>>
    memref.store %265, %arg31[%c0_115] : memref<1xf32, #tpu.memory_space<smem>>
    %267 = vector.extract_strided_slice %150 {offsets = [0, 0], sizes = [2, 28], strides = [1, 1]} : vector<2x128xf32> to vector<2x28xf32>
    %cst_116 = arith.constant 0.000000e+00 : f32
    %268 = vector.broadcast %cst_116 : f32 to vector<2x92xf32>
    %269 = tpu.concatenate %267, %239, %268 in 1 : vector<2x28xf32>, vector<2x8xf32>, vector<2x92xf32> -> vector<2x128xf32>
    %c0_117 = arith.constant 0 : index
    %c0_118 = arith.constant 0 : index
    %270 = vector.load %arg29[%c0_117, %c0_118] : memref<2x128xf32, #tpu.memory_space<vmem>>, vector<2x128xf32>
    tpu.vector_store %arg29[%c0_117, %c0_118], %269 {strides = array<i32>} : memref<2x128xf32, #tpu.memory_space<vmem>>, vector<2x128xf32>,
    %271 = arith.mulf %151, %151 : vector<2x8xf32>
    %cst_119 = arith.constant 4.000000e+00 : f32
    %272 = arith.mulf %cst_119, %132 : f32
    %273 = arith.mulf %272, %134 : f32
    %274 = vector.broadcast %273 : f32 to vector<2x8xf32>
    %275 = arith.addf %271, %274 : vector<2x8xf32>
    %cst_120 = arith.constant 9.99999993E-9 : f32
    %276 = vector.broadcast %cst_120 : f32 to vector<2x8xf32>
    %277 = arith.maximumf %275, %276 : vector<2x8xf32>
    %278 = math.sqrt %277 : vector<2x8xf32>
    %279 = arith.subf %151, %278 : vector<2x8xf32>
    %cst_121 = arith.constant 5.000000e-01 : f32
    %280 = vector.broadcast %cst_121 : f32 to vector<2x8xf32>
    %281 = arith.mulf %279, %280 : vector<2x8xf32>
    %282 = vector.extract_strided_slice %0 {offsets = [0, 0], sizes = [2, 128], strides = [1, 1]} : vector<2x136xf32> to vector<2x128xf32>
    %cst_122 = arith.constant 2.000000e+00 : f32
    %283 = arith.mulf %cst_122, %133 : f32
    %284 = vector.broadcast %283 : f32 to vector<2x128xf32>
    %285 = arith.mulf %284, %253 : vector<2x128xf32>
    %cst_123 = arith.constant 2.000000e+00 : f32
    %286 = vector.broadcast %cst_123 : f32 to vector<2x128xf32>
    %287 = arith.mulf %286, %282 : vector<2x128xf32>
    %288 = arith.addf %285, %287 : vector<2x128xf32>
    %c0_124 = arith.constant 0 : index
    %c0_125 = arith.constant 0 : index
    %289 = vector.load %arg4[%c0_124, %c0_125] : memref<8x128xf32, #tpu.memory_space<vmem>>, vector<8x128xf32>
    %cst_126 = arith.constant dense<0.000000e+00> : vector<2x128xf32>
    %290 = tpu.matmul %281, %289, %cst_126 {dimension_numbers = #tpu.dot_dimension_numbers<[1], [0], [0], [1], [0, 0, 1, 1], [], []>} : vector<2x8xf32>, vector<8x128xf32>, vector<2x128xf32> -> vector<2x128xf32>
    %291 = arith.addf %288, %290 : vector<2x128xf32>
    %292 = vector.broadcast %132 : f32 to vector<2x128xf32>
    %293 = arith.mulf %292, %291 : vector<2x128xf32>
    %294 = arith.subf %253, %293 : vector<2x128xf32>
    %295 = vector.extract_strided_slice %127 {offsets = [0, 0], sizes = [2, 128], strides = [1, 1]} : vector<2x136xf32> to vector<2x128xf32>
    %296 = arith.subf %295, %150 : vector<2x128xf32>
    %297 = arith.addf %296, %294 : vector<2x128xf32>
    %c0_127 = arith.constant 0 : index
    %c2_128 = arith.constant 2 : index
    %c0_129 = arith.constant 0 : index
    %298 = vector.load %arg28[%c0_127, %c2_128, %c0_129] : memref<2x3x128xf32, #tpu.memory_space<vmem>>, vector<2x1x128xf32>
    %299 = vector.shape_cast %298 : vector<2x1x128xf32> to vector<2x128xf32>
    %300 = vector.shape_cast %297 : vector<2x128xf32> to vector<2x1x128xf32>
    tpu.vector_store %arg28[%c0_127, %c2_128, %c0_129], %300 {strides = array<i32>} : memref<2x3x128xf32, #tpu.memory_space<vmem>>, vector<2x1x128xf32>,
    return
  }
}

</mosaic_0001>

<llo_original>
// kernel: forward.1
$region0: #{forward.1}
  #allocation0 [shape = 'u32[]', space=smem, size = 0x4, offset = 0x4, fixed_abs, tag = 'smem constant byte address 0x4 - core index']
  #allocation1 [shape = 'u32[144,128]{1,0:T(1,128)}', space=vmem, size = 0x12000, scoped, tag = 'internal scratch']
  %s0 = inlined_call_operand.smem [shape: u32[32], index: -1, kind: input, shape index: {}]
  %s1 = sld [smem:[%s0]]
  %s2 = scalar_lea.smem %s0, 1
  %s3 = sld [smem:[%s2]]
  %s4 = scalar_lea.smem %s0, 2
  %s5 = sld [smem:[%s4]]
  %s6 = scalar_lea.smem %s0, 3
  %s7 = sld [smem:[%s6]]
  %s8 = scalar_lea.smem %s0, 4
  %s9 = sld [smem:[%s8]]
  %s10 = scalar_lea.smem %s0, 5
  %s11 = sld [smem:[%s10]]
  %s12 = scalar_lea.smem %s0, 6
  %s13 = sld [smem:[%s12]]
  %s14 = scalar_lea.smem %s0, 7
  %s15 = sld [smem:[%s14]]
  %s16 = scalar_lea.smem %s0, 8
  %s17 = sld [smem:[%s16]]
  %s18 = scalar_lea.smem %s0, 9
  %s19 = sld [smem:[%s18]]
  %s20 = scalar_lea.smem %s0, 10
  %s21 = sld [smem:[%s20]]
  %s22 = scalar_lea.smem %s0, 11
  %s23 = sld [smem:[%s22]]
  %s24 = scalar_lea.smem %s0, 12
  %s25 = sld [smem:[%s24]]
  %s26 = scalar_lea.smem %s0, 13
  %s27 = sld [smem:[%s26]]
  %s28 = scalar_lea.smem %s0, 14
  %s29 = sld [smem:[%s28]]
  %s30 = scalar_lea.smem %s0, 15
  %s31 = sld [smem:[%s30]]
  %s32 = scalar_lea.smem %s0, 16
  %s33 = sld [smem:[%s32]]
  %s34 = scalar_lea.smem %s0, 17
  %s35 = sld [smem:[%s34]]
  %s36 = scalar_lea.smem %s0, 18
  %s37 = sld [smem:[%s36]]
  %s38 = scalar_lea.smem %s0, 19
  %s39 = sld [smem:[%s38]]
  %s40 = scalar_lea.smem %s0, 20
  %s41 = sld [smem:[%s40]]
  %s42 = scalar_lea.smem %s0, 21
  %s43 = sld [smem:[%s42]]
  %s44 = scalar_lea.smem %s0, 22
  %s45 = sld [smem:[%s44]]
  %s46 = scalar_lea.smem %s0, 23
  %s47 = sld [smem:[%s46]]
  %s48 = scalar_lea.smem %s0, 24
  %s49 = sld [smem:[%s48]]
  %s50 = scalar_lea.smem %s0, 25
  %s51 = sld [smem:[%s50]]
  %s52 = scalar_lea.smem %s0, 26
  %s53 = sld [smem:[%s52]]
  %s54 = scalar_lea.smem %s0, 27
  %s55 = sld [smem:[%s54]]
  %s56 = scalar_lea.smem %s0, 28
  %s57 = sld [smem:[%s56]]
  %s58 = scalar_lea.smem %s0, 29
  %s59 = sld [smem:[%s58]]
  %s60 = scalar_lea.smem %s0, 30
  %s61 = sld [smem:[%s60]]
  %s62 = scalar_lea.smem %s0, 31
  %s63 = sld [smem:[%s62]]
  %64 = xla_tuple %s57, %s59, %s61, %s63
  %s65 = sld [smem:[#allocation0]]
  $region194: #{forward.1} parent=0
    _
  %s67 = ssub.s32 1, %s65
  %s68 = scalar_select 0, %s67, %s65
  $region1: #{forward.1} parent=0
    #allocation2 [shape = 'u8[139264]{0}', space=vmem, size = 0x22000, scoped, tag = 'input window, operand 3, single buffered']
    #allocation3 [shape = 's32[1]{0}', space=sflag, size = 0x4, scoped, tag = 'scoped memory for forward.1']
    #allocation4 [shape = 's32[1]{0}', space=sflag, size = 0x4, scoped, tag = 'scoped memory for forward.1']
    #allocation5 [shape = 's32[1]{0}', space=sflag, size = 0x4, scoped, tag = 'scoped memory for forward.1']
    #allocation6 [shape = 's32[1]{0}', space=sflag, size = 0x4, scoped, tag = 'scoped memory for forward.1']
    #allocation7 [shape = 'u8[512]{0}', space=vmem, size = 0x400, scoped, tag = 'input window, operand 8, single buffered']
    #allocation8 [shape = 's32[1]{0}', space=sflag, size = 0x4, scoped, tag = 'scoped memory for forward.1']
    #allocation9 [shape = 'u8[512]{0}', space=vmem, size = 0x400, scoped, tag = 'input window, operand 9, single buffered']
    #allocation10 [shape = 'u8[512]{0}', space=vmem, size = 0x400, scoped, tag = 'input window, operand 11, single buffered']
    #allocation11 [shape = 's32[1]{0}', space=sflag, size = 0x4, scoped, tag = 'scoped memory for forward.1']
    #allocation12 [shape = 'u8[512]{0}', space=vmem, size = 0x400, scoped, tag = 'input window, operand 13, single buffered']
    #allocation13 [shape = 'u8[512]{0}', space=vmem, size = 0x400, scoped, tag = 'input window, operand 15, single buffered']
    #allocation14 [shape = 's32[1]{0}', space=sflag, size = 0x4, scoped, tag = 'scoped memory for forward.1']
    #allocation15 [shape = 'u8[512]{0}', space=vmem, size = 0x400, scoped, tag = 'input window, operand 17, single buffered']
    #allocation16 [shape = 'u8[512]{0}', space=vmem, size = 0x400, scoped, tag = 'input window, operand 19, single buffered']
    #allocation17 [shape = 's32[1]{0}', space=sflag, size = 0x4, scoped, tag = 'scoped memory for forward.1']
    #allocation18 [shape = 'u8[512]{0}', space=vmem, size = 0x400, scoped, tag = 'input window, operand 22, single buffered']
    #allocation19 [shape = 'u8[512]{0}', space=smem, size = 0x200, scoped, tag = 'input window, operand 25, single buffered']
    #allocation20 [shape = 'u8[512]{0}', space=smem, size = 0x200, scoped, tag = 'input window, operand 26, single buffered']
    #allocation21 [shape = 's32[1]{0}', space=sflag, size = 0x4, scoped, tag = 'scoped memory for forward.1']
    #allocation22 [shape = 'u8[512]{0}', space=smem, size = 0x200, scoped, tag = 'input window, operand 27, single buffered']
    #allocation23 [shape = 'u8[1024]{0}', space=vmem, size = 0x400, scoped, tag = 'output window, operand 1, single buffered']
    #allocation24 [shape = 'u8[512]{0}', space=smem, size = 0x200, scoped, tag = 'output window, operand 2, single buffered']
    #allocation25 [shape = 'u8[512]{0}', space=smem, size = 0x200, scoped, tag = 'output window, operand 3, single buffered']
    #allocation26 [shape = 's32[1]{0}', space=sflag, size = 0x4, scoped, tag = 'scoped memory for forward.1']
    %69 = vsyncpa [#allocation3], 0
    %70 = vsyncpa [#allocation8], 0
    %71 = vsyncpa [#allocation11], 0
    %72 = vsyncpa [#allocation14], 0
    %73 = vsyncpa [#allocation17], 0
    %74 = vsyncpa [#allocation5], 0
    %75 = vsyncpa [#allocation21], 0
    %76 = vsyncpa [#allocation4], 0
    %77 = vsyncpa [#allocation6], 0
    %78 = vsyncpa [#allocation26], 0
    // Predicated region
    $region2: #{forward.1} parent=1 // pred_check
      _
    $region3: #{forward.1} parent=1 // pred_check_branch
      %80 = sbr.rel (0) target = $region5
    $region4: #{forward.1} parent=1 // pred_region
      _
    $region5: #{forward.1} parent=1 // pred_fallthru
      _
    // Predicated region
    $region6: #{forward.1} parent=1 // pred_check
      _
    $region7: #{forward.1} parent=1 // pred_check_branch
      %82 = sbr.rel (0) target = $region9
    $region8: #{forward.1} parent=1 // pred_region
      _
    $region9: #{forward.1} parent=1 // pred_fallthru
      _
    // Predicated region
    $region10: #{forward.1} parent=1 // pred_check
      _
    $region11: #{forward.1} parent=1 // pred_check_branch
      %84 = sbr.rel (0) target = $region13
    $region12: #{forward.1} parent=1 // pred_region
      _
    $region13: #{forward.1} parent=1 // pred_fallthru
      _
    // Predicated region
    $region14: #{forward.1} parent=1 // pred_check
      _
    $region15: #{forward.1} parent=1 // pred_check_branch
      %86 = sbr.rel (0) target = $region17
    $region16: #{forward.1} parent=1 // pred_region
      %s88 = ssub.s32 4352, 4352
      %89 = vsyncadd [#allocation3], %s88
      %s90 = sshll.u32 [#allocation2], 4
      %s91 = int_to_ptr.vmem [resolvable:$true] %s90
      %96 = dma.hbm_to_vmem [thread:$0]  %s7, 4352, %s91, [#allocation3], 256, 256, 16
    $region17: #{forward.1} parent=1 // pred_fallthru
      _
    // Predicated region
    $region18: #{forward.1} parent=1 // pred_check
      _
    $region19: #{forward.1} parent=1 // pred_check_branch
      %98 = sbr.rel (0) target = $region21
    $region20: #{forward.1} parent=1 // pred_region
      _
    $region21: #{forward.1} parent=1 // pred_fallthru
      _
    // Predicated region
    $region22: #{forward.1} parent=1 // pred_check
      _
    $region23: #{forward.1} parent=1 // pred_check_branch
      %100 = sbr.rel (0) target = $region25
    $region24: #{forward.1} parent=1 // pred_region
      _
    $region25: #{forward.1} parent=1 // pred_fallthru
      _
    // Predicated region
    $region26: #{forward.1} parent=1 // pred_check
      _
    $region27: #{forward.1} parent=1 // pred_check_branch
      %102 = sbr.rel (0) target = $region29
    $region28: #{forward.1} parent=1 // pred_region
      _
    $region29: #{forward.1} parent=1 // pred_fallthru
      _
    // Predicated region
    $region30: #{forward.1} parent=1 // pred_check
      _
    $region31: #{forward.1} parent=1 // pred_check_branch
      %104 = sbr.rel (0) target = $region33
    $region32: #{forward.1} parent=1 // pred_region
      _
    $region33: #{forward.1} parent=1 // pred_fallthru
      _
    // Predicated region
    $region34: #{forward.1} parent=1 // pred_check
      _
    $region35: #{forward.1} parent=1 // pred_check_branch
      %106 = sbr.rel (0) target = $region37
    $region36: #{forward.1} parent=1 // pred_region
      %s108 = ssub.s32 16, 16
      %109 = vsyncadd [#allocation8], %s108
      %s111 = sshll.u32 [#allocation7], 4
      %s112 = int_to_ptr.vmem [resolvable:$true] %s111
      %114 = dma.hbm_to_vmem [thread:$0]  %s17, 16, %s112, [#allocation8]
    $region37: #{forward.1} parent=1 // pred_fallthru
      _
    // Predicated region
    $region38: #{forward.1} parent=1 // pred_check
      _
    $region39: #{forward.1} parent=1 // pred_check_branch
      %116 = sbr.rel (0) target = $region41
    $region40: #{forward.1} parent=1 // pred_region
      %s118 = ssub.s32 16, 16
      %119 = vsyncadd [#allocation8], %s118
      %s121 = sshll.u32 [#allocation9], 4
      %s122 = int_to_ptr.vmem [resolvable:$true] %s121
      %124 = dma.hbm_to_vmem [thread:$0]  %s19, 16, %s122, [#allocation8]
    $region41: #{forward.1} parent=1 // pred_fallthru
      _
    // Predicated region
    $region42: #{forward.1} parent=1 // pred_check
      _
    $region43: #{forward.1} parent=1 // pred_check_branch
      %126 = sbr.rel (0) target = $region45
    $region44: #{forward.1} parent=1 // pred_region
      _
    $region45: #{forward.1} parent=1 // pred_fallthru
      _
    // Predicated region
    $region46: #{forward.1} parent=1 // pred_check
      _
    $region47: #{forward.1} parent=1 // pred_check_branch
      %128 = sbr.rel (0) target = $region49
    $region48: #{forward.1} parent=1 // pred_region
      %s130 = ssub.s32 16, 16
      %131 = vsyncadd [#allocation11], %s130
      %s133 = sshll.u32 [#allocation10], 4
      %s134 = int_to_ptr.vmem [resolvable:$true] %s133
      %136 = dma.hbm_to_vmem [thread:$0]  %s23, 16, %s134, [#allocation11]
    $region49: #{forward.1} parent=1 // pred_fallthru
      _
    // Predicated region
    $region50: #{forward.1} parent=1 // pred_check
      _
    $region51: #{forward.1} parent=1 // pred_check_branch
      %138 = sbr.rel (0) target = $region53
    $region52: #{forward.1} parent=1 // pred_region
      _
    $region53: #{forward.1} parent=1 // pred_fallthru
      _
    // Predicated region
    $region54: #{forward.1} parent=1 // pred_check
      _
    $region55: #{forward.1} parent=1 // pred_check_branch
      %140 = sbr.rel (0) target = $region57
    $region56: #{forward.1} parent=1 // pred_region
      %s142 = ssub.s32 16, 16
      %143 = vsyncadd [#allocation11], %s142
      %s145 = sshll.u32 [#allocation12], 4
      %s146 = int_to_ptr.vmem [resolvable:$true] %s145
      %148 = dma.hbm_to_vmem [thread:$0]  %s27, 16, %s146, [#allocation11]
    $region57: #{forward.1} parent=1 // pred_fallthru
      _
    // Predicated region
    $region58: #{forward.1} parent=1 // pred_check
      _
    $region59: #{forward.1} parent=1 // pred_check_branch
      %150 = sbr.rel (0) target = $region61
    $region60: #{forward.1} parent=1 // pred_region
      _
    $region61: #{forward.1} parent=1 // pred_fallthru
      _
    // Predicated region
    $region62: #{forward.1} parent=1 // pred_check
      _
    $region63: #{forward.1} parent=1 // pred_check_branch
      %152 = sbr.rel (0) target = $region65
    $region64: #{forward.1} parent=1 // pred_region
      %s154 = ssub.s32 16, 16
      %155 = vsyncadd [#allocation14], %s154
      %s157 = sshll.u32 [#allocation13], 4
      %s158 = int_to_ptr.vmem [resolvable:$true] %s157
      %160 = dma.hbm_to_vmem [thread:$0]  %s31, 16, %s158, [#allocation14]
    $region65: #{forward.1} parent=1 // pred_fallthru
      _
    // Predicated region
    $region66: #{forward.1} parent=1 // pred_check
      _
    $region67: #{forward.1} parent=1 // pred_check_branch
      %162 = sbr.rel (0) target = $region69
    $region68: #{forward.1} parent=1 // pred_region
      _
    $region69: #{forward.1} parent=1 // pred_fallthru
      _
    // Predicated region
    $region70: #{forward.1} parent=1 // pred_check
      _
    $region71: #{forward.1} parent=1 // pred_check_branch
      %164 = sbr.rel (0) target = $region73
    $region72: #{forward.1} parent=1 // pred_region
      %s166 = ssub.s32 16, 16
      %167 = vsyncadd [#allocation14], %s166
      %s169 = sshll.u32 [#allocation15], 4
      %s170 = int_to_ptr.vmem [resolvable:$true] %s169
      %172 = dma.hbm_to_vmem [thread:$0]  %s35, 16, %s170, [#allocation14]
    $region73: #{forward.1} parent=1 // pred_fallthru
      _
    // Predicated region
    $region74: #{forward.1} parent=1 // pred_check
      _
    $region75: #{forward.1} parent=1 // pred_check_branch
      %174 = sbr.rel (0) target = $region77
    $region76: #{forward.1} parent=1 // pred_region
      _
    $region77: #{forward.1} parent=1 // pred_fallthru
      _
    // Predicated region
    $region78: #{forward.1} parent=1 // pred_check
      _
    $region79: #{forward.1} parent=1 // pred_check_branch
      %176 = sbr.rel (0) target = $region81
    $region80: #{forward.1} parent=1 // pred_region
      %s178 = ssub.s32 16, 16
      %179 = vsyncadd [#allocation17], %s178
      %s181 = sshll.u32 [#allocation16], 4
      %s182 = int_to_ptr.vmem [resolvable:$true] %s181
      %184 = dma.hbm_to_vmem [thread:$0]  %s39, 16, %s182, [#allocation17]
    $region81: #{forward.1} parent=1 // pred_fallthru
      _
    // Predicated region
    $region82: #{forward.1} parent=1 // pred_check
      _
    $region83: #{forward.1} parent=1 // pred_check_branch
      %186 = sbr.rel (0) target = $region85
    $region84: #{forward.1} parent=1 // pred_region
      _
    $region85: #{forward.1} parent=1 // pred_fallthru
      _
    // Predicated region
    $region86: #{forward.1} parent=1 // pred_check
      _
    $region87: #{forward.1} parent=1 // pred_check_branch
      %188 = sbr.rel (0) target = $region89
    $region88: #{forward.1} parent=1 // pred_region
      _
    $region89: #{forward.1} parent=1 // pred_fallthru
      _
    // Predicated region
    $region90: #{forward.1} parent=1 // pred_check
      _
    $region91: #{forward.1} parent=1 // pred_check_branch
      %190 = sbr.rel (0) target = $region93
    $region92: #{forward.1} parent=1 // pred_region
      %s192 = ssub.s32 16, 16
      %193 = vsyncadd [#allocation17], %s192
      %s195 = sshll.u32 [#allocation18], 4
      %s196 = int_to_ptr.vmem [resolvable:$true] %s195
      %198 = dma.hbm_to_vmem [thread:$0]  %s45, 16, %s196, [#allocation17]
    $region93: #{forward.1} parent=1 // pred_fallthru
      _
    // Predicated region
    $region94: #{forward.1} parent=1 // pred_check
      _
    $region95: #{forward.1} parent=1 // pred_check_branch
      %200 = sbr.rel (0) target = $region97
    $region96: #{forward.1} parent=1 // pred_region
      _
    $region97: #{forward.1} parent=1 // pred_fallthru
      _
    // Predicated region
    $region98: #{forward.1} parent=1 // pred_check
      _
    $region99: #{forward.1} parent=1 // pred_check_branch
      %202 = sbr.rel (0) target = $region101
    $region100: #{forward.1} parent=1 // pred_region
      _
    $region101: #{forward.1} parent=1 // pred_fallthru
      _
    // Predicated region
    $region102: #{forward.1} parent=1 // pred_check
      _
    $region103: #{forward.1} parent=1 // pred_check_branch
      %204 = sbr.rel (0) target = $region105
    $region104: #{forward.1} parent=1 // pred_region
      %s206 = ssub.s32 16, 16
      %207 = vsyncadd [#allocation5], %s206
      %210 = dma.hbm_to_smem %s51, 16, [#allocation19], [#allocation5]
    $region105: #{forward.1} parent=1 // pred_fallthru
      _
    // Predicated region
    $region106: #{forward.1} parent=1 // pred_check
      _
    $region107: #{forward.1} parent=1 // pred_check_branch
      %212 = sbr.rel (0) target = $region109
    $region108: #{forward.1} parent=1 // pred_region
      %s214 = ssub.s32 16, 16
      %215 = vsyncadd [#allocation21], %s214
      %218 = dma.hbm_to_smem %s53, 16, [#allocation20], [#allocation21]
    $region109: #{forward.1} parent=1 // pred_fallthru
      _
    // Predicated region
    $region110: #{forward.1} parent=1 // pred_check
      _
    $region111: #{forward.1} parent=1 // pred_check_branch
      %220 = sbr.rel (0) target = $region113
    $region112: #{forward.1} parent=1 // pred_region
      %s222 = ssub.s32 16, 16
      %223 = vsyncadd [#allocation21], %s222
      %226 = dma.hbm_to_smem %s55, 16, [#allocation22], [#allocation21]
    $region113: #{forward.1} parent=1 // pred_fallthru
      _
    // Predicated region
    $region114: #{forward.1} parent=1 // pred_check
      _
    $region115: #{forward.1} parent=1 // pred_check_branch
      %228 = sbr.rel (0) target = $region117
    $region116: #{forward.1} parent=1 // pred_region
      %229 = dma.done [#allocation3], 4352
    $region117: #{forward.1} parent=1 // pred_fallthru
      _
    // Predicated region
    $region118: #{forward.1} parent=1 // pred_check
      _
    $region119: #{forward.1} parent=1 // pred_check_branch
      %231 = sbr.rel (0) target = $region121
    $region120: #{forward.1} parent=1 // pred_region
      %232 = dma.done [#allocation8], 16
    $region121: #{forward.1} parent=1 // pred_fallthru
      _
    // Predicated region
    $region122: #{forward.1} parent=1 // pred_check
      _
    $region123: #{forward.1} parent=1 // pred_check_branch
      %234 = sbr.rel (0) target = $region125
    $region124: #{forward.1} parent=1 // pred_region
      %235 = dma.done [#allocation8], 16
    $region125: #{forward.1} parent=1 // pred_fallthru
      _
    // Predicated region
    $region126: #{forward.1} parent=1 // pred_check
      _
    $region127: #{forward.1} parent=1 // pred_check_branch
      %237 = sbr.rel (0) target = $region129
    $region128: #{forward.1} parent=1 // pred_region
      %238 = dma.done [#allocation11], 16
    $region129: #{forward.1} parent=1 // pred_fallthru
      _
    // Predicated region
    $region130: #{forward.1} parent=1 // pred_check
      _
    $region131: #{forward.1} parent=1 // pred_check_branch
      %240 = sbr.rel (0) target = $region133
    $region132: #{forward.1} parent=1 // pred_region
      %241 = dma.done [#allocation11], 16
    $region133: #{forward.1} parent=1 // pred_fallthru
      _
    // Predicated region
    $region134: #{forward.1} parent=1 // pred_check
      _
    $region135: #{forward.1} parent=1 // pred_check_branch
      %243 = sbr.rel (0) target = $region137
    $region136: #{forward.1} parent=1 // pred_region
      %244 = dma.done [#allocation14], 16
    $region137: #{forward.1} parent=1 // pred_fallthru
      _
    // Predicated region
    $region138: #{forward.1} parent=1 // pred_check
      _
    $region139: #{forward.1} parent=1 // pred_check_branch
      %246 = sbr.rel (0) target = $region141
    $region140: #{forward.1} parent=1 // pred_region
      %247 = dma.done [#allocation14], 16
    $region141: #{forward.1} parent=1 // pred_fallthru
      _
    // Predicated region
    $region142: #{forward.1} parent=1 // pred_check
      _
    $region143: #{forward.1} parent=1 // pred_check_branch
      %249 = sbr.rel (0) target = $region145
    $region144: #{forward.1} parent=1 // pred_region
      %250 = dma.done [#allocation17], 16
    $region145: #{forward.1} parent=1 // pred_fallthru
      _
    // Predicated region
    $region146: #{forward.1} parent=1 // pred_check
      _
    $region147: #{forward.1} parent=1 // pred_check_branch
      %252 = sbr.rel (0) target = $region149
    $region148: #{forward.1} parent=1 // pred_region
      %253 = dma.done [#allocation17], 16
    $region149: #{forward.1} parent=1 // pred_fallthru
      _
    // Predicated region
    $region150: #{forward.1} parent=1 // pred_check
      _
    $region151: #{forward.1} parent=1 // pred_check_branch
      %255 = sbr.rel (0) target = $region153
    $region152: #{forward.1} parent=1 // pred_region
      %256 = dma.done [#allocation5], 16
    $region153: #{forward.1} parent=1 // pred_fallthru
      _
    // Predicated region
    $region154: #{forward.1} parent=1 // pred_check
      _
    $region155: #{forward.1} parent=1 // pred_check_branch
      %258 = sbr.rel (0) target = $region157
    $region156: #{forward.1} parent=1 // pred_region
      %259 = dma.done [#allocation21], 16
    $region157: #{forward.1} parent=1 // pred_fallthru
      _
    // Predicated region
    $region158: #{forward.1} parent=1 // pred_check
      _
    $region159: #{forward.1} parent=1 // pred_check_branch
      %261 = sbr.rel (0) target = $region161
    $region160: #{forward.1} parent=1 // pred_region
      %262 = dma.done [#allocation21], 16
    $region161: #{forward.1} parent=1 // pred_fallthru
      _
    %263 = sfence
    %v264 = vld [vmem:[%s1] sm:$0xf]
    %v265 = vld [vmem:[%s3] sm:$0x3]
    %v266 = vld [vmem:[#allocation2] sm:$0xff]
    %v267 = vld [vmem:[#allocation2 + $0x8] sm:$0xff]
    %v268 = vld [vmem:[#allocation2 + $0x10] sm:$0xff]
    %v269 = vld [vmem:[#allocation2 + $0x18] sm:$0xff]
    %v270 = vld [vmem:[#allocation2 + $0x20] sm:$0xff]
    %v271 = vld [vmem:[#allocation2 + $0x28] sm:$0xff]
    %v272 = vld [vmem:[#allocation2 + $0x30] sm:$0xff]
    %v273 = vld [vmem:[#allocation2 + $0x38] sm:$0xff]
    %v274 = vld [vmem:[#allocation2 + $0x40] sm:$0xff]
    %v275 = vld [vmem:[#allocation2 + $0x48] sm:$0xff]
    %v276 = vld [vmem:[#allocation2 + $0x50] sm:$0xff]
    %v277 = vld [vmem:[#allocation2 + $0x58] sm:$0xff]
    %v278 = vld [vmem:[#allocation2 + $0x60] sm:$0xff]
    %v279 = vld [vmem:[#allocation2 + $0x68] sm:$0xff]
    %v280 = vld [vmem:[#allocation2 + $0x70] sm:$0xff]
    %v281 = vld [vmem:[#allocation2 + $0x78] sm:$0xff]
    %v282 = vld [vmem:[#allocation2 + $0x80] sm:$0xff]
    %v283 = vld [vmem:[#allocation2 + $0x88] sm:$0xff]
    %v284 = vld [vmem:[#allocation2 + $0x90] sm:$0xff]
    %v285 = vld [vmem:[#allocation2 + $0x98] sm:$0xff]
    %v286 = vld [vmem:[#allocation2 + $0xa0] sm:$0xff]
    %v287 = vld [vmem:[#allocation2 + $0xa8] sm:$0xff]
    %v288 = vld [vmem:[#allocation2 + $0xb0] sm:$0xff]
    %v289 = vld [vmem:[#allocation2 + $0xb8] sm:$0xff]
    %v290 = vld [vmem:[#allocation2 + $0xc0] sm:$0xff]
    %v291 = vld [vmem:[#allocation2 + $0xc8] sm:$0xff]
    %v292 = vld [vmem:[#allocation2 + $0xd0] sm:$0xff]
    %v293 = vld [vmem:[#allocation2 + $0xd8] sm:$0xff]
    %v294 = vld [vmem:[#allocation2 + $0xe0] sm:$0xff]
    %v295 = vld [vmem:[#allocation2 + $0xe8] sm:$0xff]
    %v296 = vld [vmem:[#allocation2 + $0xf0] sm:$0xff]
    %v297 = vld [vmem:[#allocation2 + $0xf8] sm:$0xff]
    %v298 = vld [vmem:[#allocation2 + $0x100] sm:$0xff]
    %v299 = vld [vmem:[#allocation2 + $0x108] sm:$0xff]
    %v300 = vlaneseq
    %v301 = vand.u32 %v300, 127
    %v302 = vadd.s32 %v301, 128
    %vm303 = vcmp.lt.s32.totalorder %v301, 128
    %vm304 = vcmp.lt.s32.totalorder %v302, 128
    %v305 = vsel %vm303, 1, 0
    %v306 = vsel %vm304, 1, 0
    %v307 = vcvt.s32.f32 %v305
    %v308 = vcvt.s32.f32 %v306
    %v309 = vsub.f32 1.0, %v307
    %v310 = vsub.f32 1.0, %v308
    %v311 = vsub.f32 %v309, %v307
    %v312 = vsub.f32 %v310, %v308
    %s313 = sld [smem:[#allocation19]]
    %s314 = sld [smem:[#allocation20]]
    %s315 = sld [smem:[#allocation22]]
    %vm316 = vcmask 64512
    %v318 = vsel %vm316, 0.0, 0
    %320 = vmatprep.subr.mxu0 %v267
    %321 = vmatpush1.msra.mxu0 %v266
    %322 = vmatprep.subr.mxu0 %v269
    %323 = vmatpush1.msra.mxu0 %v268
    %324 = vmatprep.subr.mxu0 %v271
    %325 = vmatpush1.msra.mxu0 %v270
    %326 = vmatprep.subr.mxu0 %v273
    %327 = vmatpush1.msra.mxu0 %v272
    %328 = vmatprep.subr.mxu0 %v275
    %329 = vmatpush1.msra.mxu0 %v274
    %330 = vmatprep.subr.mxu0 %v277
    %331 = vmatpush1.msra.mxu0 %v276
    %332 = vmatprep.subr.mxu0 %v279
    %333 = vmatpush1.msra.mxu0 %v278
    %334 = vmatprep.subr.mxu0 %v281
    %335 = vmatpush1.msra.mxu0 %v280
    %336 = vmatprep.subr.mxu0 %v283
    %337 = vmatpush1.msra.mxu0 %v282
    %338 = vmatprep.subr.mxu0 %v285
    %339 = vmatpush1.msra.mxu0 %v284
    %340 = vmatprep.subr.mxu0 %v287
    %341 = vmatpush1.msra.mxu0 %v286
    %342 = vmatprep.subr.mxu0 %v289
    %343 = vmatpush1.msra.mxu0 %v288
    %344 = vmatprep.subr.mxu0 %v291
    %345 = vmatpush1.msra.mxu0 %v290
    %346 = vmatprep.subr.mxu0 %v293
    %347 = vmatpush1.msra.mxu0 %v292
    %348 = vmatprep.subr.mxu0 %v295
    %349 = vmatpush1.msra.mxu0 %v294
    %350 = vmatprep.subr.mxu0 %v297
    %351 = vmatpush1.msra.mxu0 %v296
    %352 = vmatprep.subr.mxu0 %v299
    %353 = vmatpush1.msra.mxu0 %v298
    %354 = vmatprep.subr.mxu0 0.0
    %355 = vmatpush1.msra.mxu0 0.0
    %356 = vmatprep.subr.mxu0 0.0
    %357 = vmatpush1.msra.mxu0 0.0
    %358 = vmatprep.subr.mxu0 0.0
    %359 = vmatpush1.msra.mxu0 0.0
    %360 = vmatprep.subr.mxu0 0.0
    %361 = vmatpush1.msra.mxu0 0.0
    %362 = vmatprep.subr.mxu0 0.0
    %363 = vmatpush1.msra.mxu0 0.0
    %364 = vmatprep.subr.mxu0 0.0
    %365 = vmatpush1.msra.mxu0 0.0
    %366 = vmatprep.subr.mxu0 0.0
    %367 = vmatpush1.msra.mxu0 0.0
    %368 = vmatprep.subr.mxu0 0.0
    %369 = vmatpush1.msra.mxu0 0.0
    %370 = vmatprep.subr.mxu0 0.0
    %371 = vmatpush1.msra.mxu0 0.0
    %372 = vmatprep.subr.mxu0 0.0
    %373 = vmatpush1.msra.mxu0 0.0
    %374 = vmatprep.subr.mxu0 0.0
    %375 = vmatpush1.msra.mxu0 0.0
    %376 = vmatprep.subr.mxu0 0.0
    %377 = vmatpush1.msra.mxu0 0.0
    %378 = vmatprep.subr.mxu0 0.0
    %379 = vmatpush1.msra.mxu0 0.0
    %380 = vmatprep.subr.mxu0 0.0
    %381 = vmatpush1.msra.mxu0 0.0
    %382 = vmatprep.subr.mxu0 0.0
    %383 = vmatpush1.msra.mxu0 0.0
    %384 = vmatprep.mubr.f32.mxu0 %v318
    %385 = vmatmul.mubr.f32.gmra.mrb[0].mxu0 0.0
    %v386 = vpop.f32.mrb[0].mxu0
    %v387 = vadd.f32 0.0, %v386
    %v388 = vpop.f32.mrb[0].mxu0
    %v389 = vadd.f32 0.0, %v388
    %390 = vdwg.mxu0
    %v391 = vmul.f32 %v311, %v387
    %v392 = vmul.f32 %v312, %v389
    %s393 = smul.f32 %s314, 2.0
    %v394 = vmul.f32 %v307, 0.0
    %v395 = vmul.f32 %v308, 0.0
    %v396 = vstv %s393
    %v397 = vmul.f32 %v396, %v394
    %v398 = vmul.f32 %v396, %v395
    %v399 = vsub.f32 %v391, %v397
    %v400 = vsub.f32 %v392, %v398
    %v401 = vmul.f32 %v264, 2.0
    %v404 = vunpack.c.l.s4 1983009808
    %v405 = vunpack.c.0.s8 %v404
    %v406 = vlaneseq
    %v407 = vshrl.u32 %v406, 7
    %v408 = vsub.s32 %v405, %v407
    %v409 = vrot.slane %v401, %v408
    %v410 = vcombine.high %v409, %v409
    %v413 = vsub.f32 %v399, %v409
    %v414 = vsub.f32 %v400, %v410
    %v415 = vstv %s313
    %v416 = vmul.f32 %v415, %v413
    %v417 = vmul.f32 %v415, %v414
    %v418 = vadd.f32 %v416, 0.0
    %v419 = vadd.f32 %v417, 0.0
    %vm420 = vcmp.gt.f32.partialorder %v418, 0.0
    %vm421 = vcmp.gt.f32.partialorder %v419, 0.0
    %v422 = vmul.f32 %v418, 0.01
    %v423 = vmul.f32 %v419, 0.01
    %v424 = vsel %vm420, %v418, %v422
    %v425 = vsel %vm421, %v419, %v423
    %v426 = vmul.f32 %v307, %v424
    %v427 = vmul.f32 %v308, %v425
    %v428 = vmul.f32 %v418, %v418
    %v429 = vmul.f32 %v419, %v419
    %s430 = smul.f32 %s313, 4.0
    %s431 = smul.f32 %s430, %s315
    %v432 = vstv %s431
    %v433 = vadd.f32 %v428, %v432
    %v434 = vadd.f32 %v429, %v432
    %v435 = vmax.f32 %v433, 1e-08
    %v436 = vmax.f32 %v434, 1e-08
    %v437 = vrsqrt.pop %v435
    %v438 = vmul.f32 %v435, %v437
    %vm439 = vcmp.eq.f32.partialorder %v435, inf
    %v440 = vsel %vm439, %v435, %v438
    %vm441 = vcmp.eq.f32.partialorder %v435, 0.0
    %v442 = vand.u32 %v435, 2147483648
    %v443 = vsel %vm441, %v442, %v440
    %v444 = vrsqrt.pop %v436
    %v445 = vmul.f32 %v436, %v444
    %vm446 = vcmp.eq.f32.partialorder %v436, inf
    %v447 = vsel %vm446, %v436, %v445
    %vm448 = vcmp.eq.f32.partialorder %v436, 0.0
    %v449 = vand.u32 %v436, 2147483648
    %v450 = vsel %vm448, %v449, %v447
    %v451 = vsub.f32 %v418, %v443
    %v452 = vsub.f32 %v419, %v450
    %v453 = vmul.f32 %v451, 0.5
    %v454 = vmul.f32 %v452, 0.5
    %v455 = vmul.f32 %v309, %v453
    %v456 = vmul.f32 %v310, %v454
    %v457 = vadd.f32 %v426, %v455
    %v458 = vadd.f32 %v427, %v456
    %v460 = vsel %vm316, %v458, 0
    %462 = vmatprep.subr.mxu0 %v267
    %463 = vmatpush1.msra.mxu0 %v266
    %464 = vmatprep.subr.mxu0 %v269
    %465 = vmatpush1.msra.mxu0 %v268
    %466 = vmatprep.subr.mxu0 %v271
    %467 = vmatpush1.msra.mxu0 %v270
    %468 = vmatprep.subr.mxu0 %v273
    %469 = vmatpush1.msra.mxu0 %v272
    %470 = vmatprep.subr.mxu0 %v275
    %471 = vmatpush1.msra.mxu0 %v274
    %472 = vmatprep.subr.mxu0 %v277
    %473 = vmatpush1.msra.mxu0 %v276
    %474 = vmatprep.subr.mxu0 %v279
    %475 = vmatpush1.msra.mxu0 %v278
    %476 = vmatprep.subr.mxu0 %v281
    %477 = vmatpush1.msra.mxu0 %v280
    %478 = vmatprep.subr.mxu0 %v283
    %479 = vmatpush1.msra.mxu0 %v282
    %480 = vmatprep.subr.mxu0 %v285
    %481 = vmatpush1.msra.mxu0 %v284
    %482 = vmatprep.subr.mxu0 %v287
    %483 = vmatpush1.msra.mxu0 %v286
    %484 = vmatprep.subr.mxu0 %v289
    %485 = vmatpush1.msra.mxu0 %v288
    %486 = vmatprep.subr.mxu0 %v291
    %487 = vmatpush1.msra.mxu0 %v290
    %488 = vmatprep.subr.mxu0 %v293
    %489 = vmatpush1.msra.mxu0 %v292
    %490 = vmatprep.subr.mxu0 %v295
    %491 = vmatpush1.msra.mxu0 %v294
    %492 = vmatprep.subr.mxu0 %v297
    %493 = vmatpush1.msra.mxu0 %v296
    %494 = vmatprep.subr.mxu0 %v299
    %495 = vmatpush1.msra.mxu0 %v298
    %496 = vmatprep.subr.mxu0 0.0
    %497 = vmatpush1.msra.mxu0 0.0
    %498 = vmatprep.subr.mxu0 0.0
    %499 = vmatpush1.msra.mxu0 0.0
    %500 = vmatprep.subr.mxu0 0.0
    %501 = vmatpush1.msra.mxu0 0.0
    %502 = vmatprep.subr.mxu0 0.0
    %503 = vmatpush1.msra.mxu0 0.0
    %504 = vmatprep.subr.mxu0 0.0
    %505 = vmatpush1.msra.mxu0 0.0
    %506 = vmatprep.subr.mxu0 0.0
    %507 = vmatpush1.msra.mxu0 0.0
    %508 = vmatprep.subr.mxu0 0.0
    %509 = vmatpush1.msra.mxu0 0.0
    %510 = vmatprep.subr.mxu0 0.0
    %511 = vmatpush1.msra.mxu0 0.0
    %512 = vmatprep.subr.mxu0 0.0
    %513 = vmatpush1.msra.mxu0 0.0
    %514 = vmatprep.subr.mxu0 0.0
    %515 = vmatpush1.msra.mxu0 0.0
    %516 = vmatprep.subr.mxu0 0.0
    %517 = vmatpush1.msra.mxu0 0.0
    %518 = vmatprep.subr.mxu0 0.0
    %519 = vmatpush1.msra.mxu0 0.0
    %520 = vmatprep.subr.mxu0 0.0
    %521 = vmatpush1.msra.mxu0 0.0
    %522 = vmatprep.subr.mxu0 0.0
    %523 = vmatpush1.msra.mxu0 0.0
    %524 = vmatprep.subr.mxu0 0.0
    %525 = vmatpush1.msra.mxu0 0.0
    %526 = vmatprep.mubr.f32.mxu0 %v460
    %527 = vmatmul.mubr.f32.gmra.mrb[0].mxu0 %v457
    %v528 = vpop.f32.mrb[0].mxu0
    %v529 = vadd.f32 0.0, %v528
    %v530 = vpop.f32.mrb[0].mxu0
    %v531 = vadd.f32 0.0, %v530
    %532 = vdwg.mxu0
    %v533 = vmul.f32 %v311, %v529
    %v534 = vmul.f32 %v312, %v531
    %v535 = vmul.f32 %v307, %v457
    %v536 = vmul.f32 %v308, %v458
    %v537 = vmul.f32 %v396, %v535
    %v538 = vmul.f32 %v396, %v536
    %v539 = vsub.f32 %v533, %v537
    %v540 = vsub.f32 %v534, %v538
    %v541 = vsub.f32 %v539, %v409
    %v542 = vsub.f32 %v540, %v410
    %v543 = vmul.f32 %v415, %v541
    %v544 = vmul.f32 %v415, %v542
    %v545 = vadd.f32 %v457, %v543
    %v546 = vadd.f32 %v458, %v544
    %v547 = vsub.f32 0.0, %v418
    %v548 = vsub.f32 0.0, %v419
    %v549 = vadd.f32 %v547, %v545
    %v550 = vadd.f32 %v548, %v546
    %v553 = vunpack.c.l.s4 1966171168
    %v554 = vunpack.c.0.s8 %v553
    %v555 = vlaneseq
    %v556 = vshrl.u32 %v555, 7
    %v557 = vsub.s32 %v554, %v556
    %v558 = vrot.slane %v549, %v557
    %v559 = vcombine.high %v558, %v558
    %v561 = vunpack.c.l.s4 1966171168
    %v562 = vunpack.c.0.s8 %v561
    %v563 = vlaneseq
    %v564 = vshrl.u32 %v563, 7
    %v565 = vsub.s32 %v562, %v564
    %v566 = vrot.slane %v558, %v565
    %v568 = vunpack.c.l.s4 1966171168
    %v569 = vunpack.c.0.s8 %v568
    %v570 = vlaneseq
    %v571 = vshrl.u32 %v570, 7
    %v572 = vsub.s32 %v569, %v571
    %v573 = vrot.slane %v559, %v572
    %576 = vst [vmem:[%s57] sm:$0x1] %v566
    %577 = vst [vmem:[%s57 + $0x4] sm:$0x1] %v573
    %s578 = sld [smem:[#allocation19 + $0x1]]
    %s579 = sld [smem:[#allocation20 + $0x1]]
    %s580 = sld [smem:[#allocation22 + $0x1]]
    %v582 = vsel %vm316, %v550, 0
    %584 = vmatprep.subr.mxu0 %v267
    %585 = vmatpush1.msra.mxu0 %v266
    %586 = vmatprep.subr.mxu0 %v269
    %587 = vmatpush1.msra.mxu0 %v268
    %588 = vmatprep.subr.mxu0 %v271
    %589 = vmatpush1.msra.mxu0 %v270
    %590 = vmatprep.subr.mxu0 %v273
    %591 = vmatpush1.msra.mxu0 %v272
    %592 = vmatprep.subr.mxu0 %v275
    %593 = vmatpush1.msra.mxu0 %v274
    %594 = vmatprep.subr.mxu0 %v277
    %595 = vmatpush1.msra.mxu0 %v276
    %596 = vmatprep.subr.mxu0 %v279
    %597 = vmatpush1.msra.mxu0 %v278
    %598 = vmatprep.subr.mxu0 %v281
    %599 = vmatpush1.msra.mxu0 %v280
    %600 = vmatprep.subr.mxu0 %v283
    %601 = vmatpush1.msra.mxu0 %v282
    %602 = vmatprep.subr.mxu0 %v285
    %603 = vmatpush1.msra.mxu0 %v284
    %604 = vmatprep.subr.mxu0 %v287
    %605 = vmatpush1.msra.mxu0 %v286
    %606 = vmatprep.subr.mxu0 %v289
    %607 = vmatpush1.msra.mxu0 %v288
    %608 = vmatprep.subr.mxu0 %v291
    %609 = vmatpush1.msra.mxu0 %v290
    %610 = vmatprep.subr.mxu0 %v293
    %611 = vmatpush1.msra.mxu0 %v292
    %612 = vmatprep.subr.mxu0 %v295
    %613 = vmatpush1.msra.mxu0 %v294
    %614 = vmatprep.subr.mxu0 %v297
    %615 = vmatpush1.msra.mxu0 %v296
    %616 = vmatprep.subr.mxu0 %v299
    %617 = vmatpush1.msra.mxu0 %v298
    %618 = vmatprep.subr.mxu0 0.0
    %619 = vmatpush1.msra.mxu0 0.0
    %620 = vmatprep.subr.mxu0 0.0
    %621 = vmatpush1.msra.mxu0 0.0
    %622 = vmatprep.subr.mxu0 0.0
    %623 = vmatpush1.msra.mxu0 0.0
    %624 = vmatprep.subr.mxu0 0.0
    %625 = vmatpush1.msra.mxu0 0.0
    %626 = vmatprep.subr.mxu0 0.0
    %627 = vmatpush1.msra.mxu0 0.0
    %628 = vmatprep.subr.mxu0 0.0
    %629 = vmatpush1.msra.mxu0 0.0
    %630 = vmatprep.subr.mxu0 0.0
    %631 = vmatpush1.msra.mxu0 0.0
    %632 = vmatprep.subr.mxu0 0.0
    %633 = vmatpush1.msra.mxu0 0.0
    %634 = vmatprep.subr.mxu0 0.0
    %635 = vmatpush1.msra.mxu0 0.0
    %636 = vmatprep.subr.mxu0 0.0
    %637 = vmatpush1.msra.mxu0 0.0
    %638 = vmatprep.subr.mxu0 0.0
    %639 = vmatpush1.msra.mxu0 0.0
    %640 = vmatprep.subr.mxu0 0.0
    %641 = vmatpush1.msra.mxu0 0.0
    %642 = vmatprep.subr.mxu0 0.0
    %643 = vmatpush1.msra.mxu0 0.0
    %644 = vmatprep.subr.mxu0 0.0
    %645 = vmatpush1.msra.mxu0 0.0
    %646 = vmatprep.subr.mxu0 0.0
    %647 = vmatpush1.msra.mxu0 0.0
    %648 = vmatprep.mubr.f32.mxu0 %v582
    %649 = vmatmul.mubr.f32.gmra.mrb[0].mxu0 %v549
    %v650 = vpop.f32.mrb[0].mxu0
    %v651 = vadd.f32 0.0, %v650
    %v652 = vpop.f32.mrb[0].mxu0
    %v653 = vadd.f32 0.0, %v652
    %654 = vdwg.mxu0
    %v655 = vmul.f32 %v311, %v651
    %v656 = vmul.f32 %v312, %v653
    %s657 = smul.f32 %s579, 2.0
    %v658 = vmul.f32 %v307, %v549
    %v659 = vmul.f32 %v308, %v550
    %v660 = vstv %s657
    %v661 = vmul.f32 %v660, %v658
    %v662 = vmul.f32 %v660, %v659
    %v663 = vsub.f32 %v655, %v661
    %v664 = vsub.f32 %v656, %v662
    %v665 = vsub.f32 %v663, %v409
    %v666 = vsub.f32 %v664, %v410
    %v667 = vstv %s578
    %v668 = vmul.f32 %v667, %v665
    %v669 = vmul.f32 %v667, %v666
    %v670 = vadd.f32 %v549, %v668
    %v671 = vadd.f32 %v550, %v669
    %vm672 = vcmp.gt.f32.partialorder %v670, 0.0
    %vm673 = vcmp.gt.f32.partialorder %v671, 0.0
    %v674 = vmul.f32 %v670, 0.01
    %v675 = vmul.f32 %v671, 0.01
    %v676 = vsel %vm672, %v670, %v674
    %v677 = vsel %vm673, %v671, %v675
    %v678 = vmul.f32 %v307, %v676
    %v679 = vmul.f32 %v308, %v677
    %v680 = vmul.f32 %v670, %v670
    %v681 = vmul.f32 %v671, %v671
    %s682 = smul.f32 %s578, 4.0
    %s683 = smul.f32 %s682, %s580
    %v684 = vstv %s683
    %v685 = vadd.f32 %v680, %v684
    %v686 = vadd.f32 %v681, %v684
    %v687 = vmax.f32 %v685, 1e-08
    %v688 = vmax.f32 %v686, 1e-08
    %v689 = vrsqrt.pop %v687
    %v690 = vmul.f32 %v687, %v689
    %vm691 = vcmp.eq.f32.partialorder %v687, inf
    %v692 = vsel %vm691, %v687, %v690
    %vm693 = vcmp.eq.f32.partialorder %v687, 0.0
    %v694 = vand.u32 %v687, 2147483648
    %v695 = vsel %vm693, %v694, %v692
    %v696 = vrsqrt.pop %v688
    %v697 = vmul.f32 %v688, %v696
    %vm698 = vcmp.eq.f32.partialorder %v688, inf
    %v699 = vsel %vm698, %v688, %v697
    %vm700 = vcmp.eq.f32.partialorder %v688, 0.0
    %v701 = vand.u32 %v688, 2147483648
    %v702 = vsel %vm700, %v701, %v699
    %v703 = vsub.f32 %v670, %v695
    %v704 = vsub.f32 %v671, %v702
    %v705 = vmul.f32 %v703, 0.5
    %v706 = vmul.f32 %v704, 0.5
    %v707 = vmul.f32 %v309, %v705
    %v708 = vmul.f32 %v310, %v706
    %v709 = vadd.f32 %v678, %v707
    %v710 = vadd.f32 %v679, %v708
    %v712 = vsel %vm316, %v710, 0
    %714 = vmatprep.subr.mxu0 %v267
    %715 = vmatpush1.msra.mxu0 %v266
    %716 = vmatprep.subr.mxu0 %v269
    %717 = vmatpush1.msra.mxu0 %v268
    %718 = vmatprep.subr.mxu0 %v271
    %719 = vmatpush1.msra.mxu0 %v270
    %720 = vmatprep.subr.mxu0 %v273
    %721 = vmatpush1.msra.mxu0 %v272
    %722 = vmatprep.subr.mxu0 %v275
    %723 = vmatpush1.msra.mxu0 %v274
    %724 = vmatprep.subr.mxu0 %v277
    %725 = vmatpush1.msra.mxu0 %v276
    %726 = vmatprep.subr.mxu0 %v279
    %727 = vmatpush1.msra.mxu0 %v278
    %728 = vmatprep.subr.mxu0 %v281
    %729 = vmatpush1.msra.mxu0 %v280
    %730 = vmatprep.subr.mxu0 %v283
    %731 = vmatpush1.msra.mxu0 %v282
    %732 = vmatprep.subr.mxu0 %v285
    %733 = vmatpush1.msra.mxu0 %v284
    %734 = vmatprep.subr.mxu0 %v287
    %735 = vmatpush1.msra.mxu0 %v286
    %736 = vmatprep.subr.mxu0 %v289
    %737 = vmatpush1.msra.mxu0 %v288
    %738 = vmatprep.subr.mxu0 %v291
    %739 = vmatpush1.msra.mxu0 %v290
    %740 = vmatprep.subr.mxu0 %v293
    %741 = vmatpush1.msra.mxu0 %v292
    %742 = vmatprep.subr.mxu0 %v295
    %743 = vmatpush1.msra.mxu0 %v294
    %744 = vmatprep.subr.mxu0 %v297
    %745 = vmatpush1.msra.mxu0 %v296
    %746 = vmatprep.subr.mxu0 %v299
    %747 = vmatpush1.msra.mxu0 %v298
    %748 = vmatprep.subr.mxu0 0.0
    %749 = vmatpush1.msra.mxu0 0.0
    %750 = vmatprep.subr.mxu0 0.0
    %751 = vmatpush1.msra.mxu0 0.0
    %752 = vmatprep.subr.mxu0 0.0
    %753 = vmatpush1.msra.mxu0 0.0
    %754 = vmatprep.subr.mxu0 0.0
    %755 = vmatpush1.msra.mxu0 0.0
    %756 = vmatprep.subr.mxu0 0.0
    %757 = vmatpush1.msra.mxu0 0.0
    %758 = vmatprep.subr.mxu0 0.0
    %759 = vmatpush1.msra.mxu0 0.0
    %760 = vmatprep.subr.mxu0 0.0
    %761 = vmatpush1.msra.mxu0 0.0
    %762 = vmatprep.subr.mxu0 0.0
    %763 = vmatpush1.msra.mxu0 0.0
    %764 = vmatprep.subr.mxu0 0.0
    %765 = vmatpush1.msra.mxu0 0.0
    %766 = vmatprep.subr.mxu0 0.0
    %767 = vmatpush1.msra.mxu0 0.0
    %768 = vmatprep.subr.mxu0 0.0
    %769 = vmatpush1.msra.mxu0 0.0
    %770 = vmatprep.subr.mxu0 0.0
    %771 = vmatpush1.msra.mxu0 0.0
    %772 = vmatprep.subr.mxu0 0.0
    %773 = vmatpush1.msra.mxu0 0.0
    %774 = vmatprep.subr.mxu0 0.0
    %775 = vmatpush1.msra.mxu0 0.0
    %776 = vmatprep.subr.mxu0 0.0
    %777 = vmatpush1.msra.mxu0 0.0
    %778 = vmatprep.mubr.f32.mxu0 %v712
    %779 = vmatmul.mubr.f32.gmra.mrb[0].mxu0 %v709
    %v780 = vpop.f32.mrb[0].mxu0
    %v781 = vadd.f32 0.0, %v780
    %v782 = vpop.f32.mrb[0].mxu0
    %v783 = vadd.f32 0.0, %v782
    %784 = vdwg.mxu0
    %v785 = vmul.f32 %v311, %v781
    %v786 = vmul.f32 %v312, %v783
    %v787 = vmul.f32 %v307, %v709
    %v788 = vmul.f32 %v308, %v710
    %v789 = vmul.f32 %v660, %v787
    %v790 = vmul.f32 %v660, %v788
    %v791 = vsub.f32 %v785, %v789
    %v792 = vsub.f32 %v786, %v790
    %v793 = vsub.f32 %v791, %v409
    %v794 = vsub.f32 %v792, %v410
    %v795 = vmul.f32 %v667, %v793
    %v796 = vmul.f32 %v667, %v794
    %v797 = vadd.f32 %v709, %v795
    %v798 = vadd.f32 %v710, %v796
    %v799 = vsub.f32 %v549, %v670
    %v800 = vsub.f32 %v550, %v671
    %v801 = vadd.f32 %v799, %v797
    %v802 = vadd.f32 %v800, %v798
    %v805 = vunpack.c.l.s4 1966171168
    %v806 = vunpack.c.0.s8 %v805
    %v807 = vlaneseq
    %v808 = vshrl.u32 %v807, 7
    %v809 = vsub.s32 %v806, %v808
    %v810 = vrot.slane %v801, %v809
    %v811 = vcombine.high %v810, %v810
    %v813 = vunpack.c.l.s4 1966171168
    %v814 = vunpack.c.0.s8 %v813
    %v815 = vlaneseq
    %v816 = vshrl.u32 %v815, 7
    %v817 = vsub.s32 %v814, %v816
    %v818 = vrot.slane %v810, %v817
    %v820 = vunpack.c.l.s4 1966171168
    %v821 = vunpack.c.0.s8 %v820
    %v822 = vlaneseq
    %v823 = vshrl.u32 %v822, 7
    %v824 = vsub.s32 %v821, %v823
    %v825 = vrot.slane %v811, %v824
    %828 = vst [vmem:[%s57 + $0x1] sm:$0x1] %v818
    %829 = vst [vmem:[%s57 + $0x5] sm:$0x1] %v825
    %s830 = sld [smem:[#allocation19 + $0x2]]
    %s831 = sld [smem:[#allocation20 + $0x2]]
    %s832 = sld [smem:[#allocation22 + $0x2]]
    %v834 = vsel %vm316, %v802, 0
    %836 = vmatprep.subr.mxu0 %v267
    %837 = vmatpush1.msra.mxu0 %v266
    %838 = vmatprep.subr.mxu0 %v269
    %839 = vmatpush1.msra.mxu0 %v268
    %840 = vmatprep.subr.mxu0 %v271
    %841 = vmatpush1.msra.mxu0 %v270
    %842 = vmatprep.subr.mxu0 %v273
    %843 = vmatpush1.msra.mxu0 %v272
    %844 = vmatprep.subr.mxu0 %v275
    %845 = vmatpush1.msra.mxu0 %v274
    %846 = vmatprep.subr.mxu0 %v277
    %847 = vmatpush1.msra.mxu0 %v276
    %848 = vmatprep.subr.mxu0 %v279
    %849 = vmatpush1.msra.mxu0 %v278
    %850 = vmatprep.subr.mxu0 %v281
    %851 = vmatpush1.msra.mxu0 %v280
    %852 = vmatprep.subr.mxu0 %v283
    %853 = vmatpush1.msra.mxu0 %v282
    %854 = vmatprep.subr.mxu0 %v285
    %855 = vmatpush1.msra.mxu0 %v284
    %856 = vmatprep.subr.mxu0 %v287
    %857 = vmatpush1.msra.mxu0 %v286
    %858 = vmatprep.subr.mxu0 %v289
    %859 = vmatpush1.msra.mxu0 %v288
    %860 = vmatprep.subr.mxu0 %v291
    %861 = vmatpush1.msra.mxu0 %v290
    %862 = vmatprep.subr.mxu0 %v293
    %863 = vmatpush1.msra.mxu0 %v292
    %864 = vmatprep.subr.mxu0 %v295
    %865 = vmatpush1.msra.mxu0 %v294
    %866 = vmatprep.subr.mxu0 %v297
    %867 = vmatpush1.msra.mxu0 %v296
    %868 = vmatprep.subr.mxu0 %v299
    %869 = vmatpush1.msra.mxu0 %v298
    %870 = vmatprep.subr.mxu0 0.0
    %871 = vmatpush1.msra.mxu0 0.0
    %872 = vmatprep.subr.mxu0 0.0
    %873 = vmatpush1.msra.mxu0 0.0
    %874 = vmatprep.subr.mxu0 0.0
    %875 = vmatpush1.msra.mxu0 0.0
    %876 = vmatprep.subr.mxu0 0.0
    %877 = vmatpush1.msra.mxu0 0.0
    %878 = vmatprep.subr.mxu0 0.0
    %879 = vmatpush1.msra.mxu0 0.0
    %880 = vmatprep.subr.mxu0 0.0
    %881 = vmatpush1.msra.mxu0 0.0
    %882 = vmatprep.subr.mxu0 0.0
    %883 = vmatpush1.msra.mxu0 0.0
    %884 = vmatprep.subr.mxu0 0.0
    %885 = vmatpush1.msra.mxu0 0.0
    %886 = vmatprep.subr.mxu0 0.0
    %887 = vmatpush1.msra.mxu0 0.0
    %888 = vmatprep.subr.mxu0 0.0
    %889 = vmatpush1.msra.mxu0 0.0
    %890 = vmatprep.subr.mxu0 0.0
    %891 = vmatpush1.msra.mxu0 0.0
    %892 = vmatprep.subr.mxu0 0.0
    %893 = vmatpush1.msra.mxu0 0.0
    %894 = vmatprep.subr.mxu0 0.0
    %895 = vmatpush1.msra.mxu0 0.0
    %896 = vmatprep.subr.mxu0 0.0
    %897 = vmatpush1.msra.mxu0 0.0
    %898 = vmatprep.subr.mxu0 0.0
    %899 = vmatpush1.msra.mxu0 0.0
    %900 = vmatprep.mubr.f32.mxu0 %v834
    %901 = vmatmul.mubr.f32.gmra.mrb[0].mxu0 %v801
    %v902 = vpop.f32.mrb[0].mxu0
    %v903 = vadd.f32 0.0, %v902
    %v904 = vpop.f32.mrb[0].mxu0
    %v905 = vadd.f32 0.0, %v904
    %906 = vdwg.mxu0
    %v907 = vmul.f32 %v311, %v903
    %v908 = vmul.f32 %v312, %v905
    %s909 = smul.f32 %s831, 2.0
    %v910 = vmul.f32 %v307, %v801
    %v911 = vmul.f32 %v308, %v802
    %v912 = vstv %s909
    %v913 = vmul.f32 %v912, %v910
    %v914 = vmul.f32 %v912, %v911
    %v915 = vsub.f32 %v907, %v913
    %v916 = vsub.f32 %v908, %v914
    %v917 = vsub.f32 %v915, %v409
    %v918 = vsub.f32 %v916, %v410
    %v919 = vstv %s830
    %v920 = vmul.f32 %v919, %v917
    %v921 = vmul.f32 %v919, %v918
    %v922 = vadd.f32 %v801, %v920
    %v923 = vadd.f32 %v802, %v921
    %vm924 = vcmp.gt.f32.partialorder %v922, 0.0001
    %v925 = vsel %vm924, 1, 0
    %v926 = vcvt.s32.f32 %v925
    %vm927 = vcmp.gt.f32.partialorder %v265, 0.0001
    %v928 = vsel %vm927, 1, 0
    %v929 = vcvt.s32.f32 %v928
    %v931 = vrot.slane %v926, 1
    %v934 = vrot.slane %v929, 1
    %v936 = vld [vmem:[%s11] sm:$0xff]
    %v937 = vld [vmem:[%s11 + $0x8] sm:$0xff]
    %v938 = vld [vmem:[%s11 + $0x10] sm:$0xff]
    %v939 = vld [vmem:[%s11 + $0x18] sm:$0xff]
    %v940 = vld [vmem:[%s11 + $0x20] sm:$0xff]
    %v941 = vld [vmem:[%s11 + $0x28] sm:$0xff]
    %v942 = vld [vmem:[%s11 + $0x30] sm:$0xff]
    %v943 = vld [vmem:[%s11 + $0x38] sm:$0xff]
    %v944 = vld [vmem:[%s11 + $0x40] sm:$0xff]
    %v945 = vld [vmem:[%s11 + $0x48] sm:$0xff]
    %v946 = vld [vmem:[%s11 + $0x50] sm:$0xff]
    %v947 = vld [vmem:[%s11 + $0x58] sm:$0xff]
    %v948 = vld [vmem:[%s11 + $0x60] sm:$0xff]
    %v949 = vld [vmem:[%s11 + $0x68] sm:$0xff]
    %v950 = vld [vmem:[%s11 + $0x70] sm:$0xff]
    %v951 = vld [vmem:[%s11 + $0x78] sm:$0xff]
    %v952 = vlaneseq
    %v953 = vshrl.u32 %v952, 7
    %v954 = vsub.s32 0, %v953
    %v955 = vrot.slane %v926, %v954
    %v956 = vlaneseq
    %v957 = vshrl.u32 %v956, 7
    %v958 = vsub.s32 0, %v957
    %v959 = vrot.slane %v931, %v958
    %v960 = vlaneseq
    %v961 = vshrl.u32 %v960, 7
    %v962 = vsub.s32 0, %v961
    %v963 = vrot.slane %v929, %v962
    %v964 = vlaneseq
    %v965 = vshrl.u32 %v964, 7
    %v966 = vsub.s32 0, %v965
    %v967 = vrot.slane %v934, %v966
    %v968 = vmul.f32 %v936, %v955
    %v969 = vmul.f32 %v937, %v959
    %v970 = vmul.f32 %v938, %v963
    %v971 = vmul.f32 %v939, %v967
    %v972 = vmul.f32 %v940, %v955
    %v973 = vmul.f32 %v941, %v959
    %v974 = vmul.f32 %v942, %v963
    %v975 = vmul.f32 %v943, %v967
    %v976 = vmul.f32 %v944, %v955
    %v977 = vmul.f32 %v945, %v959
    %v978 = vmul.f32 %v946, %v963
    %v979 = vmul.f32 %v947, %v967
    %v980 = vmul.f32 %v948, %v955
    %v981 = vmul.f32 %v949, %v959
    %v982 = vmul.f32 %v950, %v963
    %v983 = vmul.f32 %v951, %v967
    %v984 = vld [vmem:[%s13] sm:$0xff]
    %v985 = vld [vmem:[%s13 + $0x8] sm:$0xff]
    %v986 = vld [vmem:[%s13 + $0x10] sm:$0xff]
    %v987 = vld [vmem:[%s13 + $0x18] sm:$0xff]
    %v988 = vld [vmem:[%s13 + $0x20] sm:$0xff]
    %v989 = vld [vmem:[%s13 + $0x28] sm:$0xff]
    %v990 = vld [vmem:[%s13 + $0x30] sm:$0xff]
    %v991 = vld [vmem:[%s13 + $0x38] sm:$0xff]
    %v992 = vld [vmem:[%s13 + $0x40] sm:$0xff]
    %v993 = vld [vmem:[%s13 + $0x48] sm:$0xff]
    %v994 = vld [vmem:[%s13 + $0x50] sm:$0xff]
    %v995 = vld [vmem:[%s13 + $0x58] sm:$0xff]
    %v996 = vld [vmem:[%s13 + $0x60] sm:$0xff]
    %v997 = vld [vmem:[%s13 + $0x68] sm:$0xff]
    %v998 = vld [vmem:[%s13 + $0x70] sm:$0xff]
    %v999 = vld [vmem:[%s13 + $0x78] sm:$0xff]
    %v1000 = vld [vmem:[%s13 + $0x80] sm:$0xff]
    %v1001 = vld [vmem:[%s13 + $0x88] sm:$0xff]
    %v1002 = vld [vmem:[%s13 + $0x90] sm:$0xff]
    %v1003 = vld [vmem:[%s13 + $0x98] sm:$0xff]
    %v1004 = vld [vmem:[%s13 + $0xa0] sm:$0xff]
    %v1005 = vld [vmem:[%s13 + $0xa8] sm:$0xff]
    %v1006 = vld [vmem:[%s13 + $0xb0] sm:$0xff]
    %v1007 = vld [vmem:[%s13 + $0xb8] sm:$0xff]
    %v1008 = vld [vmem:[%s13 + $0xc0] sm:$0xff]
    %v1009 = vld [vmem:[%s13 + $0xc8] sm:$0xff]
    %v1010 = vld [vmem:[%s13 + $0xd0] sm:$0xff]
    %v1011 = vld [vmem:[%s13 + $0xd8] sm:$0xff]
    %v1012 = vld [vmem:[%s13 + $0xe0] sm:$0xff]
    %v1013 = vld [vmem:[%s13 + $0xe8] sm:$0xff]
    %v1014 = vld [vmem:[%s13 + $0xf0] sm:$0xff]
    %v1015 = vld [vmem:[%s13 + $0xf8] sm:$0xff]
    %v1016 = vld [vmem:[%s13 + $0x100] sm:$0xff]
    %v1017 = vld [vmem:[%s13 + $0x108] sm:$0xff]
    %v1018 = vld [vmem:[%s13 + $0x110] sm:$0xff]
    %v1019 = vld [vmem:[%s13 + $0x118] sm:$0xff]
    %v1020 = vld [vmem:[%s13 + $0x120] sm:$0xff]
    %v1021 = vld [vmem:[%s13 + $0x128] sm:$0xff]
    %v1022 = vld [vmem:[%s13 + $0x130] sm:$0xff]
    %v1023 = vld [vmem:[%s13 + $0x138] sm:$0xff]
    %v1024 = vld [vmem:[%s13 + $0x140] sm:$0xff]
    %v1025 = vld [vmem:[%s13 + $0x148] sm:$0xff]
    %v1026 = vld [vmem:[%s13 + $0x150] sm:$0xff]
    %v1027 = vld [vmem:[%s13 + $0x158] sm:$0xff]
    %v1028 = vld [vmem:[%s13 + $0x160] sm:$0xff]
    %v1029 = vld [vmem:[%s13 + $0x168] sm:$0xff]
    %v1030 = vld [vmem:[%s13 + $0x170] sm:$0xff]
    %v1031 = vld [vmem:[%s13 + $0x178] sm:$0xff]
    %v1032 = vld [vmem:[%s13 + $0x180] sm:$0xff]
    %v1033 = vld [vmem:[%s13 + $0x188] sm:$0xff]
    %v1034 = vld [vmem:[%s13 + $0x190] sm:$0xff]
    %v1035 = vld [vmem:[%s13 + $0x198] sm:$0xff]
    %v1036 = vld [vmem:[%s13 + $0x1a0] sm:$0xff]
    %v1037 = vld [vmem:[%s13 + $0x1a8] sm:$0xff]
    %v1038 = vld [vmem:[%s13 + $0x1b0] sm:$0xff]
    %v1039 = vld [vmem:[%s13 + $0x1b8] sm:$0xff]
    %v1040 = vld [vmem:[%s13 + $0x1c0] sm:$0xff]
    %v1041 = vld [vmem:[%s13 + $0x1c8] sm:$0xff]
    %v1042 = vld [vmem:[%s13 + $0x1d0] sm:$0xff]
    %v1043 = vld [vmem:[%s13 + $0x1d8] sm:$0xff]
    %v1044 = vld [vmem:[%s13 + $0x1e0] sm:$0xff]
    %v1045 = vld [vmem:[%s13 + $0x1e8] sm:$0xff]
    %v1046 = vld [vmem:[%s13 + $0x1f0] sm:$0xff]
    %v1047 = vld [vmem:[%s13 + $0x1f8] sm:$0xff]
    %1048 = vmatprep.subr.mxu0 0.0
    %1049 = vmatpush1.msra.mxu0 %v984
    %1050 = vmatprep.subr.mxu0 0.0
    %1051 = vmatpush1.msra.mxu0 %v985
    %1052 = vmatprep.subr.mxu0 0.0
    %1053 = vmatpush1.msra.mxu0 %v986
    %1054 = vmatprep.subr.mxu0 0.0
    %1055 = vmatpush1.msra.mxu0 %v987
    %1056 = vmatprep.subr.mxu0 0.0
    %1057 = vmatpush1.msra.mxu0 %v988
    %1058 = vmatprep.subr.mxu0 0.0
    %1059 = vmatpush1.msra.mxu0 %v989
    %1060 = vmatprep.subr.mxu0 0.0
    %1061 = vmatpush1.msra.mxu0 %v990
    %1062 = vmatprep.subr.mxu0 0.0
    %1063 = vmatpush1.msra.mxu0 %v991
    %1064 = vmatprep.subr.mxu0 0.0
    %1065 = vmatpush1.msra.mxu0 %v992
    %1066 = vmatprep.subr.mxu0 0.0
    %1067 = vmatpush1.msra.mxu0 %v993
    %1068 = vmatprep.subr.mxu0 0.0
    %1069 = vmatpush1.msra.mxu0 %v994
    %1070 = vmatprep.subr.mxu0 0.0
    %1071 = vmatpush1.msra.mxu0 %v995
    %1072 = vmatprep.subr.mxu0 0.0
    %1073 = vmatpush1.msra.mxu0 %v996
    %1074 = vmatprep.subr.mxu0 0.0
    %1075 = vmatpush1.msra.mxu0 %v997
    %1076 = vmatprep.subr.mxu0 0.0
    %1077 = vmatpush1.msra.mxu0 %v998
    %1078 = vmatprep.subr.mxu0 0.0
    %1079 = vmatpush1.msra.mxu0 %v999
    %1080 = vmatprep.subr.mxu0 0.0
    %1081 = vmatpush1.msra.mxu0 %v1000
    %1082 = vmatprep.subr.mxu0 0.0
    %1083 = vmatpush1.msra.mxu0 %v1001
    %1084 = vmatprep.subr.mxu0 0.0
    %1085 = vmatpush1.msra.mxu0 %v1002
    %1086 = vmatprep.subr.mxu0 0.0
    %1087 = vmatpush1.msra.mxu0 %v1003
    %1088 = vmatprep.subr.mxu0 0.0
    %1089 = vmatpush1.msra.mxu0 %v1004
    %1090 = vmatprep.subr.mxu0 0.0
    %1091 = vmatpush1.msra.mxu0 %v1005
    %1092 = vmatprep.subr.mxu0 0.0
    %1093 = vmatpush1.msra.mxu0 %v1006
    %1094 = vmatprep.subr.mxu0 0.0
    %1095 = vmatpush1.msra.mxu0 %v1007
    %1096 = vmatprep.subr.mxu0 0.0
    %1097 = vmatpush1.msra.mxu0 %v1008
    %1098 = vmatprep.subr.mxu0 0.0
    %1099 = vmatpush1.msra.mxu0 %v1009
    %1100 = vmatprep.subr.mxu0 0.0
    %1101 = vmatpush1.msra.mxu0 %v1010
    %1102 = vmatprep.subr.mxu0 0.0
    %1103 = vmatpush1.msra.mxu0 %v1011
    %1104 = vmatprep.subr.mxu0 0.0
    %1105 = vmatpush1.msra.mxu0 %v1012
    %1106 = vmatprep.subr.mxu0 0.0
    %1107 = vmatpush1.msra.mxu0 %v1013
    %1108 = vmatprep.subr.mxu0 0.0
    %1109 = vmatpush1.msra.mxu0 %v1014
    %1110 = vmatprep.subr.mxu0 0.0
    %1111 = vmatpush1.msra.mxu0 %v1015
    %1112 = vmatprep.mubr.f32.mxu0 %v969
    %1113 = vmatmul.mubr.f32.gmra.mrb[0].mxu0 %v968
    %v1114 = vpop.f32.mrb[0].mxu0
    %v1115 = vadd.f32 0.0, %v1114
    %v1116 = vpop.f32.mrb[0].mxu0
    %1117 = vmatprep.mubr.f32.mxu0 %v973
    %1118 = vmatmul.mubr.f32.gmra.mrb[0].mxu0 %v972
    %v1119 = vpop.f32.mrb[0].mxu0
    %v1120 = vadd.f32 0.0, %v1119
    %v1121 = vpop.f32.mrb[0].mxu0
    %1122 = vmatprep.mubr.f32.mxu0 %v977
    %1123 = vmatmul.mubr.f32.gmra.mrb[0].mxu0 %v976
    %v1124 = vpop.f32.mrb[0].mxu0
    %v1125 = vadd.f32 0.0, %v1124
    %v1126 = vpop.f32.mrb[0].mxu0
    %1127 = vmatprep.mubr.f32.mxu0 %v981
    %1128 = vmatmul.mubr.f32.gmra.mrb[0].mxu0 %v980
    %v1129 = vpop.f32.mrb[0].mxu0
    %v1130 = vadd.f32 0.0, %v1129
    %v1131 = vpop.f32.mrb[0].mxu0
    %1132 = vdwg.mxu0
    %1133 = vmatprep.subr.mxu0 0.0
    %1134 = vmatpush1.msra.mxu0 %v1016
    %1135 = vmatprep.subr.mxu0 0.0
    %1136 = vmatpush1.msra.mxu0 %v1017
    %1137 = vmatprep.subr.mxu0 0.0
    %1138 = vmatpush1.msra.mxu0 %v1018
    %1139 = vmatprep.subr.mxu0 0.0
    %1140 = vmatpush1.msra.mxu0 %v1019
    %1141 = vmatprep.subr.mxu0 0.0
    %1142 = vmatpush1.msra.mxu0 %v1020
    %1143 = vmatprep.subr.mxu0 0.0
    %1144 = vmatpush1.msra.mxu0 %v1021
    %1145 = vmatprep.subr.mxu0 0.0
    %1146 = vmatpush1.msra.mxu0 %v1022
    %1147 = vmatprep.subr.mxu0 0.0
    %1148 = vmatpush1.msra.mxu0 %v1023
    %1149 = vmatprep.subr.mxu0 0.0
    %1150 = vmatpush1.msra.mxu0 %v1024
    %1151 = vmatprep.subr.mxu0 0.0
    %1152 = vmatpush1.msra.mxu0 %v1025
    %1153 = vmatprep.subr.mxu0 0.0
    %1154 = vmatpush1.msra.mxu0 %v1026
    %1155 = vmatprep.subr.mxu0 0.0
    %1156 = vmatpush1.msra.mxu0 %v1027
    %1157 = vmatprep.subr.mxu0 0.0
    %1158 = vmatpush1.msra.mxu0 %v1028
    %1159 = vmatprep.subr.mxu0 0.0
    %1160 = vmatpush1.msra.mxu0 %v1029
    %1161 = vmatprep.subr.mxu0 0.0
    %1162 = vmatpush1.msra.mxu0 %v1030
    %1163 = vmatprep.subr.mxu0 0.0
    %1164 = vmatpush1.msra.mxu0 %v1031
    %1165 = vmatprep.subr.mxu0 0.0
    %1166 = vmatpush1.msra.mxu0 %v1032
    %1167 = vmatprep.subr.mxu0 0.0
    %1168 = vmatpush1.msra.mxu0 %v1033
    %1169 = vmatprep.subr.mxu0 0.0
    %1170 = vmatpush1.msra.mxu0 %v1034
    %1171 = vmatprep.subr.mxu0 0.0
    %1172 = vmatpush1.msra.mxu0 %v1035
    %1173 = vmatprep.subr.mxu0 0.0
    %1174 = vmatpush1.msra.mxu0 %v1036
    %1175 = vmatprep.subr.mxu0 0.0
    %1176 = vmatpush1.msra.mxu0 %v1037
    %1177 = vmatprep.subr.mxu0 0.0
    %1178 = vmatpush1.msra.mxu0 %v1038
    %1179 = vmatprep.subr.mxu0 0.0
    %1180 = vmatpush1.msra.mxu0 %v1039
    %1181 = vmatprep.subr.mxu0 0.0
    %1182 = vmatpush1.msra.mxu0 %v1040
    %1183 = vmatprep.subr.mxu0 0.0
    %1184 = vmatpush1.msra.mxu0 %v1041
    %1185 = vmatprep.subr.mxu0 0.0
    %1186 = vmatpush1.msra.mxu0 %v1042
    %1187 = vmatprep.subr.mxu0 0.0
    %1188 = vmatpush1.msra.mxu0 %v1043
    %1189 = vmatprep.subr.mxu0 0.0
    %1190 = vmatpush1.msra.mxu0 %v1044
    %1191 = vmatprep.subr.mxu0 0.0
    %1192 = vmatpush1.msra.mxu0 %v1045
    %1193 = vmatprep.subr.mxu0 0.0
    %1194 = vmatpush1.msra.mxu0 %v1046
    %1195 = vmatprep.subr.mxu0 0.0
    %1196 = vmatpush1.msra.mxu0 %v1047
    %1197 = vmatprep.mubr.f32.mxu0 %v971
    %1198 = vmatmul.mubr.f32.gmra.mrb[0].mxu0 %v970
    %v1199 = vpop.f32.mrb[0].mxu0
    %v1200 = vadd.f32 %v1115, %v1199
    %v1201 = vpop.f32.mrb[0].mxu0
    %1202 = vmatprep.mubr.f32.mxu0 %v975
    %1203 = vmatmul.mubr.f32.gmra.mrb[0].mxu0 %v974
    %v1204 = vpop.f32.mrb[0].mxu0
    %v1205 = vadd.f32 %v1120, %v1204
    %v1206 = vpop.f32.mrb[0].mxu0
    %1207 = vmatprep.mubr.f32.mxu0 %v979
    %1208 = vmatmul.mubr.f32.gmra.mrb[0].mxu0 %v978
    %v1209 = vpop.f32.mrb[0].mxu0
    %v1210 = vadd.f32 %v1125, %v1209
    %v1211 = vpop.f32.mrb[0].mxu0
    %1212 = vmatprep.mubr.f32.mxu0 %v983
    %1213 = vmatmul.mubr.f32.gmra.mrb[0].mxu0 %v982
    %v1214 = vpop.f32.mrb[0].mxu0
    %v1215 = vadd.f32 %v1130, %v1214
    %v1216 = vpop.f32.mrb[0].mxu0
    %1217 = vdwg.mxu0
    %1218 = vxpose.xlu0.b32.start [1/16] %v1200, 128
    %1219 = vxpose.xlu0.b32.cont [2/16] %v1205, 128
    %1220 = vxpose.xlu0.b32.cont [3/16] %v1210, 128
    %1221 = vxpose.xlu0.b32.cont [4/16] %v1215, 128
    %1222 = vxpose.xlu0.b32.cont [5/16] 0.0, 128
    %1223 = vxpose.xlu0.b32.cont [6/16] 0.0, 128
    %1224 = vxpose.xlu0.b32.cont [7/16] 0.0, 128
    %1225 = vxpose.xlu0.b32.cont [8/16] 0.0, 128
    %1226 = vxpose.xlu0.b32.cont [9/16] 0.0, 128
    %1227 = vxpose.xlu0.b32.cont [10/16] 0.0, 128
    %1228 = vxpose.xlu0.b32.cont [11/16] 0.0, 128
    %1229 = vxpose.xlu0.b32.cont [12/16] 0.0, 128
    %1230 = vxpose.xlu0.b32.cont [13/16] 0.0, 128
    %1231 = vxpose.xlu0.b32.cont [14/16] 0.0, 128
    %1232 = vxpose.xlu0.b32.cont [15/16] 0.0, 128
    %1233 = vxpose.xlu0.b32.end [16/16] 0.0, 128
    %v1234 = vpop.trf.xlu0
    %v1235 = vpop.trf.xlu0
    %v1236 = vpop.trf.xlu0
    %v1237 = vpop.trf.xlu0
    %v1238 = vpop.trf.xlu0
    %v1239 = vpop.trf.xlu0
    %v1240 = vpop.trf.xlu0
    %v1241 = vpop.trf.xlu0
    %v1242 = vpop.trf.xlu0
    %v1243 = vpop.trf.xlu0
    %v1244 = vpop.trf.xlu0
    %v1245 = vpop.trf.xlu0
    %v1246 = vpop.trf.xlu0
    %v1247 = vpop.trf.xlu0
    %v1248 = vpop.trf.xlu0
    %v1249 = vpop.trf.xlu0
    %v1250 = vadd.f32 %v1200, %v1234
    %v1251 = vadd.f32 %v1205, %v1235
    %v1252 = vadd.f32 %v1210, %v1236
    %v1253 = vadd.f32 %v1215, %v1237
    %vm1254 = vcmask 261120
    %v1255 = vsel %vm1254, %v1250, 0.0
    %1256 = vadd.xlane.f32.xlu0 %v1255
    %v1257 = vpop.xlane.xlu0 %1256
    %v1258 = vsel %vm1254, %v1251, 0.0
    %1259 = vadd.xlane.f32.xlu0 %v1258
    %v1260 = vpop.xlane.xlu0 %1259
    %v1261 = vsel %vm1254, %v1252, 0.0
    %1262 = vadd.xlane.f32.xlu0 %v1261
    %v1263 = vpop.xlane.xlu0 %1262
    %v1264 = vsel %vm1254, %v1253, 0.0
    %1265 = vadd.xlane.f32.xlu0 %v1264
    %v1266 = vpop.xlane.xlu0 %1265
    %v1267 = vld [vmem:[#allocation7] sm:$0x1]
    %v1269 = vlaneseq
    %v1270 = vshrl.u32 %v1269, 7
    %v1271 = vsub.s32 0, %v1270
    %v1272 = vrot.slane %v1267, %v1271
    %v1274 = vmul.f32 %v1257, %v1272
    %v1275 = vmul.f32 %v1260, %v1272
    %v1276 = vmul.f32 %v1263, %v1272
    %v1277 = vmul.f32 %v1266, %v1272
    %v1278 = vld [vmem:[#allocation9] sm:$0x1]
    %v1280 = vlaneseq
    %v1281 = vshrl.u32 %v1280, 7
    %v1282 = vsub.s32 0, %v1281
    %v1283 = vrot.slane %v1278, %v1282
    %v1286 = vsel %vm1254, %v1250, 0
    %v1289 = vsel %vm1254, %v1251, 0
    %v1292 = vsel %vm1254, %v1252, 0
    %v1295 = vsel %vm1254, %v1253, 0
    %1297 = vmatprep.subr.mxu0 0.0
    %1298 = vmatpush1.msra.mxu0 %v1274
    %1299 = vmatprep.subr.mxu0 0.0
    %1300 = vmatpush1.msra.mxu0 %v1275
    %1301 = vmatprep.subr.mxu0 0.0
    %1302 = vmatpush1.msra.mxu0 %v1276
    %1303 = vmatprep.subr.mxu0 0.0
    %1304 = vmatpush1.msra.mxu0 %v1277
    %1305 = vmatprep.subr.mxu0 0.0
    %1306 = vmatpush1.msra.mxu0 0.0
    %1307 = vmatprep.subr.mxu0 0.0
    %1308 = vmatpush1.msra.mxu0 0.0
    %1309 = vmatprep.subr.mxu0 0.0
    %1310 = vmatpush1.msra.mxu0 0.0
    %1311 = vmatprep.subr.mxu0 0.0
    %1312 = vmatpush1.msra.mxu0 0.0
    %1313 = vmatprep.subr.mxu0 0.0
    %1314 = vmatpush1.msra.mxu0 0.0
    %1315 = vmatprep.subr.mxu0 0.0
    %1316 = vmatpush1.msra.mxu0 0.0
    %1317 = vmatprep.subr.mxu0 0.0
    %1318 = vmatpush1.msra.mxu0 0.0
    %1319 = vmatprep.subr.mxu0 0.0
    %1320 = vmatpush1.msra.mxu0 0.0
    %1321 = vmatprep.subr.mxu0 0.0
    %1322 = vmatpush1.msra.mxu0 0.0
    %1323 = vmatprep.subr.mxu0 0.0
    %1324 = vmatpush1.msra.mxu0 0.0
    %1325 = vmatprep.subr.mxu0 0.0
    %1326 = vmatpush1.msra.mxu0 0.0
    %1327 = vmatprep.subr.mxu0 0.0
    %1328 = vmatpush1.msra.mxu0 0.0
    %1329 = vmatprep.subr.mxu0 0.0
    %1330 = vmatpush1.msra.mxu0 0.0
    %1331 = vmatprep.subr.mxu0 0.0
    %1332 = vmatpush1.msra.mxu0 0.0
    %1333 = vmatprep.subr.mxu0 0.0
    %1334 = vmatpush1.msra.mxu0 0.0
    %1335 = vmatprep.subr.mxu0 0.0
    %1336 = vmatpush1.msra.mxu0 0.0
    %1337 = vmatprep.subr.mxu0 0.0
    %1338 = vmatpush1.msra.mxu0 0.0
    %1339 = vmatprep.subr.mxu0 0.0
    %1340 = vmatpush1.msra.mxu0 0.0
    %1341 = vmatprep.subr.mxu0 0.0
    %1342 = vmatpush1.msra.mxu0 0.0
    %1343 = vmatprep.subr.mxu0 0.0
    %1344 = vmatpush1.msra.mxu0 0.0
    %1345 = vmatprep.subr.mxu0 0.0
    %1346 = vmatpush1.msra.mxu0 0.0
    %1347 = vmatprep.subr.mxu0 0.0
    %1348 = vmatpush1.msra.mxu0 0.0
    %1349 = vmatprep.subr.mxu0 0.0
    %1350 = vmatpush1.msra.mxu0 0.0
    %1351 = vmatprep.subr.mxu0 0.0
    %1352 = vmatpush1.msra.mxu0 0.0
    %1353 = vmatprep.subr.mxu0 0.0
    %1354 = vmatpush1.msra.mxu0 0.0
    %1355 = vmatprep.subr.mxu0 0.0
    %1356 = vmatpush1.msra.mxu0 0.0
    %1357 = vmatprep.subr.mxu0 0.0
    %1358 = vmatpush1.msra.mxu0 0.0
    %1359 = vmatprep.subr.mxu0 0.0
    %1360 = vmatpush1.msra.mxu0 0.0
    %1361 = vmatprep.mubr.f32.mxu0 0.0
    %1362 = vmatmul.mubr.f32.gmra.mrb[0].mxu0 %v1286
    %v1363 = vpop.f32.mrb[0].mxu0
    %v1364 = vadd.f32 %v1283, %v1363
    %v1365 = vpop.f32.mrb[0].mxu0
    %1366 = vmatprep.mubr.f32.mxu0 0.0
    %1367 = vmatmul.mubr.f32.gmra.mrb[0].mxu0 %v1289
    %v1368 = vpop.f32.mrb[0].mxu0
    %v1369 = vadd.f32 %v1283, %v1368
    %v1370 = vpop.f32.mrb[0].mxu0
    %1371 = vmatprep.mubr.f32.mxu0 0.0
    %1372 = vmatmul.mubr.f32.gmra.mrb[0].mxu0 %v1292
    %v1373 = vpop.f32.mrb[0].mxu0
    %v1374 = vadd.f32 %v1283, %v1373
    %v1375 = vpop.f32.mrb[0].mxu0
    %1376 = vmatprep.mubr.f32.mxu0 0.0
    %1377 = vmatmul.mubr.f32.gmra.mrb[0].mxu0 %v1295
    %v1378 = vpop.f32.mrb[0].mxu0
    %v1379 = vadd.f32 %v1283, %v1378
    %v1380 = vpop.f32.mrb[0].mxu0
    %1381 = vdwg.mxu0
    %v1382 = vmax.f32 %v1364, 0.0
    %v1383 = vmax.f32 %v1369, 0.0
    %v1384 = vmax.f32 %v1374, 0.0
    %v1385 = vmax.f32 %v1379, 0.0
    %v1386 = vld [vmem:[%s21] sm:$0xff]
    %v1387 = vld [vmem:[%s21 + $0x8] sm:$0xff]
    %vm1388 = vcmask 130048
    %v1390 = vsel %vm1388, %v1382, 0
    %v1393 = vsel %vm1388, %v1383, 0
    %v1396 = vsel %vm1388, %v1384, 0
    %v1399 = vsel %vm1388, %v1385, 0
    %1401 = vmatprep.subr.mxu0 0.0
    %1402 = vmatpush1.msra.mxu0 %v1386
    %1403 = vmatprep.subr.mxu0 0.0
    %1404 = vmatpush1.msra.mxu0 %v1387
    %1405 = vmatprep.subr.mxu0 0.0
    %1406 = vmatpush1.msra.mxu0 0.0
    %1407 = vmatprep.subr.mxu0 0.0
    %1408 = vmatpush1.msra.mxu0 0.0
    %1409 = vmatprep.subr.mxu0 0.0
    %1410 = vmatpush1.msra.mxu0 0.0
    %1411 = vmatprep.subr.mxu0 0.0
    %1412 = vmatpush1.msra.mxu0 0.0
    %1413 = vmatprep.subr.mxu0 0.0
    %1414 = vmatpush1.msra.mxu0 0.0
    %1415 = vmatprep.subr.mxu0 0.0
    %1416 = vmatpush1.msra.mxu0 0.0
    %1417 = vmatprep.subr.mxu0 0.0
    %1418 = vmatpush1.msra.mxu0 0.0
    %1419 = vmatprep.subr.mxu0 0.0
    %1420 = vmatpush1.msra.mxu0 0.0
    %1421 = vmatprep.subr.mxu0 0.0
    %1422 = vmatpush1.msra.mxu0 0.0
    %1423 = vmatprep.subr.mxu0 0.0
    %1424 = vmatpush1.msra.mxu0 0.0
    %1425 = vmatprep.subr.mxu0 0.0
    %1426 = vmatpush1.msra.mxu0 0.0
    %1427 = vmatprep.subr.mxu0 0.0
    %1428 = vmatpush1.msra.mxu0 0.0
    %1429 = vmatprep.subr.mxu0 0.0
    %1430 = vmatpush1.msra.mxu0 0.0
    %1431 = vmatprep.subr.mxu0 0.0
    %1432 = vmatpush1.msra.mxu0 0.0
    %1433 = vmatprep.subr.mxu0 0.0
    %1434 = vmatpush1.msra.mxu0 0.0
    %1435 = vmatprep.subr.mxu0 0.0
    %1436 = vmatpush1.msra.mxu0 0.0
    %1437 = vmatprep.subr.mxu0 0.0
    %1438 = vmatpush1.msra.mxu0 0.0
    %1439 = vmatprep.subr.mxu0 0.0
    %1440 = vmatpush1.msra.mxu0 0.0
    %1441 = vmatprep.subr.mxu0 0.0
    %1442 = vmatpush1.msra.mxu0 0.0
    %1443 = vmatprep.subr.mxu0 0.0
    %1444 = vmatpush1.msra.mxu0 0.0
    %1445 = vmatprep.subr.mxu0 0.0
    %1446 = vmatpush1.msra.mxu0 0.0
    %1447 = vmatprep.subr.mxu0 0.0
    %1448 = vmatpush1.msra.mxu0 0.0
    %1449 = vmatprep.subr.mxu0 0.0
    %1450 = vmatpush1.msra.mxu0 0.0
    %1451 = vmatprep.subr.mxu0 0.0
    %1452 = vmatpush1.msra.mxu0 0.0
    %1453 = vmatprep.subr.mxu0 0.0
    %1454 = vmatpush1.msra.mxu0 0.0
    %1455 = vmatprep.subr.mxu0 0.0
    %1456 = vmatpush1.msra.mxu0 0.0
    %1457 = vmatprep.subr.mxu0 0.0
    %1458 = vmatpush1.msra.mxu0 0.0
    %1459 = vmatprep.subr.mxu0 0.0
    %1460 = vmatpush1.msra.mxu0 0.0
    %1461 = vmatprep.subr.mxu0 0.0
    %1462 = vmatpush1.msra.mxu0 0.0
    %1463 = vmatprep.subr.mxu0 0.0
    %1464 = vmatpush1.msra.mxu0 0.0
    %1465 = vmatprep.mubr.f32.mxu0 0.0
    %1466 = vmatmul.mubr.f32.gmra.mrb[0].mxu0 %v1390
    %v1467 = vpop.f32.mrb[0].mxu0
    %v1468 = vadd.f32 0.0, %v1467
    %v1469 = vpop.f32.mrb[0].mxu0
    %1470 = vmatprep.mubr.f32.mxu0 0.0
    %1471 = vmatmul.mubr.f32.gmra.mrb[0].mxu0 %v1393
    %v1472 = vpop.f32.mrb[0].mxu0
    %v1473 = vadd.f32 0.0, %v1472
    %v1474 = vpop.f32.mrb[0].mxu0
    %1475 = vmatprep.mubr.f32.mxu0 0.0
    %1476 = vmatmul.mubr.f32.gmra.mrb[0].mxu0 %v1396
    %v1477 = vpop.f32.mrb[0].mxu0
    %v1478 = vadd.f32 0.0, %v1477
    %v1479 = vpop.f32.mrb[0].mxu0
    %1480 = vmatprep.mubr.f32.mxu0 0.0
    %1481 = vmatmul.mubr.f32.gmra.mrb[0].mxu0 %v1399
    %v1482 = vpop.f32.mrb[0].mxu0
    %v1483 = vadd.f32 0.0, %v1482
    %v1484 = vpop.f32.mrb[0].mxu0
    %1485 = vdwg.mxu0
    %v1486 = vld [vmem:[#allocation10] sm:$0x1]
    %v1488 = vlaneseq
    %v1489 = vshrl.u32 %v1488, 7
    %v1490 = vsub.s32 0, %v1489
    %v1491 = vrot.slane %v1486, %v1490
    %1493 = vmatprep.subr.mxu0 0.0
    %1494 = vmatpush1.msra.mxu0 %v1468
    %1495 = vmatprep.subr.mxu0 0.0
    %1496 = vmatpush1.msra.mxu0 %v1473
    %1497 = vmatprep.subr.mxu0 0.0
    %1498 = vmatpush1.msra.mxu0 %v1478
    %1499 = vmatprep.subr.mxu0 0.0
    %1500 = vmatpush1.msra.mxu0 %v1483
    %1501 = vmatprep.subr.mxu0 0.0
    %1502 = vmatpush1.msra.mxu0 0.0
    %1503 = vmatprep.subr.mxu0 0.0
    %1504 = vmatpush1.msra.mxu0 0.0
    %1505 = vmatprep.subr.mxu0 0.0
    %1506 = vmatpush1.msra.mxu0 0.0
    %1507 = vmatprep.subr.mxu0 0.0
    %1508 = vmatpush1.msra.mxu0 0.0
    %1509 = vmatprep.subr.mxu0 0.0
    %1510 = vmatpush1.msra.mxu0 0.0
    %1511 = vmatprep.subr.mxu0 0.0
    %1512 = vmatpush1.msra.mxu0 0.0
    %1513 = vmatprep.subr.mxu0 0.0
    %1514 = vmatpush1.msra.mxu0 0.0
    %1515 = vmatprep.subr.mxu0 0.0
    %1516 = vmatpush1.msra.mxu0 0.0
    %1517 = vmatprep.subr.mxu0 0.0
    %1518 = vmatpush1.msra.mxu0 0.0
    %1519 = vmatprep.subr.mxu0 0.0
    %1520 = vmatpush1.msra.mxu0 0.0
    %1521 = vmatprep.subr.mxu0 0.0
    %1522 = vmatpush1.msra.mxu0 0.0
    %1523 = vmatprep.subr.mxu0 0.0
    %1524 = vmatpush1.msra.mxu0 0.0
    %1525 = vmatprep.subr.mxu0 0.0
    %1526 = vmatpush1.msra.mxu0 0.0
    %1527 = vmatprep.subr.mxu0 0.0
    %1528 = vmatpush1.msra.mxu0 0.0
    %1529 = vmatprep.subr.mxu0 0.0
    %1530 = vmatpush1.msra.mxu0 0.0
    %1531 = vmatprep.subr.mxu0 0.0
    %1532 = vmatpush1.msra.mxu0 0.0
    %1533 = vmatprep.subr.mxu0 0.0
    %1534 = vmatpush1.msra.mxu0 0.0
    %1535 = vmatprep.subr.mxu0 0.0
    %1536 = vmatpush1.msra.mxu0 0.0
    %1537 = vmatprep.subr.mxu0 0.0
    %1538 = vmatpush1.msra.mxu0 0.0
    %1539 = vmatprep.subr.mxu0 0.0
    %1540 = vmatpush1.msra.mxu0 0.0
    %1541 = vmatprep.subr.mxu0 0.0
    %1542 = vmatpush1.msra.mxu0 0.0
    %1543 = vmatprep.subr.mxu0 0.0
    %1544 = vmatpush1.msra.mxu0 0.0
    %1545 = vmatprep.subr.mxu0 0.0
    %1546 = vmatpush1.msra.mxu0 0.0
    %1547 = vmatprep.subr.mxu0 0.0
    %1548 = vmatpush1.msra.mxu0 0.0
    %1549 = vmatprep.subr.mxu0 0.0
    %1550 = vmatpush1.msra.mxu0 0.0
    %1551 = vmatprep.subr.mxu0 0.0
    %1552 = vmatpush1.msra.mxu0 0.0
    %1553 = vmatprep.subr.mxu0 0.0
    %1554 = vmatpush1.msra.mxu0 0.0
    %1555 = vmatprep.subr.mxu0 0.0
    %1556 = vmatpush1.msra.mxu0 0.0
    %1557 = vmatprep.mubr.f32.mxu0 0.0
    %1558 = vmatmul.mubr.f32.gmra.mrb[0].mxu0 %v1286
    %v1559 = vpop.f32.mrb[0].mxu0
    %v1560 = vadd.f32 %v1491, %v1559
    %v1561 = vpop.f32.mrb[0].mxu0
    %1562 = vmatprep.mubr.f32.mxu0 0.0
    %1563 = vmatmul.mubr.f32.gmra.mrb[0].mxu0 %v1289
    %v1564 = vpop.f32.mrb[0].mxu0
    %v1565 = vadd.f32 %v1491, %v1564
    %v1566 = vpop.f32.mrb[0].mxu0
    %1567 = vmatprep.mubr.f32.mxu0 0.0
    %1568 = vmatmul.mubr.f32.gmra.mrb[0].mxu0 %v1292
    %v1569 = vpop.f32.mrb[0].mxu0
    %v1570 = vadd.f32 %v1491, %v1569
    %v1571 = vpop.f32.mrb[0].mxu0
    %1572 = vmatprep.mubr.f32.mxu0 0.0
    %1573 = vmatmul.mubr.f32.gmra.mrb[0].mxu0 %v1295
    %v1574 = vpop.f32.mrb[0].mxu0
    %v1575 = vadd.f32 %v1491, %v1574
    %v1576 = vpop.f32.mrb[0].mxu0
    %1577 = vdwg.mxu0
    %v1578 = vmax.f32 %v1560, 0.0
    %v1579 = vmax.f32 %v1565, 0.0
    %v1580 = vmax.f32 %v1570, 0.0
    %v1581 = vmax.f32 %v1575, 0.0
    %v1582 = vld [vmem:[%s15] sm:$0xf]
    %v1584 = vsel %vm1254, %v1582, 0
    %1586 = vmatprep.subr.mxu0 0.0
    %1587 = vmatpush1.msra.mxu0 %v1578
    %1588 = vmatprep.subr.mxu0 0.0
    %1589 = vmatpush1.msra.mxu0 %v1579
    %1590 = vmatprep.subr.mxu0 0.0
    %1591 = vmatpush1.msra.mxu0 %v1580
    %1592 = vmatprep.subr.mxu0 0.0
    %1593 = vmatpush1.msra.mxu0 %v1581
    %1594 = vmatprep.subr.mxu0 0.0
    %1595 = vmatpush1.msra.mxu0 0.0
    %1596 = vmatprep.subr.mxu0 0.0
    %1597 = vmatpush1.msra.mxu0 0.0
    %1598 = vmatprep.subr.mxu0 0.0
    %1599 = vmatpush1.msra.mxu0 0.0
    %1600 = vmatprep.subr.mxu0 0.0
    %1601 = vmatpush1.msra.mxu0 0.0
    %1602 = vmatprep.subr.mxu0 0.0
    %1603 = vmatpush1.msra.mxu0 0.0
    %1604 = vmatprep.subr.mxu0 0.0
    %1605 = vmatpush1.msra.mxu0 0.0
    %1606 = vmatprep.subr.mxu0 0.0
    %1607 = vmatpush1.msra.mxu0 0.0
    %1608 = vmatprep.subr.mxu0 0.0
    %1609 = vmatpush1.msra.mxu0 0.0
    %1610 = vmatprep.subr.mxu0 0.0
    %1611 = vmatpush1.msra.mxu0 0.0
    %1612 = vmatprep.subr.mxu0 0.0
    %1613 = vmatpush1.msra.mxu0 0.0
    %1614 = vmatprep.subr.mxu0 0.0
    %1615 = vmatpush1.msra.mxu0 0.0
    %1616 = vmatprep.subr.mxu0 0.0
    %1617 = vmatpush1.msra.mxu0 0.0
    %1618 = vmatprep.subr.mxu0 0.0
    %1619 = vmatpush1.msra.mxu0 0.0
    %1620 = vmatprep.subr.mxu0 0.0
    %1621 = vmatpush1.msra.mxu0 0.0
    %1622 = vmatprep.subr.mxu0 0.0
    %1623 = vmatpush1.msra.mxu0 0.0
    %1624 = vmatprep.subr.mxu0 0.0
    %1625 = vmatpush1.msra.mxu0 0.0
    %1626 = vmatprep.subr.mxu0 0.0
    %1627 = vmatpush1.msra.mxu0 0.0
    %1628 = vmatprep.subr.mxu0 0.0
    %1629 = vmatpush1.msra.mxu0 0.0
    %1630 = vmatprep.subr.mxu0 0.0
    %1631 = vmatpush1.msra.mxu0 0.0
    %1632 = vmatprep.subr.mxu0 0.0
    %1633 = vmatpush1.msra.mxu0 0.0
    %1634 = vmatprep.subr.mxu0 0.0
    %1635 = vmatpush1.msra.mxu0 0.0
    %1636 = vmatprep.subr.mxu0 0.0
    %1637 = vmatpush1.msra.mxu0 0.0
    %1638 = vmatprep.subr.mxu0 0.0
    %1639 = vmatpush1.msra.mxu0 0.0
    %1640 = vmatprep.subr.mxu0 0.0
    %1641 = vmatpush1.msra.mxu0 0.0
    %1642 = vmatprep.subr.mxu0 0.0
    %1643 = vmatpush1.msra.mxu0 0.0
    %1644 = vmatprep.subr.mxu0 0.0
    %1645 = vmatpush1.msra.mxu0 0.0
    %1646 = vmatprep.subr.mxu0 0.0
    %1647 = vmatpush1.msra.mxu0 0.0
    %1648 = vmatprep.subr.mxu0 0.0
    %1649 = vmatpush1.msra.mxu0 0.0
    %1650 = vmatprep.mubr.f32.mxu0 0.0
    %1651 = vmatmul.mubr.f32.gmra.mrb[0].mxu0 %v1584
    %v1652 = vpop.f32.mrb[0].mxu0
    %v1653 = vadd.f32 0.0, %v1652
    %v1654 = vpop.f32.mrb[0].mxu0
    %1655 = vdwg.mxu0
    %v1656 = vld [vmem:[%s25] sm:$0xff]
    %v1657 = vld [vmem:[%s25 + $0x8] sm:$0xff]
    %v1658 = vld [vmem:[%s25 + $0x10] sm:$0xff]
    %v1659 = vld [vmem:[%s25 + $0x18] sm:$0xff]
    %v1660 = vld [vmem:[#allocation12] sm:$0x1]
    %v1662 = vlaneseq
    %v1663 = vshrl.u32 %v1662, 7
    %v1664 = vsub.s32 0, %v1663
    %v1665 = vrot.slane %v1660, %v1664
    %v1668 = vsel %vm1254, %v1653, 0
    %1670 = vmatprep.subr.mxu0 0.0
    %1671 = vmatpush1.msra.mxu0 %v1656
    %1672 = vmatprep.subr.mxu0 0.0
    %1673 = vmatpush1.msra.mxu0 %v1657
    %1674 = vmatprep.subr.mxu0 0.0
    %1675 = vmatpush1.msra.mxu0 %v1658
    %1676 = vmatprep.subr.mxu0 0.0
    %1677 = vmatpush1.msra.mxu0 %v1659
    %1678 = vmatprep.subr.mxu0 0.0
    %1679 = vmatpush1.msra.mxu0 0.0
    %1680 = vmatprep.subr.mxu0 0.0
    %1681 = vmatpush1.msra.mxu0 0.0
    %1682 = vmatprep.subr.mxu0 0.0
    %1683 = vmatpush1.msra.mxu0 0.0
    %1684 = vmatprep.subr.mxu0 0.0
    %1685 = vmatpush1.msra.mxu0 0.0
    %1686 = vmatprep.subr.mxu0 0.0
    %1687 = vmatpush1.msra.mxu0 0.0
    %1688 = vmatprep.subr.mxu0 0.0
    %1689 = vmatpush1.msra.mxu0 0.0
    %1690 = vmatprep.subr.mxu0 0.0
    %1691 = vmatpush1.msra.mxu0 0.0
    %1692 = vmatprep.subr.mxu0 0.0
    %1693 = vmatpush1.msra.mxu0 0.0
    %1694 = vmatprep.subr.mxu0 0.0
    %1695 = vmatpush1.msra.mxu0 0.0
    %1696 = vmatprep.subr.mxu0 0.0
    %1697 = vmatpush1.msra.mxu0 0.0
    %1698 = vmatprep.subr.mxu0 0.0
    %1699 = vmatpush1.msra.mxu0 0.0
    %1700 = vmatprep.subr.mxu0 0.0
    %1701 = vmatpush1.msra.mxu0 0.0
    %1702 = vmatprep.subr.mxu0 0.0
    %1703 = vmatpush1.msra.mxu0 0.0
    %1704 = vmatprep.subr.mxu0 0.0
    %1705 = vmatpush1.msra.mxu0 0.0
    %1706 = vmatprep.subr.mxu0 0.0
    %1707 = vmatpush1.msra.mxu0 0.0
    %1708 = vmatprep.subr.mxu0 0.0
    %1709 = vmatpush1.msra.mxu0 0.0
    %1710 = vmatprep.subr.mxu0 0.0
    %1711 = vmatpush1.msra.mxu0 0.0
    %1712 = vmatprep.subr.mxu0 0.0
    %1713 = vmatpush1.msra.mxu0 0.0
    %1714 = vmatprep.subr.mxu0 0.0
    %1715 = vmatpush1.msra.mxu0 0.0
    %1716 = vmatprep.subr.mxu0 0.0
    %1717 = vmatpush1.msra.mxu0 0.0
    %1718 = vmatprep.subr.mxu0 0.0
    %1719 = vmatpush1.msra.mxu0 0.0
    %1720 = vmatprep.subr.mxu0 0.0
    %1721 = vmatpush1.msra.mxu0 0.0
    %1722 = vmatprep.subr.mxu0 0.0
    %1723 = vmatpush1.msra.mxu0 0.0
    %1724 = vmatprep.subr.mxu0 0.0
    %1725 = vmatpush1.msra.mxu0 0.0
    %1726 = vmatprep.subr.mxu0 0.0
    %1727 = vmatpush1.msra.mxu0 0.0
    %1728 = vmatprep.subr.mxu0 0.0
    %1729 = vmatpush1.msra.mxu0 0.0
    %1730 = vmatprep.subr.mxu0 0.0
    %1731 = vmatpush1.msra.mxu0 0.0
    %1732 = vmatprep.subr.mxu0 0.0
    %1733 = vmatpush1.msra.mxu0 0.0
    %1734 = vmatprep.mubr.f32.mxu0 0.0
    %1735 = vmatmul.mubr.f32.gmra.mrb[0].mxu0 %v1668
    %v1736 = vpop.f32.mrb[0].mxu0
    %v1737 = vadd.f32 %v1665, %v1736
    %v1738 = vpop.f32.mrb[0].mxu0
    %1739 = vdwg.mxu0
    %v1740 = vmax.f32 %v1737, 0.0
    %v1741 = vld [vmem:[%s29] sm:$0xff]
    %v1742 = vld [vmem:[%s29 + $0x8] sm:$0xff]
    %v1743 = vld [vmem:[#allocation13] sm:$0x1]
    %v1745 = vlaneseq
    %v1746 = vshrl.u32 %v1745, 7
    %v1747 = vsub.s32 0, %v1746
    %v1748 = vrot.slane %v1743, %v1747
    %v1751 = vsel %vm1388, %v1740, 0
    %1753 = vmatprep.subr.mxu0 0.0
    %1754 = vmatpush1.msra.mxu0 %v1741
    %1755 = vmatprep.subr.mxu0 0.0
    %1756 = vmatpush1.msra.mxu0 %v1742
    %1757 = vmatprep.subr.mxu0 0.0
    %1758 = vmatpush1.msra.mxu0 0.0
    %1759 = vmatprep.subr.mxu0 0.0
    %1760 = vmatpush1.msra.mxu0 0.0
    %1761 = vmatprep.subr.mxu0 0.0
    %1762 = vmatpush1.msra.mxu0 0.0
    %1763 = vmatprep.subr.mxu0 0.0
    %1764 = vmatpush1.msra.mxu0 0.0
    %1765 = vmatprep.subr.mxu0 0.0
    %1766 = vmatpush1.msra.mxu0 0.0
    %1767 = vmatprep.subr.mxu0 0.0
    %1768 = vmatpush1.msra.mxu0 0.0
    %1769 = vmatprep.subr.mxu0 0.0
    %1770 = vmatpush1.msra.mxu0 0.0
    %1771 = vmatprep.subr.mxu0 0.0
    %1772 = vmatpush1.msra.mxu0 0.0
    %1773 = vmatprep.subr.mxu0 0.0
    %1774 = vmatpush1.msra.mxu0 0.0
    %1775 = vmatprep.subr.mxu0 0.0
    %1776 = vmatpush1.msra.mxu0 0.0
    %1777 = vmatprep.subr.mxu0 0.0
    %1778 = vmatpush1.msra.mxu0 0.0
    %1779 = vmatprep.subr.mxu0 0.0
    %1780 = vmatpush1.msra.mxu0 0.0
    %1781 = vmatprep.subr.mxu0 0.0
    %1782 = vmatpush1.msra.mxu0 0.0
    %1783 = vmatprep.subr.mxu0 0.0
    %1784 = vmatpush1.msra.mxu0 0.0
    %1785 = vmatprep.subr.mxu0 0.0
    %1786 = vmatpush1.msra.mxu0 0.0
    %1787 = vmatprep.subr.mxu0 0.0
    %1788 = vmatpush1.msra.mxu0 0.0
    %1789 = vmatprep.subr.mxu0 0.0
    %1790 = vmatpush1.msra.mxu0 0.0
    %1791 = vmatprep.subr.mxu0 0.0
    %1792 = vmatpush1.msra.mxu0 0.0
    %1793 = vmatprep.subr.mxu0 0.0
    %1794 = vmatpush1.msra.mxu0 0.0
    %1795 = vmatprep.subr.mxu0 0.0
    %1796 = vmatpush1.msra.mxu0 0.0
    %1797 = vmatprep.subr.mxu0 0.0
    %1798 = vmatpush1.msra.mxu0 0.0
    %1799 = vmatprep.subr.mxu0 0.0
    %1800 = vmatpush1.msra.mxu0 0.0
    %1801 = vmatprep.subr.mxu0 0.0
    %1802 = vmatpush1.msra.mxu0 0.0
    %1803 = vmatprep.subr.mxu0 0.0
    %1804 = vmatpush1.msra.mxu0 0.0
    %1805 = vmatprep.subr.mxu0 0.0
    %1806 = vmatpush1.msra.mxu0 0.0
    %1807 = vmatprep.subr.mxu0 0.0
    %1808 = vmatpush1.msra.mxu0 0.0
    %1809 = vmatprep.subr.mxu0 0.0
    %1810 = vmatpush1.msra.mxu0 0.0
    %1811 = vmatprep.subr.mxu0 0.0
    %1812 = vmatpush1.msra.mxu0 0.0
    %1813 = vmatprep.subr.mxu0 0.0
    %1814 = vmatpush1.msra.mxu0 0.0
    %1815 = vmatprep.subr.mxu0 0.0
    %1816 = vmatpush1.msra.mxu0 0.0
    %1817 = vmatprep.mubr.f32.mxu0 0.0
    %1818 = vmatmul.mubr.f32.gmra.mrb[0].mxu0 %v1751
    %v1819 = vpop.f32.mrb[0].mxu0
    %v1820 = vadd.f32 %v1748, %v1819
    %v1821 = vpop.f32.mrb[0].mxu0
    %1822 = vdwg.mxu0
    %v1824 = vrot.slane %v1820, 6
    %v1826 = vsub.f32 %v1820, %v1824
    %v1827 = vld [vmem:[%s33] sm:$0xff]
    %v1828 = vld [vmem:[%s33 + $0x8] sm:$0xff]
    %v1829 = vld [vmem:[#allocation15] sm:$0x1]
    %v1831 = vlaneseq
    %v1832 = vshrl.u32 %v1831, 7
    %v1833 = vsub.s32 0, %v1832
    %v1834 = vrot.slane %v1829, %v1833
    %v1837 = vrot.slane %v1826, 2
    %v1838 = vsel %vm1388, %v1837, 0
    %1840 = vmatprep.subr.mxu0 0.0
    %1841 = vmatpush1.msra.mxu0 %v1827
    %1842 = vmatprep.subr.mxu0 0.0
    %1843 = vmatpush1.msra.mxu0 %v1828
    %1844 = vmatprep.subr.mxu0 0.0
    %1845 = vmatpush1.msra.mxu0 0.0
    %1846 = vmatprep.subr.mxu0 0.0
    %1847 = vmatpush1.msra.mxu0 0.0
    %1848 = vmatprep.subr.mxu0 0.0
    %1849 = vmatpush1.msra.mxu0 0.0
    %1850 = vmatprep.subr.mxu0 0.0
    %1851 = vmatpush1.msra.mxu0 0.0
    %1852 = vmatprep.subr.mxu0 0.0
    %1853 = vmatpush1.msra.mxu0 0.0
    %1854 = vmatprep.subr.mxu0 0.0
    %1855 = vmatpush1.msra.mxu0 0.0
    %1856 = vmatprep.subr.mxu0 0.0
    %1857 = vmatpush1.msra.mxu0 0.0
    %1858 = vmatprep.subr.mxu0 0.0
    %1859 = vmatpush1.msra.mxu0 0.0
    %1860 = vmatprep.subr.mxu0 0.0
    %1861 = vmatpush1.msra.mxu0 0.0
    %1862 = vmatprep.subr.mxu0 0.0
    %1863 = vmatpush1.msra.mxu0 0.0
    %1864 = vmatprep.subr.mxu0 0.0
    %1865 = vmatpush1.msra.mxu0 0.0
    %1866 = vmatprep.subr.mxu0 0.0
    %1867 = vmatpush1.msra.mxu0 0.0
    %1868 = vmatprep.subr.mxu0 0.0
    %1869 = vmatpush1.msra.mxu0 0.0
    %1870 = vmatprep.subr.mxu0 0.0
    %1871 = vmatpush1.msra.mxu0 0.0
    %1872 = vmatprep.subr.mxu0 0.0
    %1873 = vmatpush1.msra.mxu0 0.0
    %1874 = vmatprep.subr.mxu0 0.0
    %1875 = vmatpush1.msra.mxu0 0.0
    %1876 = vmatprep.subr.mxu0 0.0
    %1877 = vmatpush1.msra.mxu0 0.0
    %1878 = vmatprep.subr.mxu0 0.0
    %1879 = vmatpush1.msra.mxu0 0.0
    %1880 = vmatprep.subr.mxu0 0.0
    %1881 = vmatpush1.msra.mxu0 0.0
    %1882 = vmatprep.subr.mxu0 0.0
    %1883 = vmatpush1.msra.mxu0 0.0
    %1884 = vmatprep.subr.mxu0 0.0
    %1885 = vmatpush1.msra.mxu0 0.0
    %1886 = vmatprep.subr.mxu0 0.0
    %1887 = vmatpush1.msra.mxu0 0.0
    %1888 = vmatprep.subr.mxu0 0.0
    %1889 = vmatpush1.msra.mxu0 0.0
    %1890 = vmatprep.subr.mxu0 0.0
    %1891 = vmatpush1.msra.mxu0 0.0
    %1892 = vmatprep.subr.mxu0 0.0
    %1893 = vmatpush1.msra.mxu0 0.0
    %1894 = vmatprep.subr.mxu0 0.0
    %1895 = vmatpush1.msra.mxu0 0.0
    %1896 = vmatprep.subr.mxu0 0.0
    %1897 = vmatpush1.msra.mxu0 0.0
    %1898 = vmatprep.subr.mxu0 0.0
    %1899 = vmatpush1.msra.mxu0 0.0
    %1900 = vmatprep.subr.mxu0 0.0
    %1901 = vmatpush1.msra.mxu0 0.0
    %1902 = vmatprep.subr.mxu0 0.0
    %1903 = vmatpush1.msra.mxu0 0.0
    %1904 = vmatprep.mubr.f32.mxu0 0.0
    %1905 = vmatmul.mubr.f32.gmra.mrb[0].mxu0 %v1838
    %v1906 = vpop.f32.mrb[0].mxu0
    %v1907 = vadd.f32 %v1834, %v1906
    %v1908 = vpop.f32.mrb[0].mxu0
    %1909 = vdwg.mxu0
    %v1910 = vld [vmem:[%s37] sm:$0xff]
    %v1911 = vld [vmem:[%s37 + $0x8] sm:$0xff]
    %v1912 = vld [vmem:[#allocation16] sm:$0x1]
    %v1914 = vlaneseq
    %v1915 = vshrl.u32 %v1914, 7
    %v1916 = vsub.s32 0, %v1915
    %v1917 = vrot.slane %v1912, %v1916
    %1919 = vmatprep.subr.mxu0 0.0
    %1920 = vmatpush1.msra.mxu0 %v1910
    %1921 = vmatprep.subr.mxu0 0.0
    %1922 = vmatpush1.msra.mxu0 %v1911
    %1923 = vmatprep.subr.mxu0 0.0
    %1924 = vmatpush1.msra.mxu0 0.0
    %1925 = vmatprep.subr.mxu0 0.0
    %1926 = vmatpush1.msra.mxu0 0.0
    %1927 = vmatprep.subr.mxu0 0.0
    %1928 = vmatpush1.msra.mxu0 0.0
    %1929 = vmatprep.subr.mxu0 0.0
    %1930 = vmatpush1.msra.mxu0 0.0
    %1931 = vmatprep.subr.mxu0 0.0
    %1932 = vmatpush1.msra.mxu0 0.0
    %1933 = vmatprep.subr.mxu0 0.0
    %1934 = vmatpush1.msra.mxu0 0.0
    %1935 = vmatprep.subr.mxu0 0.0
    %1936 = vmatpush1.msra.mxu0 0.0
    %1937 = vmatprep.subr.mxu0 0.0
    %1938 = vmatpush1.msra.mxu0 0.0
    %1939 = vmatprep.subr.mxu0 0.0
    %1940 = vmatpush1.msra.mxu0 0.0
    %1941 = vmatprep.subr.mxu0 0.0
    %1942 = vmatpush1.msra.mxu0 0.0
    %1943 = vmatprep.subr.mxu0 0.0
    %1944 = vmatpush1.msra.mxu0 0.0
    %1945 = vmatprep.subr.mxu0 0.0
    %1946 = vmatpush1.msra.mxu0 0.0
    %1947 = vmatprep.subr.mxu0 0.0
    %1948 = vmatpush1.msra.mxu0 0.0
    %1949 = vmatprep.subr.mxu0 0.0
    %1950 = vmatpush1.msra.mxu0 0.0
    %1951 = vmatprep.subr.mxu0 0.0
    %1952 = vmatpush1.msra.mxu0 0.0
    %1953 = vmatprep.subr.mxu0 0.0
    %1954 = vmatpush1.msra.mxu0 0.0
    %1955 = vmatprep.subr.mxu0 0.0
    %1956 = vmatpush1.msra.mxu0 0.0
    %1957 = vmatprep.subr.mxu0 0.0
    %1958 = vmatpush1.msra.mxu0 0.0
    %1959 = vmatprep.subr.mxu0 0.0
    %1960 = vmatpush1.msra.mxu0 0.0
    %1961 = vmatprep.subr.mxu0 0.0
    %1962 = vmatpush1.msra.mxu0 0.0
    %1963 = vmatprep.subr.mxu0 0.0
    %1964 = vmatpush1.msra.mxu0 0.0
    %1965 = vmatprep.subr.mxu0 0.0
    %1966 = vmatpush1.msra.mxu0 0.0
    %1967 = vmatprep.subr.mxu0 0.0
    %1968 = vmatpush1.msra.mxu0 0.0
    %1969 = vmatprep.subr.mxu0 0.0
    %1970 = vmatpush1.msra.mxu0 0.0
    %1971 = vmatprep.subr.mxu0 0.0
    %1972 = vmatpush1.msra.mxu0 0.0
    %1973 = vmatprep.subr.mxu0 0.0
    %1974 = vmatpush1.msra.mxu0 0.0
    %1975 = vmatprep.subr.mxu0 0.0
    %1976 = vmatpush1.msra.mxu0 0.0
    %1977 = vmatprep.subr.mxu0 0.0
    %1978 = vmatpush1.msra.mxu0 0.0
    %1979 = vmatprep.subr.mxu0 0.0
    %1980 = vmatpush1.msra.mxu0 0.0
    %1981 = vmatprep.subr.mxu0 0.0
    %1982 = vmatpush1.msra.mxu0 0.0
    %1983 = vmatprep.mubr.f32.mxu0 0.0
    %1984 = vmatmul.mubr.f32.gmra.mrb[0].mxu0 %v1838
    %v1985 = vpop.f32.mrb[0].mxu0
    %v1986 = vadd.f32 %v1917, %v1985
    %v1987 = vpop.f32.mrb[0].mxu0
    %1988 = vdwg.mxu0
    %v1989 = vand.u32 2147483647, %v1986
    %v1990 = vsub.f32 0.0, %v1989
    %v1991 = vadd.f32 %v1990, 1.0
    %v1992 = vmul.f32 %v1907, %v1907
    %v1993 = vsub.f32 %v1991, %v1992
    %v1994 = vmul.f32 %v1990, 1.442695
    %v1995 = vpow.pop %v1994
    %v1996 = vsub.f32 %v1993, %v1995
    %vm1997 = vcmask 58368
    %v1998 = vsel %vm1997, %v1996, 0.0
    %1999 = vadd.xlane.f32.xlu0 %v1998
    %v2000 = vpop.xlane.xlu0 %1999
    %v2001 = vrot.slane %v2000, 4
    %v2002 = vadd.f32 %v2000, %v2001
    %v2003 = vrot.slane %v2002, 2
    %v2004 = vadd.f32 %v2002, %v2003
    %v2005 = vrot.slane %v2004, 1
    %v2006 = vadd.f32 %v2004, %v2005
    %s2007 = vtos %v2006
    %v2008 = vrcp.pop 16.0
    %s2009 = vtos %v2008
    %s2010 = smul.f32 %s2007, %s2009
    %s2011 = smul.f32 %s2010, -0.5
    %v2012 = vmul.f32 %v1990, 0.5
    %v2013 = vmul.f32 %v2012, 1.442695
    %v2014 = vpow.pop %v2013
    %v2015 = vld [vmem:[%s5] sm:$0x3]
    %v2016 = vmul.f32 %v2014, %v2015
    %v2017 = vadd.f32 %v1907, %v2016
    %v2018 = vld [vmem:[%s41] sm:$0xff]
    %v2019 = vld [vmem:[%s41 + $0x8] sm:$0xff]
    %v2020 = vld [vmem:[%s41 + $0x10] sm:$0xff]
    %v2021 = vld [vmem:[%s41 + $0x18] sm:$0xff]
    %v2022 = vld [vmem:[%s41 + $0x20] sm:$0xff]
    %v2023 = vld [vmem:[%s41 + $0x28] sm:$0xff]
    %v2024 = vld [vmem:[%s41 + $0x30] sm:$0xff]
    %v2025 = vld [vmem:[%s41 + $0x38] sm:$0xff]
    %v2026 = vld [vmem:[%s41 + $0x40] sm:$0xff]
    %v2027 = vld [vmem:[%s41 + $0x48] sm:$0xff]
    %v2028 = vld [vmem:[%s41 + $0x50] sm:$0xff]
    %v2029 = vld [vmem:[%s41 + $0x58] sm:$0xff]
    %v2030 = vld [vmem:[%s41 + $0x60] sm:$0xff]
    %v2031 = vld [vmem:[%s41 + $0x68] sm:$0xff]
    %v2032 = vld [vmem:[%s41 + $0x70] sm:$0xff]
    %v2033 = vld [vmem:[%s41 + $0x78] sm:$0xff]
    %v2034 = vld [vmem:[%s43] sm:$0xff]
    %v2036 = vsel %vm316, %v2017, 0
    %2038 = vmatprep.subr.mxu0 0.0
    %2039 = vmatpush1.msra.mxu0 %v2034
    %2040 = vmatprep.subr.mxu0 0.0
    %2041 = vmatpush1.msra.mxu0 0.0
    %2042 = vmatprep.subr.mxu0 0.0
    %2043 = vmatpush1.msra.mxu0 0.0
    %2044 = vmatprep.subr.mxu0 0.0
    %2045 = vmatpush1.msra.mxu0 0.0
    %2046 = vmatprep.subr.mxu0 0.0
    %2047 = vmatpush1.msra.mxu0 0.0
    %2048 = vmatprep.subr.mxu0 0.0
    %2049 = vmatpush1.msra.mxu0 0.0
    %2050 = vmatprep.subr.mxu0 0.0
    %2051 = vmatpush1.msra.mxu0 0.0
    %2052 = vmatprep.subr.mxu0 0.0
    %2053 = vmatpush1.msra.mxu0 0.0
    %2054 = vmatprep.subr.mxu0 0.0
    %2055 = vmatpush1.msra.mxu0 0.0
    %2056 = vmatprep.subr.mxu0 0.0
    %2057 = vmatpush1.msra.mxu0 0.0
    %2058 = vmatprep.subr.mxu0 0.0
    %2059 = vmatpush1.msra.mxu0 0.0
    %2060 = vmatprep.subr.mxu0 0.0
    %2061 = vmatpush1.msra.mxu0 0.0
    %2062 = vmatprep.subr.mxu0 0.0
    %2063 = vmatpush1.msra.mxu0 0.0
    %2064 = vmatprep.subr.mxu0 0.0
    %2065 = vmatpush1.msra.mxu0 0.0
    %2066 = vmatprep.subr.mxu0 0.0
    %2067 = vmatpush1.msra.mxu0 0.0
    %2068 = vmatprep.subr.mxu0 0.0
    %2069 = vmatpush1.msra.mxu0 0.0
    %2070 = vmatprep.subr.mxu0 0.0
    %2071 = vmatpush1.msra.mxu0 0.0
    %2072 = vmatprep.subr.mxu0 0.0
    %2073 = vmatpush1.msra.mxu0 0.0
    %2074 = vmatprep.subr.mxu0 0.0
    %2075 = vmatpush1.msra.mxu0 0.0
    %2076 = vmatprep.subr.mxu0 0.0
    %2077 = vmatpush1.msra.mxu0 0.0
    %2078 = vmatprep.subr.mxu0 0.0
    %2079 = vmatpush1.msra.mxu0 0.0
    %2080 = vmatprep.subr.mxu0 0.0
    %2081 = vmatpush1.msra.mxu0 0.0
    %2082 = vmatprep.subr.mxu0 0.0
    %2083 = vmatpush1.msra.mxu0 0.0
    %2084 = vmatprep.subr.mxu0 0.0
    %2085 = vmatpush1.msra.mxu0 0.0
    %2086 = vmatprep.subr.mxu0 0.0
    %2087 = vmatpush1.msra.mxu0 0.0
    %2088 = vmatprep.subr.mxu0 0.0
    %2089 = vmatpush1.msra.mxu0 0.0
    %2090 = vmatprep.subr.mxu0 0.0
    %2091 = vmatpush1.msra.mxu0 0.0
    %2092 = vmatprep.subr.mxu0 0.0
    %2093 = vmatpush1.msra.mxu0 0.0
    %2094 = vmatprep.subr.mxu0 0.0
    %2095 = vmatpush1.msra.mxu0 0.0
    %2096 = vmatprep.subr.mxu0 0.0
    %2097 = vmatpush1.msra.mxu0 0.0
    %2098 = vmatprep.subr.mxu0 0.0
    %2099 = vmatpush1.msra.mxu0 0.0
    %2100 = vmatprep.subr.mxu0 0.0
    %2101 = vmatpush1.msra.mxu0 0.0
    %2102 = vmatprep.mubr.f32.mxu0 0.0
    %2103 = vmatmul.mubr.f32.gmra.mrb[0].mxu0 %v2036
    %v2104 = vpop.f32.mrb[0].mxu0
    %v2105 = vadd.f32 0.0, %v2104
    %v2106 = vpop.f32.mrb[0].mxu0
    %2107 = vdwg.mxu0
    %2108 = vmatprep.subr.mxu0 0.0
    %2109 = vmatpush1.msra.mxu0 %v2018
    %2110 = vmatprep.subr.mxu0 0.0
    %2111 = vmatpush1.msra.mxu0 %v2019
    %2112 = vmatprep.subr.mxu0 0.0
    %2113 = vmatpush1.msra.mxu0 %v2020
    %2114 = vmatprep.subr.mxu0 0.0
    %2115 = vmatpush1.msra.mxu0 %v2021
    %2116 = vmatprep.subr.mxu0 0.0
    %2117 = vmatpush1.msra.mxu0 %v2022
    %2118 = vmatprep.subr.mxu0 0.0
    %2119 = vmatpush1.msra.mxu0 %v2023
    %2120 = vmatprep.subr.mxu0 0.0
    %2121 = vmatpush1.msra.mxu0 %v2024
    %2122 = vmatprep.subr.mxu0 0.0
    %2123 = vmatpush1.msra.mxu0 %v2025
    %2124 = vmatprep.subr.mxu0 0.0
    %2125 = vmatpush1.msra.mxu0 %v2026
    %2126 = vmatprep.subr.mxu0 0.0
    %2127 = vmatpush1.msra.mxu0 %v2027
    %2128 = vmatprep.subr.mxu0 0.0
    %2129 = vmatpush1.msra.mxu0 %v2028
    %2130 = vmatprep.subr.mxu0 0.0
    %2131 = vmatpush1.msra.mxu0 %v2029
    %2132 = vmatprep.subr.mxu0 0.0
    %2133 = vmatpush1.msra.mxu0 %v2030
    %2134 = vmatprep.subr.mxu0 0.0
    %2135 = vmatpush1.msra.mxu0 %v2031
    %2136 = vmatprep.subr.mxu0 0.0
    %2137 = vmatpush1.msra.mxu0 %v2032
    %2138 = vmatprep.subr.mxu0 0.0
    %2139 = vmatpush1.msra.mxu0 %v2033
    %2140 = vmatprep.subr.mxu0 0.0
    %2141 = vmatpush1.msra.mxu0 0.0
    %2142 = vmatprep.subr.mxu0 0.0
    %2143 = vmatpush1.msra.mxu0 0.0
    %2144 = vmatprep.subr.mxu0 0.0
    %2145 = vmatpush1.msra.mxu0 0.0
    %2146 = vmatprep.subr.mxu0 0.0
    %2147 = vmatpush1.msra.mxu0 0.0
    %2148 = vmatprep.subr.mxu0 0.0
    %2149 = vmatpush1.msra.mxu0 0.0
    %2150 = vmatprep.subr.mxu0 0.0
    %2151 = vmatpush1.msra.mxu0 0.0
    %2152 = vmatprep.subr.mxu0 0.0
    %2153 = vmatpush1.msra.mxu0 0.0
    %2154 = vmatprep.subr.mxu0 0.0
    %2155 = vmatpush1.msra.mxu0 0.0
    %2156 = vmatprep.subr.mxu0 0.0
    %2157 = vmatpush1.msra.mxu0 0.0
    %2158 = vmatprep.subr.mxu0 0.0
    %2159 = vmatpush1.msra.mxu0 0.0
    %2160 = vmatprep.subr.mxu0 0.0
    %2161 = vmatpush1.msra.mxu0 0.0
    %2162 = vmatprep.subr.mxu0 0.0
    %2163 = vmatpush1.msra.mxu0 0.0
    %2164 = vmatprep.subr.mxu0 0.0
    %2165 = vmatpush1.msra.mxu0 0.0
    %2166 = vmatprep.subr.mxu0 0.0
    %2167 = vmatpush1.msra.mxu0 0.0
    %2168 = vmatprep.subr.mxu0 0.0
    %2169 = vmatpush1.msra.mxu0 0.0
    %2170 = vmatprep.subr.mxu0 0.0
    %2171 = vmatpush1.msra.mxu0 0.0
    %2172 = vmatprep.mubr.f32.mxu0 0.0
    %2173 = vmatmul.mubr.f32.gmra.mrb[0].mxu0 %v922
    %v2174 = vpop.f32.mrb[0].mxu0
    %v2175 = vadd.f32 %v2105, %v2174
    %v2176 = vpop.f32.mrb[0].mxu0
    %2177 = vdwg.mxu0
    %v2178 = vld [vmem:[#allocation18] sm:$0x1]
    %v2180 = vlaneseq
    %v2181 = vshrl.u32 %v2180, 7
    %v2182 = vsub.s32 0, %v2181
    %v2183 = vrot.slane %v2178, %v2182
    %v2185 = vadd.f32 %v2175, %v2183
    %v2186 = vtanh.pop %v2185
    %v2187 = vld [vmem:[%s47] sm:$0xff]
    %v2188 = vld [vmem:[%s47 + $0x8] sm:$0xff]
    %v2189 = vld [vmem:[%s47 + $0x10] sm:$0xff]
    %v2190 = vld [vmem:[%s47 + $0x18] sm:$0xff]
    %v2191 = vld [vmem:[%s47 + $0x20] sm:$0x1f]
    %v2192 = vld [vmem:[%s49] sm:$0x1]
    %v2194 = vlaneseq
    %v2195 = vshrl.u32 %v2194, 7
    %v2196 = vsub.s32 0, %v2195
    %v2197 = vrot.slane %v2192, %v2196
    %vm2199 = vcmask 302080
    %v2201 = vsel %vm2199, %v2186, 0
    %vm2203 = vcmask 1044480
    %v2205 = vsel %vm2203, %v2191, 0
    %2207 = vmatprep.subr.mxu0 0.0
    %2208 = vmatpush1.msra.mxu0 %v2187
    %2209 = vmatprep.subr.mxu0 0.0
    %2210 = vmatpush1.msra.mxu0 %v2188
    %2211 = vmatprep.subr.mxu0 0.0
    %2212 = vmatpush1.msra.mxu0 %v2189
    %2213 = vmatprep.subr.mxu0 0.0
    %2214 = vmatpush1.msra.mxu0 %v2190
    %2215 = vmatprep.subr.mxu0 0.0
    %2216 = vmatpush1.msra.mxu0 %v2205
    %2217 = vmatprep.subr.mxu0 0.0
    %2218 = vmatpush1.msra.mxu0 0.0
    %2219 = vmatprep.subr.mxu0 0.0
    %2220 = vmatpush1.msra.mxu0 0.0
    %2221 = vmatprep.subr.mxu0 0.0
    %2222 = vmatpush1.msra.mxu0 0.0
    %2223 = vmatprep.subr.mxu0 0.0
    %2224 = vmatpush1.msra.mxu0 0.0
    %2225 = vmatprep.subr.mxu0 0.0
    %2226 = vmatpush1.msra.mxu0 0.0
    %2227 = vmatprep.subr.mxu0 0.0
    %2228 = vmatpush1.msra.mxu0 0.0
    %2229 = vmatprep.subr.mxu0 0.0
    %2230 = vmatpush1.msra.mxu0 0.0
    %2231 = vmatprep.subr.mxu0 0.0
    %2232 = vmatpush1.msra.mxu0 0.0
    %2233 = vmatprep.subr.mxu0 0.0
    %2234 = vmatpush1.msra.mxu0 0.0
    %2235 = vmatprep.subr.mxu0 0.0
    %2236 = vmatpush1.msra.mxu0 0.0
    %2237 = vmatprep.subr.mxu0 0.0
    %2238 = vmatpush1.msra.mxu0 0.0
    %2239 = vmatprep.subr.mxu0 0.0
    %2240 = vmatpush1.msra.mxu0 0.0
    %2241 = vmatprep.subr.mxu0 0.0
    %2242 = vmatpush1.msra.mxu0 0.0
    %2243 = vmatprep.subr.mxu0 0.0
    %2244 = vmatpush1.msra.mxu0 0.0
    %2245 = vmatprep.subr.mxu0 0.0
    %2246 = vmatpush1.msra.mxu0 0.0
    %2247 = vmatprep.subr.mxu0 0.0
    %2248 = vmatpush1.msra.mxu0 0.0
    %2249 = vmatprep.subr.mxu0 0.0
    %2250 = vmatpush1.msra.mxu0 0.0
    %2251 = vmatprep.subr.mxu0 0.0
    %2252 = vmatpush1.msra.mxu0 0.0
    %2253 = vmatprep.subr.mxu0 0.0
    %2254 = vmatpush1.msra.mxu0 0.0
    %2255 = vmatprep.subr.mxu0 0.0
    %2256 = vmatpush1.msra.mxu0 0.0
    %2257 = vmatprep.subr.mxu0 0.0
    %2258 = vmatpush1.msra.mxu0 0.0
    %2259 = vmatprep.subr.mxu0 0.0
    %2260 = vmatpush1.msra.mxu0 0.0
    %2261 = vmatprep.subr.mxu0 0.0
    %2262 = vmatpush1.msra.mxu0 0.0
    %2263 = vmatprep.subr.mxu0 0.0
    %2264 = vmatpush1.msra.mxu0 0.0
    %2265 = vmatprep.subr.mxu0 0.0
    %2266 = vmatpush1.msra.mxu0 0.0
    %2267 = vmatprep.subr.mxu0 0.0
    %2268 = vmatpush1.msra.mxu0 0.0
    %2269 = vmatprep.subr.mxu0 0.0
    %2270 = vmatpush1.msra.mxu0 0.0
    %2271 = vmatprep.mubr.f32.mxu0 0.0
    %2272 = vmatmul.mubr.f32.gmra.mrb[0].mxu0 %v2201
    %v2273 = vpop.f32.mrb[0].mxu0
    %v2274 = vadd.f32 %v2197, %v2273
    %v2275 = vpop.f32.mrb[0].mxu0
    %2276 = vdwg.mxu0
    %v2277 = vsub.f32 %v2274, %v265
    %v2278 = vmul.f32 %v2277, %v2277
    %vm2279 = vcmask 1041408
    %v2280 = vsel %vm2279, %v2278, 0.0
    %2281 = vadd.xlane.f32.xlu0 %v2280
    %v2282 = vpop.xlane.xlu0 %2281
    %vm2283 = vcmask 1024
    %v2284 = vsel %vm2283, %v2282, 0.0
    %2285 = vadd.xlane.f32.xlu0 %v2284
    %v2286 = vpop.xlane.xlu0 %2285
    %v2287 = vrot.slane %v2286, 4
    %v2288 = vadd.f32 %v2286, %v2287
    %v2289 = vrot.slane %v2288, 2
    %v2290 = vadd.f32 %v2288, %v2289
    %v2291 = vrot.slane %v2290, 1
    %v2292 = vadd.f32 %v2290, %v2291
    %s2293 = vtos %v2292
    %v2294 = vrcp.pop 2.0
    %s2295 = vtos %v2294
    %s2296 = smul.f32 %s2293, %s2295
    %s2297 = scalar_lea.smem [#allocation24], 0
    %2298 = sst [smem:[%s2297]] %s2011
    %s2299 = sadd.f32 %s2296, %s2011
    %s2300 = scalar_lea.smem [#allocation25], 0
    %2301 = sst [smem:[%s2300]] %s2299
    %2302 = vrot.lane.b32.xlu0 %v2017, 28
    %v2303 = vpop.permute.xlu0 %2302
    %vm2305 = vcmask 228352
    %v2306 = vsel %vm2305, %v922, %v2303
    %vm2307 = vcmask 293888
    %v2308 = vsel %vm2307, %v2306, 0.0
    %2309 = vst [vmem:[#allocation23] sm:$0x3] %v2308
    %v2310 = vmul.f32 %v923, %v923
    %s2311 = smul.f32 %s830, 4.0
    %s2312 = smul.f32 %s2311, %s832
    %v2313 = vstv %s2312
    %v2314 = vadd.f32 %v2310, %v2313
    %v2315 = vmax.f32 %v2314, 1e-08
    %v2316 = vrsqrt.pop %v2315
    %v2317 = vmul.f32 %v2315, %v2316
    %vm2318 = vcmp.eq.f32.partialorder %v2315, inf
    %v2319 = vsel %vm2318, %v2315, %v2317
    %vm2320 = vcmp.eq.f32.partialorder %v2315, 0.0
    %v2321 = vand.u32 %v2315, 2147483648
    %v2322 = vsel %vm2320, %v2321, %v2319
    %v2323 = vsub.f32 %v923, %v2322
    %v2324 = vmul.f32 %v2323, 0.5
    %v2325 = vmul.f32 %v912, %v2274
    %v2326 = vadd.f32 %v2325, %v401
    %v2327 = vld [vmem:[%s9] sm:$0xff]
    %v2329 = vsel %vm316, %v2324, 0
    %2331 = vmatprep.subr.mxu0 0.0
    %2332 = vmatpush1.msra.mxu0 %v2327
    %2333 = vmatprep.subr.mxu0 0.0
    %2334 = vmatpush1.msra.mxu0 0.0
    %2335 = vmatprep.subr.mxu0 0.0
    %2336 = vmatpush1.msra.mxu0 0.0
    %2337 = vmatprep.subr.mxu0 0.0
    %2338 = vmatpush1.msra.mxu0 0.0
    %2339 = vmatprep.subr.mxu0 0.0
    %2340 = vmatpush1.msra.mxu0 0.0
    %2341 = vmatprep.subr.mxu0 0.0
    %2342 = vmatpush1.msra.mxu0 0.0
    %2343 = vmatprep.subr.mxu0 0.0
    %2344 = vmatpush1.msra.mxu0 0.0
    %2345 = vmatprep.subr.mxu0 0.0
    %2346 = vmatpush1.msra.mxu0 0.0
    %2347 = vmatprep.subr.mxu0 0.0
    %2348 = vmatpush1.msra.mxu0 0.0
    %2349 = vmatprep.subr.mxu0 0.0
    %2350 = vmatpush1.msra.mxu0 0.0
    %2351 = vmatprep.subr.mxu0 0.0
    %2352 = vmatpush1.msra.mxu0 0.0
    %2353 = vmatprep.subr.mxu0 0.0
    %2354 = vmatpush1.msra.mxu0 0.0
    %2355 = vmatprep.subr.mxu0 0.0
    %2356 = vmatpush1.msra.mxu0 0.0
    %2357 = vmatprep.subr.mxu0 0.0
    %2358 = vmatpush1.msra.mxu0 0.0
    %2359 = vmatprep.subr.mxu0 0.0
    %2360 = vmatpush1.msra.mxu0 0.0
    %2361 = vmatprep.subr.mxu0 0.0
    %2362 = vmatpush1.msra.mxu0 0.0
    %2363 = vmatprep.subr.mxu0 0.0
    %2364 = vmatpush1.msra.mxu0 0.0
    %2365 = vmatprep.subr.mxu0 0.0
    %2366 = vmatpush1.msra.mxu0 0.0
    %2367 = vmatprep.subr.mxu0 0.0
    %2368 = vmatpush1.msra.mxu0 0.0
    %2369 = vmatprep.subr.mxu0 0.0
    %2370 = vmatpush1.msra.mxu0 0.0
    %2371 = vmatprep.subr.mxu0 0.0
    %2372 = vmatpush1.msra.mxu0 0.0
    %2373 = vmatprep.subr.mxu0 0.0
    %2374 = vmatpush1.msra.mxu0 0.0
    %2375 = vmatprep.subr.mxu0 0.0
    %2376 = vmatpush1.msra.mxu0 0.0
    %2377 = vmatprep.subr.mxu0 0.0
    %2378 = vmatpush1.msra.mxu0 0.0
    %2379 = vmatprep.subr.mxu0 0.0
    %2380 = vmatpush1.msra.mxu0 0.0
    %2381 = vmatprep.subr.mxu0 0.0
    %2382 = vmatpush1.msra.mxu0 0.0
    %2383 = vmatprep.subr.mxu0 0.0
    %2384 = vmatpush1.msra.mxu0 0.0
    %2385 = vmatprep.subr.mxu0 0.0
    %2386 = vmatpush1.msra.mxu0 0.0
    %2387 = vmatprep.subr.mxu0 0.0
    %2388 = vmatpush1.msra.mxu0 0.0
    %2389 = vmatprep.subr.mxu0 0.0
    %2390 = vmatpush1.msra.mxu0 0.0
    %2391 = vmatprep.subr.mxu0 0.0
    %2392 = vmatpush1.msra.mxu0 0.0
    %2393 = vmatprep.subr.mxu0 0.0
    %2394 = vmatpush1.msra.mxu0 0.0
    %2395 = vmatprep.mubr.f32.mxu0 0.0
    %2396 = vmatmul.mubr.f32.gmra.mrb[0].mxu0 %v2329
    %v2397 = vpop.f32.mrb[0].mxu0
    %v2398 = vadd.f32 0.0, %v2397
    %v2399 = vpop.f32.mrb[0].mxu0
    %2400 = vdwg.mxu0
    %v2401 = vadd.f32 %v2326, %v2398
    %v2402 = vmul.f32 %v919, %v2401
    %v2403 = vsub.f32 %v2274, %v2402
    %v2404 = vsub.f32 %v801, %v922
    %v2405 = vadd.f32 %v2404, %v2403
    %v2408 = vunpack.c.l.s4 1966171168
    %v2409 = vunpack.c.0.s8 %v2408
    %v2410 = vlaneseq
    %v2411 = vshrl.u32 %v2410, 7
    %v2412 = vsub.s32 %v2409, %v2411
    %v2413 = vrot.slane %v2405, %v2412
    %v2414 = vcombine.high %v2413, %v2413
    %v2416 = vunpack.c.l.s4 1966171168
    %v2417 = vunpack.c.0.s8 %v2416
    %v2418 = vlaneseq
    %v2419 = vshrl.u32 %v2418, 7
    %v2420 = vsub.s32 %v2417, %v2419
    %v2421 = vrot.slane %v2413, %v2420
    %v2423 = vunpack.c.l.s4 1966171168
    %v2424 = vunpack.c.0.s8 %v2423
    %v2425 = vlaneseq
    %v2426 = vshrl.u32 %v2425, 7
    %v2427 = vsub.s32 %v2424, %v2426
    %v2428 = vrot.slane %v2414, %v2427
    %2431 = vst [vmem:[%s57 + $0x2] sm:$0x1] %v2421
    %2432 = vst [vmem:[%s57 + $0x6] sm:$0x1] %v2428
    // Predicated region
    $region162: #{forward.1} parent=1 // pred_check
      _
    $region163: #{forward.1} parent=1 // pred_check_branch
      %2434 = sbr.rel (0) target = $region165
    $region164: #{forward.1} parent=1 // pred_region
      _
    $region165: #{forward.1} parent=1 // pred_fallthru
      _
    // Predicated region
    $region166: #{forward.1} parent=1 // pred_check
      _
    $region167: #{forward.1} parent=1 // pred_check_branch
      %2436 = sbr.rel (0) target = $region169
    $region168: #{forward.1} parent=1 // pred_region
      %s2438 = ssub.s32 32, 32
      %2439 = vsyncadd [#allocation4], %s2438
      %s2441 = sshll.u32 [#allocation23], 4
      %s2442 = int_to_ptr.vmem [resolvable:$true] %s2441
      %2444 = dma.vmem_to_hbm [thread:$0]  %s2442, 32, %s59, [#allocation4]
    $region169: #{forward.1} parent=1 // pred_fallthru
      _
    // Predicated region
    $region170: #{forward.1} parent=1 // pred_check
      _
    $region171: #{forward.1} parent=1 // pred_check_branch
      %2446 = sbr.rel (0) target = $region173
    $region172: #{forward.1} parent=1 // pred_region
      %s2448 = ssub.s32 16, 16
      %2449 = vsyncadd [#allocation6], %s2448
      %2452 = dma.smem_to_hbm [#allocation24], 16, %s61, [#allocation6]
    $region173: #{forward.1} parent=1 // pred_fallthru
      _
    // Predicated region
    $region174: #{forward.1} parent=1 // pred_check
      _
    $region175: #{forward.1} parent=1 // pred_check_branch
      %2454 = sbr.rel (0) target = $region177
    $region176: #{forward.1} parent=1 // pred_region
      %s2456 = ssub.s32 16, 16
      %2457 = vsyncadd [#allocation26], %s2456
      %2460 = dma.smem_to_hbm [#allocation25], 16, %s63, [#allocation26]
    $region177: #{forward.1} parent=1 // pred_fallthru
      _
    // Predicated region
    $region178: #{forward.1} parent=1 // pred_check
      _
    $region179: #{forward.1} parent=1 // pred_check_branch
      %2462 = sbr.rel (0) target = $region181
    $region180: #{forward.1} parent=1 // pred_region
      _
    $region181: #{forward.1} parent=1 // pred_fallthru
      _
    // Predicated region
    $region182: #{forward.1} parent=1 // pred_check
      _
    $region183: #{forward.1} parent=1 // pred_check_branch
      %2464 = sbr.rel (0) target = $region185
    $region184: #{forward.1} parent=1 // pred_region
      %2465 = dma.done [#allocation4], 32
    $region185: #{forward.1} parent=1 // pred_fallthru
      _
    // Predicated region
    $region186: #{forward.1} parent=1 // pred_check
      _
    $region187: #{forward.1} parent=1 // pred_check_branch
      %2467 = sbr.rel (0) target = $region189
    $region188: #{forward.1} parent=1 // pred_region
      %2468 = dma.done [#allocation6], 16
    $region189: #{forward.1} parent=1 // pred_fallthru
      _
    // Predicated region
    $region190: #{forward.1} parent=1 // pred_check
      _
    $region191: #{forward.1} parent=1 // pred_check_branch
      %2470 = sbr.rel (0) target = $region193
    $region192: #{forward.1} parent=1 // pred_region
      %2471 = dma.done [#allocation26], 16
    $region193: #{forward.1} parent=1 // pred_fallthru
      _
    %2472 = sfence
    %2473 = vsyncpa [#allocation3], 1
    %2474 = vsyncpa [#allocation8], 1
    %2475 = vsyncpa [#allocation11], 1
    %2476 = vsyncpa [#allocation14], 1
    %2477 = vsyncpa [#allocation17], 1
    %2478 = vsyncpa [#allocation4], 1
    %2479 = vsyncpa [#allocation5], 1
    %2480 = vsyncpa [#allocation21], 1
    %2481 = vsyncpa [#allocation6], 1
    %2482 = vsyncpa [#allocation26], 1

</llo_original>
